<compile_context>
chip_gen: v7x
topology: tpu7x:2x2x1
jax: 0.10.0
libtpu: 0.0.40
codegen_flags: <defaults>
</compile_context>

<pallas_src>
import math
import jax
import jax.numpy as jnp
from jax.experimental import pallas as pl
from jax.experimental.pallas import tpu as pltpu

# ---- small BERT-like config (consistent with the module's forward) ----------
VOCAB = 100
TYPE_VOCAB = 2
MAX_POS = 16
HIDDEN = 32
N_HEADS = 4
HEAD_DIM = HIDDEN // N_HEADS
FFN = 64
N_LAYERS = 2
EPS = 1e-12          # BERT layer_norm_eps
NEG_INF = -1e9


# ----------------------------- kernel helpers --------------------------------
def _layernorm(x, g, b):
    mu = jnp.mean(x, axis=-1, keepdims=True)
    var = jnp.mean((x - mu) ** 2, axis=-1, keepdims=True)
    return (x - mu) * jax.lax.rsqrt(var + EPS) * g + b


def _gelu(x):
    # TODO(synk): HF BERT uses the exact erf GELU; tanh approximation here.
    c = math.sqrt(2.0 / math.pi)
    return 0.5 * x * (1.0 + jnp.tanh(c * (x + 0.044715 * x * x * x)))


# ----------------------------- fused Pallas kernel ----------------------------
def fused_encoder_kernel(emb_ref, mask_ref, embln_ref,
                         wqkv_ref, bqkv_ref, wo_ref,
                         w1_ref, b1_ref, w2_ref, vec_ref,
                         o_ref):
    """Single grid step: embedding LayerNorm + all encoder layers unrolled.

    vec_ref[l] rows: 0=bo, 1=ln1_g, 2=ln1_b, 3=b2, 4=ln2_g, 5=ln2_b.
    The 1/sqrt(HEAD_DIM) score scale is pre-folded into the Q part of wqkv.
    """
    # Prologue: embedding LayerNorm initializes the resident activation.
    x = _layernorm(emb_ref[...], embln_ref[0:1, :], embln_ref[1:2, :])
    mask = mask_ref[...]           # (B*S, B*S) block-diag + key-padding additive mask

    for l in range(N_LAYERS):      # static unroll: trivially small layer count
        # ---- fused QKV projection: one (BS,H)@(H,3H) MXU dot ----
        qkv = jnp.dot(x, wqkv_ref[l], preferred_element_type=jnp.float32) + bqkv_ref[l]

        # ---- per-head attention on lane slices of the 96-wide qkv ----
        ctx_heads = []
        for h in range(N_HEADS):
            lo = h * HEAD_DIM
            qh = qkv[:, lo:lo + HEAD_DIM]
            kh = qkv[:, HIDDEN + lo:HIDDEN + lo + HEAD_DIM]
            vh = qkv[:, 2 * HIDDEN + lo:2 * HIDDEN + lo + HEAD_DIM]
            s = jnp.dot(qh, kh.T, preferred_element_type=jnp.float32) + mask
            m = jnp.max(s, axis=-1, keepdims=True)
            e = jnp.exp(s - m)
            inv = pl.reciprocal(jnp.sum(e, axis=-1, keepdims=True), approx=True)
            p = e * inv
            ctx_heads.append(jnp.dot(p, vh, preferred_element_type=jnp.float32))
        ctx = jnp.concatenate(ctx_heads, axis=-1)        # (BS, H)

        vec = vec_ref[l]                                  # (6, H)
        # ---- single fused output projection (BS,H)@(H,H) ----
        attn = jnp.dot(ctx, wo_ref[l], preferred_element_type=jnp.float32) + vec[0:1, :]

        # ---- post-LN residual + FFN ----
        h1 = _layernorm(x + attn, vec[1:2, :], vec[2:3, :])
        ff = _gelu(jnp.dot(h1, w1_ref[l], preferred_element_type=jnp.float32) + b1_ref[l])
        ff = jnp.dot(ff, w2_ref[l], preferred_element_type=jnp.float32) + vec[3:4, :]
        x = _layernorm(h1 + ff, vec[4:5, :], vec[5:6, :])

    o_ref[...] = x


# ----------------------------- pallas_call wrapper ----------------------------
def bert_encoder_pallas(emb2, mask2, params):
    """emb2: (B*S, H) fp32 summed embeddings; mask2: (B*S, B*S) additive mask."""
    BS, H = emb2.shape

    # Fold the attention score scale into Wq / bq (one-time host transform).
    scale = 1.0 / math.sqrt(HEAD_DIM)
    wq = params['wq'] * scale
    bq = params['bq'] * scale

    # Pack weights so the kernel sees few, wide operands.
    wqkv = jnp.concatenate([wq, params['wk'], params['wv']], axis=-1)      # (L, H, 3H)
    bqkv = jnp.concatenate([bq, params['bk'], params['bv']], axis=-1)      # (L, 1, 3H)
    embln = jnp.concatenate([params['emb_ln_g'], params['emb_ln_b']], axis=0)  # (2, H)
    vecs = jnp.concatenate([params['bo'], params['ln1_g'], params['ln1_b'],
                            params['b2'], params['ln2_g'], params['ln2_b']],
                           axis=1)                                         # (L, 6, H)
    # TODO(synk): at real bert-base scale store matmul weights in bf16 and
    # K-tile w1/w2 with pl.Buffered; f32 whole-layer blocks are fine at toy size.

    args = (emb2, mask2, embln, wqkv, bqkv, params['wo'],
            params['w1'], params['b1'], params['w2'], vecs)

    def const_spec(a):
        n = a.ndim
        return pl.BlockSpec(a.shape, lambda i, n=n: (0,) * n)

    return pl.pallas_call(
        fused_encoder_kernel,
        out_shape=jax.ShapeDtypeStruct((BS, H), jnp.float32),
        grid=(1,),                               # single step: layers unrolled inside
        in_specs=[const_spec(a) for a in args],
        out_specs=pl.BlockSpec((BS, H), lambda i: (0, 0)),
        compiler_params=pltpu.CompilerParams(dimension_semantics=("arbitrary",)),
    )(*args)


# ----------------------------- model assembly --------------------------------
def init_params(key):
    def nrm(k, shape):
        return 0.02 * jax.random.normal(k, shape, jnp.float32)

    ks = jax.random.split(key, 9)
    L, H, F = N_LAYERS, HIDDEN, FFN
    z = lambda shape: jnp.zeros(shape, jnp.float32)
    o = lambda shape: jnp.ones(shape, jnp.float32)
    return {
        'word_emb': nrm(ks[0], (VOCAB, H)),
        'pos_emb':  nrm(ks[1], (MAX_POS, H)),
        'type_emb': nrm(ks[2], (TYPE_VOCAB, H)),
        'emb_ln_g': o((1, H)), 'emb_ln_b': z((1, H)),
        # per-layer weights stacked on a leading layer axis
        'wq': nrm(ks[3], (L, H, H)), 'bq': z((L, 1, H)),
        'wk': nrm(ks[4], (L, H, H)), 'bk': z((L, 1, H)),
        'wv': nrm(ks[5], (L, H, H)), 'bv': z((L, 1, H)),
        'wo': nrm(ks[6], (L, H, H)), 'bo': z((L, 1, H)),
        'ln1_g': o((L, 1, H)), 'ln1_b': z((L, 1, H)),
        'w1': nrm(ks[7], (L, H, F)), 'b1': z((L, 1, F)),
        'w2': nrm(ks[8], (L, F, H)), 'b2': z((L, 1, H)),
        'ln2_g': o((L, 1, H)), 'ln2_b': z((L, 1, H)),
    }


def language_model_forward(params, inputs):
    """Equivalent of Language_model.forward: returns last_hidden_state."""
    input_ids = inputs['input_ids']            # (B, S) int32
    attention_mask = inputs['attention_mask']  # (B, S) {0,1}
    token_type_ids = inputs['token_type_ids']  # (B, S) int32
    B, S = input_ids.shape

    # Embedding gather is data-dependent -> plain-JAX glue.
    emb = (jnp.take(params['word_emb'], input_ids, axis=0)
           + params['pos_emb'][None, :S, :]
           + jnp.take(params['type_emb'], token_type_ids, axis=0)).astype(jnp.float32)
    emb2 = emb.reshape(B * S, HIDDEN)

    # Block-diagonal additive mask over the flattened (B*S) token axis:
    # query i may attend key j iff same batch item AND attention_mask[j]==1
    # (BERT semantics: key-side padding mask only).
    batch_ids = jnp.repeat(jnp.arange(B, dtype=jnp.int32), S)
    same_item = batch_ids[:, None] == batch_ids[None, :]
    key_ok = attention_mask.reshape(-1) > 0.5
    mask2 = jnp.where(same_item & key_ok[None, :], 0.0, NEG_INF).astype(jnp.float32)

    h2 = bert_encoder_pallas(emb2, mask2, params)
    return h2.reshape(B, S, HIDDEN)            # last_hidden_state


# --------------------------------- main ---------------------------------------
if __name__ == "__main__":
    key = jax.random.PRNGKey(0)
    pkey, dkey = jax.random.split(key)
    params = init_params(pkey)

    B, S = 2, 8
    input_ids = jax.random.randint(dkey, (B, S), 0, VOCAB, dtype=jnp.int32)
    inputs = {
        'input_ids': input_ids,
        'attention_mask': jnp.ones((B, S), jnp.float32),
        'token_type_ids': jnp.zeros((B, S), jnp.int32),
    }

    out = language_model_forward(params, inputs)
    out = jax.block_until_ready(out)
    assert out.shape == (B, S, HIDDEN) and out.dtype == jnp.float32
    assert bool(jnp.all(jnp.isfinite(out)))
    print("KERNEL_OK")
</pallas_src>

<mosaic_0001>
module attributes {stable_mosaic.version = 11 : i64} {
  func.func @fused_encoder_kernel(%arg0: i32, %arg1: memref<16x32xf32, #tpu.memory_space<vmem>>, %arg2: memref<16x16xf32, #tpu.memory_space<vmem>>, %arg3: memref<2x32xf32, #tpu.memory_space<vmem>>, %arg4: memref<2x32x96xf32, #tpu.memory_space<vmem>>, %arg5: memref<2x1x96xf32, #tpu.memory_space<vmem>>, %arg6: memref<2x32x32xf32, #tpu.memory_space<vmem>>, %arg7: memref<2x32x64xf32, #tpu.memory_space<vmem>>, %arg8: memref<2x1x64xf32, #tpu.memory_space<vmem>>, %arg9: memref<2x64x32xf32, #tpu.memory_space<vmem>>, %arg10: memref<2x6x32xf32, #tpu.memory_space<vmem>>, %arg11: memref<16x32xf32, #tpu.memory_space<vmem>>) attributes {dimension_semantics = [#tpu.dimension_semantics<arbitrary>], iteration_bounds = array<i64: 1>, scalar_prefetch = 0 : i64, scratch_operands = 0 : i64, tpu.core_type = #tpu.core_type<tc>, window_params = [{pipeline_mode = #tpu.pipeline_mode<synchronous>, transform_indices = @transform_0, window_bounds = array<i64: 16, 32>}, {pipeline_mode = #tpu.pipeline_mode<synchronous>, transform_indices = @transform_1, window_bounds = array<i64: 16, 16>}, {pipeline_mode = #tpu.pipeline_mode<synchronous>, transform_indices = @transform_2, window_bounds = array<i64: 2, 32>}, {pipeline_mode = #tpu.pipeline_mode<synchronous>, transform_indices = @transform_3, window_bounds = array<i64: 2, 32, 96>}, {pipeline_mode = #tpu.pipeline_mode<synchronous>, transform_indices = @transform_4, window_bounds = array<i64: 2, 1, 96>}, {pipeline_mode = #tpu.pipeline_mode<synchronous>, transform_indices = @transform_5, window_bounds = array<i64: 2, 32, 32>}, {pipeline_mode = #tpu.pipeline_mode<synchronous>, transform_indices = @transform_6, window_bounds = array<i64: 2, 32, 64>}, {pipeline_mode = #tpu.pipeline_mode<synchronous>, transform_indices = @transform_7, window_bounds = array<i64: 2, 1, 64>}, {pipeline_mode = #tpu.pipeline_mode<synchronous>, transform_indices = @transform_8, window_bounds = array<i64: 2, 64, 32>}, {pipeline_mode = #tpu.pipeline_mode<synchronous>, transform_indices = @transform_9, window_bounds = array<i64: 2, 6, 32>}, {pipeline_mode = #tpu.pipeline_mode<synchronous>, transform_indices = @transform_10, window_bounds = array<i64: 16, 32>}]} {
    %c0 = arith.constant 0 : index
    %c0_0 = arith.constant 0 : index
    %0 = vector.load %arg1[%c0, %c0_0] : memref<16x32xf32, #tpu.memory_space<vmem>>, vector<16x32xf32>
    %c0_1 = arith.constant 0 : index
    %c0_2 = arith.constant 0 : index
    %1 = vector.load %arg3[%c0_1, %c0_2] : memref<2x32xf32, #tpu.memory_space<vmem>>, vector<1x32xf32>
    %c1 = arith.constant 1 : index
    %c0_3 = arith.constant 0 : index
    %2 = vector.load %arg3[%c1, %c0_3] : memref<2x32xf32, #tpu.memory_space<vmem>>, vector<1x32xf32>
    %cst = arith.constant dense<0.000000e+00> : vector<16xf32>
    %3 = vector.multi_reduction <add>, %0, %cst [1] : vector<16x32xf32> to vector<16xf32>
    %4 = vector.shape_cast %3 : vector<16xf32> to vector<16x1xf32>
    %cst_4 = arith.constant 3.200000e+01 : f32
    %5 = vector.broadcast %cst_4 : f32 to vector<16x1xf32>
    %6 = arith.divf %4, %5 : vector<16x1xf32>
    %7 = vector.broadcast %6 : vector<16x1xf32> to vector<16x32xf32>
    %8 = arith.subf %0, %7 : vector<16x32xf32>
    %9 = arith.mulf %8, %8 : vector<16x32xf32>
    %cst_5 = arith.constant dense<0.000000e+00> : vector<16xf32>
    %10 = vector.multi_reduction <add>, %9, %cst_5 [1] : vector<16x32xf32> to vector<16xf32>
    %11 = vector.shape_cast %10 : vector<16xf32> to vector<16x1xf32>
    %cst_6 = arith.constant 3.200000e+01 : f32
    %12 = vector.broadcast %cst_6 : f32 to vector<16x1xf32>
    %13 = arith.divf %11, %12 : vector<16x1xf32>
    %14 = vector.broadcast %6 : vector<16x1xf32> to vector<16x32xf32>
    %15 = arith.subf %0, %14 : vector<16x32xf32>
    %cst_7 = arith.constant 9.99999996E-13 : f32
    %16 = vector.broadcast %cst_7 : f32 to vector<16x1xf32>
    %17 = arith.addf %13, %16 : vector<16x1xf32>
    %18 = math.rsqrt %17 : vector<16x1xf32>
    %19 = vector.broadcast %18 : vector<16x1xf32> to vector<16x32xf32>
    %20 = arith.mulf %15, %19 : vector<16x32xf32>
    %21 = vector.broadcast %1 : vector<1x32xf32> to vector<16x32xf32>
    %22 = arith.mulf %20, %21 : vector<16x32xf32>
    %23 = vector.broadcast %2 : vector<1x32xf32> to vector<16x32xf32>
    %24 = arith.addf %22, %23 : vector<16x32xf32>
    %c0_8 = arith.constant 0 : index
    %c0_9 = arith.constant 0 : index
    %25 = vector.load %arg2[%c0_8, %c0_9] : memref<16x16xf32, #tpu.memory_space<vmem>>, vector<16x16xf32>
    %c0_10 = arith.constant 0 : index
    %c0_11 = arith.constant 0 : index
    %c0_12 = arith.constant 0 : index
    %26 = vector.load %arg4[%c0_10, %c0_11, %c0_12] : memref<2x32x96xf32, #tpu.memory_space<vmem>>, vector<1x32x96xf32>
    %27 = vector.shape_cast %26 : vector<1x32x96xf32> to vector<32x96xf32>
    %cst_13 = arith.constant dense<0.000000e+00> : vector<16x96xf32>
    %28 = tpu.matmul %24, %27, %cst_13 {dimension_numbers = #tpu.dot_dimension_numbers<[1], [0], [0], [1], [0, 0, 1, 1], [], []>} : vector<16x32xf32>, vector<32x96xf32>, vector<16x96xf32> -> vector<16x96xf32>
    %c0_14 = arith.constant 0 : index
    %c0_15 = arith.constant 0 : index
    %c0_16 = arith.constant 0 : index
    %29 = vector.load %arg5[%c0_14, %c0_15, %c0_16] : memref<2x1x96xf32, #tpu.memory_space<vmem>>, vector<1x1x96xf32>
    %30 = vector.shape_cast %29 : vector<1x1x96xf32> to vector<1x96xf32>
    %31 = vector.broadcast %30 : vector<1x96xf32> to vector<16x96xf32>
    %32 = arith.addf %28, %31 : vector<16x96xf32>
    %33 = vector.extract_strided_slice %32 {offsets = [0, 0], sizes = [16, 8], strides = [1, 1]} : vector<16x96xf32> to vector<16x8xf32>
    %34 = vector.extract_strided_slice %32 {offsets = [0, 32], sizes = [16, 8], strides = [1, 1]} : vector<16x96xf32> to vector<16x8xf32>
    %35 = vector.extract_strided_slice %32 {offsets = [0, 64], sizes = [16, 8], strides = [1, 1]} : vector<16x96xf32> to vector<16x8xf32>
    %36 = tpu.transpose %34, [1, 0] : vector<16x8xf32> -> vector<8x16xf32>
    %cst_17 = arith.constant dense<0.000000e+00> : vector<16x16xf32>
    %37 = tpu.matmul %33, %36, %cst_17 {dimension_numbers = #tpu.dot_dimension_numbers<[1], [0], [0], [1], [0, 0, 1, 1], [], []>} : vector<16x8xf32>, vector<8x16xf32>, vector<16x16xf32> -> vector<16x16xf32>
    %38 = arith.addf %37, %25 : vector<16x16xf32>
    %cst_18 = arith.constant dense<0xFF800000> : vector<16xf32>
    %39 = vector.multi_reduction <maximumf>, %38, %cst_18 [1] : vector<16x16xf32> to vector<16xf32>
    %40 = vector.shape_cast %39 : vector<16xf32> to vector<16x1xf32>
    %41 = vector.broadcast %40 : vector<16x1xf32> to vector<16x16xf32>
    %42 = arith.subf %38, %41 : vector<16x16xf32>
    %43 = math.exp %42 : vector<16x16xf32>
    %cst_19 = arith.constant dense<0.000000e+00> : vector<16xf32>
    %44 = vector.multi_reduction <add>, %43, %cst_19 [1] : vector<16x16xf32> to vector<16xf32>
    %45 = vector.shape_cast %44 : vector<16xf32> to vector<16x1xf32>
    %46 = tpu.reciprocal %45 {approx = true} : vector<16x1xf32> -> vector<16x1xf32>
    %47 = vector.broadcast %46 : vector<16x1xf32> to vector<16x16xf32>
    %48 = arith.mulf %43, %47 : vector<16x16xf32>
    %cst_20 = arith.constant dense<0.000000e+00> : vector<16x8xf32>
    %49 = tpu.matmul %48, %35, %cst_20 {dimension_numbers = #tpu.dot_dimension_numbers<[1], [0], [0], [1], [0, 0, 1, 1], [], []>} : vector<16x16xf32>, vector<16x8xf32>, vector<16x8xf32> -> vector<16x8xf32>
    %50 = vector.extract_strided_slice %32 {offsets = [0, 8], sizes = [16, 8], strides = [1, 1]} : vector<16x96xf32> to vector<16x8xf32>
    %51 = vector.extract_strided_slice %32 {offsets = [0, 40], sizes = [16, 8], strides = [1, 1]} : vector<16x96xf32> to vector<16x8xf32>
    %52 = vector.extract_strided_slice %32 {offsets = [0, 72], sizes = [16, 8], strides = [1, 1]} : vector<16x96xf32> to vector<16x8xf32>
    %53 = tpu.transpose %51, [1, 0] : vector<16x8xf32> -> vector<8x16xf32>
    %cst_21 = arith.constant dense<0.000000e+00> : vector<16x16xf32>
    %54 = tpu.matmul %50, %53, %cst_21 {dimension_numbers = #tpu.dot_dimension_numbers<[1], [0], [0], [1], [0, 0, 1, 1], [], []>} : vector<16x8xf32>, vector<8x16xf32>, vector<16x16xf32> -> vector<16x16xf32>
    %55 = arith.addf %54, %25 : vector<16x16xf32>
    %cst_22 = arith.constant dense<0xFF800000> : vector<16xf32>
    %56 = vector.multi_reduction <maximumf>, %55, %cst_22 [1] : vector<16x16xf32> to vector<16xf32>
    %57 = vector.shape_cast %56 : vector<16xf32> to vector<16x1xf32>
    %58 = vector.broadcast %57 : vector<16x1xf32> to vector<16x16xf32>
    %59 = arith.subf %55, %58 : vector<16x16xf32>
    %60 = math.exp %59 : vector<16x16xf32>
    %cst_23 = arith.constant dense<0.000000e+00> : vector<16xf32>
    %61 = vector.multi_reduction <add>, %60, %cst_23 [1] : vector<16x16xf32> to vector<16xf32>
    %62 = vector.shape_cast %61 : vector<16xf32> to vector<16x1xf32>
    %63 = tpu.reciprocal %62 {approx = true} : vector<16x1xf32> -> vector<16x1xf32>
    %64 = vector.broadcast %63 : vector<16x1xf32> to vector<16x16xf32>
    %65 = arith.mulf %60, %64 : vector<16x16xf32>
    %cst_24 = arith.constant dense<0.000000e+00> : vector<16x8xf32>
    %66 = tpu.matmul %65, %52, %cst_24 {dimension_numbers = #tpu.dot_dimension_numbers<[1], [0], [0], [1], [0, 0, 1, 1], [], []>} : vector<16x16xf32>, vector<16x8xf32>, vector<16x8xf32> -> vector<16x8xf32>
    %67 = vector.extract_strided_slice %32 {offsets = [0, 16], sizes = [16, 8], strides = [1, 1]} : vector<16x96xf32> to vector<16x8xf32>
    %68 = vector.extract_strided_slice %32 {offsets = [0, 48], sizes = [16, 8], strides = [1, 1]} : vector<16x96xf32> to vector<16x8xf32>
    %69 = vector.extract_strided_slice %32 {offsets = [0, 80], sizes = [16, 8], strides = [1, 1]} : vector<16x96xf32> to vector<16x8xf32>
    %70 = tpu.transpose %68, [1, 0] : vector<16x8xf32> -> vector<8x16xf32>
    %cst_25 = arith.constant dense<0.000000e+00> : vector<16x16xf32>
    %71 = tpu.matmul %67, %70, %cst_25 {dimension_numbers = #tpu.dot_dimension_numbers<[1], [0], [0], [1], [0, 0, 1, 1], [], []>} : vector<16x8xf32>, vector<8x16xf32>, vector<16x16xf32> -> vector<16x16xf32>
    %72 = arith.addf %71, %25 : vector<16x16xf32>
    %cst_26 = arith.constant dense<0xFF800000> : vector<16xf32>
    %73 = vector.multi_reduction <maximumf>, %72, %cst_26 [1] : vector<16x16xf32> to vector<16xf32>
    %74 = vector.shape_cast %73 : vector<16xf32> to vector<16x1xf32>
    %75 = vector.broadcast %74 : vector<16x1xf32> to vector<16x16xf32>
    %76 = arith.subf %72, %75 : vector<16x16xf32>
    %77 = math.exp %76 : vector<16x16xf32>
    %cst_27 = arith.constant dense<0.000000e+00> : vector<16xf32>
    %78 = vector.multi_reduction <add>, %77, %cst_27 [1] : vector<16x16xf32> to vector<16xf32>
    %79 = vector.shape_cast %78 : vector<16xf32> to vector<16x1xf32>
    %80 = tpu.reciprocal %79 {approx = true} : vector<16x1xf32> -> vector<16x1xf32>
    %81 = vector.broadcast %80 : vector<16x1xf32> to vector<16x16xf32>
    %82 = arith.mulf %77, %81 : vector<16x16xf32>
    %cst_28 = arith.constant dense<0.000000e+00> : vector<16x8xf32>
    %83 = tpu.matmul %82, %69, %cst_28 {dimension_numbers = #tpu.dot_dimension_numbers<[1], [0], [0], [1], [0, 0, 1, 1], [], []>} : vector<16x16xf32>, vector<16x8xf32>, vector<16x8xf32> -> vector<16x8xf32>
    %84 = vector.extract_strided_slice %32 {offsets = [0, 24], sizes = [16, 8], strides = [1, 1]} : vector<16x96xf32> to vector<16x8xf32>
    %85 = vector.extract_strided_slice %32 {offsets = [0, 56], sizes = [16, 8], strides = [1, 1]} : vector<16x96xf32> to vector<16x8xf32>
    %86 = vector.extract_strided_slice %32 {offsets = [0, 88], sizes = [16, 8], strides = [1, 1]} : vector<16x96xf32> to vector<16x8xf32>
    %87 = tpu.transpose %85, [1, 0] : vector<16x8xf32> -> vector<8x16xf32>
    %cst_29 = arith.constant dense<0.000000e+00> : vector<16x16xf32>
    %88 = tpu.matmul %84, %87, %cst_29 {dimension_numbers = #tpu.dot_dimension_numbers<[1], [0], [0], [1], [0, 0, 1, 1], [], []>} : vector<16x8xf32>, vector<8x16xf32>, vector<16x16xf32> -> vector<16x16xf32>
    %89 = arith.addf %88, %25 : vector<16x16xf32>
    %cst_30 = arith.constant dense<0xFF800000> : vector<16xf32>
    %90 = vector.multi_reduction <maximumf>, %89, %cst_30 [1] : vector<16x16xf32> to vector<16xf32>
    %91 = vector.shape_cast %90 : vector<16xf32> to vector<16x1xf32>
    %92 = vector.broadcast %91 : vector<16x1xf32> to vector<16x16xf32>
    %93 = arith.subf %89, %92 : vector<16x16xf32>
    %94 = math.exp %93 : vector<16x16xf32>
    %cst_31 = arith.constant dense<0.000000e+00> : vector<16xf32>
    %95 = vector.multi_reduction <add>, %94, %cst_31 [1] : vector<16x16xf32> to vector<16xf32>
    %96 = vector.shape_cast %95 : vector<16xf32> to vector<16x1xf32>
    %97 = tpu.reciprocal %96 {approx = true} : vector<16x1xf32> -> vector<16x1xf32>
    %98 = vector.broadcast %97 : vector<16x1xf32> to vector<16x16xf32>
    %99 = arith.mulf %94, %98 : vector<16x16xf32>
    %cst_32 = arith.constant dense<0.000000e+00> : vector<16x8xf32>
    %100 = tpu.matmul %99, %86, %cst_32 {dimension_numbers = #tpu.dot_dimension_numbers<[1], [0], [0], [1], [0, 0, 1, 1], [], []>} : vector<16x16xf32>, vector<16x8xf32>, vector<16x8xf32> -> vector<16x8xf32>
    %101 = tpu.concatenate %49, %66, %83, %100 in 1 : vector<16x8xf32>, vector<16x8xf32>, vector<16x8xf32>, vector<16x8xf32> -> vector<16x32xf32>
    %c0_33 = arith.constant 0 : index
    %c0_34 = arith.constant 0 : index
    %c0_35 = arith.constant 0 : index
    %102 = vector.load %arg10[%c0_33, %c0_34, %c0_35] : memref<2x6x32xf32, #tpu.memory_space<vmem>>, vector<1x6x32xf32>
    %103 = vector.shape_cast %102 : vector<1x6x32xf32> to vector<6x32xf32>
    %c0_36 = arith.constant 0 : index
    %c0_37 = arith.constant 0 : index
    %c0_38 = arith.constant 0 : index
    %104 = vector.load %arg6[%c0_36, %c0_37, %c0_38] : memref<2x32x32xf32, #tpu.memory_space<vmem>>, vector<1x32x32xf32>
    %105 = vector.shape_cast %104 : vector<1x32x32xf32> to vector<32x32xf32>
    %cst_39 = arith.constant dense<0.000000e+00> : vector<16x32xf32>
    %106 = tpu.matmul %101, %105, %cst_39 {dimension_numbers = #tpu.dot_dimension_numbers<[1], [0], [0], [1], [0, 0, 1, 1], [], []>} : vector<16x32xf32>, vector<32x32xf32>, vector<16x32xf32> -> vector<16x32xf32>
    %107 = vector.extract_strided_slice %103 {offsets = [0, 0], sizes = [1, 32], strides = [1, 1]} : vector<6x32xf32> to vector<1x32xf32>
    %108 = vector.broadcast %107 : vector<1x32xf32> to vector<16x32xf32>
    %109 = arith.addf %106, %108 : vector<16x32xf32>
    %110 = arith.addf %24, %109 : vector<16x32xf32>
    %111 = vector.extract_strided_slice %103 {offsets = [1, 0], sizes = [1, 32], strides = [1, 1]} : vector<6x32xf32> to vector<1x32xf32>
    %112 = vector.extract_strided_slice %103 {offsets = [2, 0], sizes = [1, 32], strides = [1, 1]} : vector<6x32xf32> to vector<1x32xf32>
    %cst_40 = arith.constant dense<0.000000e+00> : vector<16xf32>
    %113 = vector.multi_reduction <add>, %110, %cst_40 [1] : vector<16x32xf32> to vector<16xf32>
    %114 = vector.shape_cast %113 : vector<16xf32> to vector<16x1xf32>
    %cst_41 = arith.constant 3.200000e+01 : f32
    %115 = vector.broadcast %cst_41 : f32 to vector<16x1xf32>
    %116 = arith.divf %114, %115 : vector<16x1xf32>
    %117 = vector.broadcast %116 : vector<16x1xf32> to vector<16x32xf32>
    %118 = arith.subf %110, %117 : vector<16x32xf32>
    %119 = arith.mulf %118, %118 : vector<16x32xf32>
    %cst_42 = arith.constant dense<0.000000e+00> : vector<16xf32>
    %120 = vector.multi_reduction <add>, %119, %cst_42 [1] : vector<16x32xf32> to vector<16xf32>
    %121 = vector.shape_cast %120 : vector<16xf32> to vector<16x1xf32>
    %cst_43 = arith.constant 3.200000e+01 : f32
    %122 = vector.broadcast %cst_43 : f32 to vector<16x1xf32>
    %123 = arith.divf %121, %122 : vector<16x1xf32>
    %124 = vector.broadcast %116 : vector<16x1xf32> to vector<16x32xf32>
    %125 = arith.subf %110, %124 : vector<16x32xf32>
    %cst_44 = arith.constant 9.99999996E-13 : f32
    %126 = vector.broadcast %cst_44 : f32 to vector<16x1xf32>
    %127 = arith.addf %123, %126 : vector<16x1xf32>
    %128 = math.rsqrt %127 : vector<16x1xf32>
    %129 = vector.broadcast %128 : vector<16x1xf32> to vector<16x32xf32>
    %130 = arith.mulf %125, %129 : vector<16x32xf32>
    %131 = vector.broadcast %111 : vector<1x32xf32> to vector<16x32xf32>
    %132 = arith.mulf %130, %131 : vector<16x32xf32>
    %133 = vector.broadcast %112 : vector<1x32xf32> to vector<16x32xf32>
    %134 = arith.addf %132, %133 : vector<16x32xf32>
    %c0_45 = arith.constant 0 : index
    %c0_46 = arith.constant 0 : index
    %c0_47 = arith.constant 0 : index
    %135 = vector.load %arg7[%c0_45, %c0_46, %c0_47] : memref<2x32x64xf32, #tpu.memory_space<vmem>>, vector<1x32x64xf32>
    %136 = vector.shape_cast %135 : vector<1x32x64xf32> to vector<32x64xf32>
    %cst_48 = arith.constant dense<0.000000e+00> : vector<16x64xf32>
    %137 = tpu.matmul %134, %136, %cst_48 {dimension_numbers = #tpu.dot_dimension_numbers<[1], [0], [0], [1], [0, 0, 1, 1], [], []>} : vector<16x32xf32>, vector<32x64xf32>, vector<16x64xf32> -> vector<16x64xf32>
    %c0_49 = arith.constant 0 : index
    %c0_50 = arith.constant 0 : index
    %c0_51 = arith.constant 0 : index
    %138 = vector.load %arg8[%c0_49, %c0_50, %c0_51] : memref<2x1x64xf32, #tpu.memory_space<vmem>>, vector<1x1x64xf32>
    %139 = vector.shape_cast %138 : vector<1x1x64xf32> to vector<1x64xf32>
    %140 = vector.broadcast %139 : vector<1x64xf32> to vector<16x64xf32>
    %141 = arith.addf %137, %140 : vector<16x64xf32>
    %cst_52 = arith.constant 5.000000e-01 : f32
    %142 = vector.broadcast %cst_52 : f32 to vector<16x64xf32>
    %143 = arith.mulf %142, %141 : vector<16x64xf32>
    %cst_53 = arith.constant 4.471500e-02 : f32
    %144 = vector.broadcast %cst_53 : f32 to vector<16x64xf32>
    %145 = arith.mulf %144, %141 : vector<16x64xf32>
    %146 = arith.mulf %145, %141 : vector<16x64xf32>
    %147 = arith.mulf %146, %141 : vector<16x64xf32>
    %148 = arith.addf %141, %147 : vector<16x64xf32>
    %cst_54 = arith.constant 0.797884583 : f32
    %149 = vector.broadcast %cst_54 : f32 to vector<16x64xf32>
    %150 = arith.mulf %149, %148 : vector<16x64xf32>
    %151 = math.tanh %150 : vector<16x64xf32>
    %cst_55 = arith.constant 1.000000e+00 : f32
    %152 = vector.broadcast %cst_55 : f32 to vector<16x64xf32>
    %153 = arith.addf %152, %151 : vector<16x64xf32>
    %154 = arith.mulf %143, %153 : vector<16x64xf32>
    %c0_56 = arith.constant 0 : index
    %c0_57 = arith.constant 0 : index
    %c0_58 = arith.constant 0 : index
    %155 = vector.load %arg9[%c0_56, %c0_57, %c0_58] : memref<2x64x32xf32, #tpu.memory_space<vmem>>, vector<1x64x32xf32>
    %156 = vector.shape_cast %155 : vector<1x64x32xf32> to vector<64x32xf32>
    %cst_59 = arith.constant dense<0.000000e+00> : vector<16x32xf32>
    %157 = tpu.matmul %154, %156, %cst_59 {dimension_numbers = #tpu.dot_dimension_numbers<[1], [0], [0], [1], [0, 0, 1, 1], [], []>} : vector<16x64xf32>, vector<64x32xf32>, vector<16x32xf32> -> vector<16x32xf32>
    %158 = vector.extract_strided_slice %103 {offsets = [3, 0], sizes = [1, 32], strides = [1, 1]} : vector<6x32xf32> to vector<1x32xf32>
    %159 = vector.broadcast %158 : vector<1x32xf32> to vector<16x32xf32>
    %160 = arith.addf %157, %159 : vector<16x32xf32>
    %161 = arith.addf %134, %160 : vector<16x32xf32>
    %162 = vector.extract_strided_slice %103 {offsets = [4, 0], sizes = [1, 32], strides = [1, 1]} : vector<6x32xf32> to vector<1x32xf32>
    %163 = vector.extract_strided_slice %103 {offsets = [5, 0], sizes = [1, 32], strides = [1, 1]} : vector<6x32xf32> to vector<1x32xf32>
    %cst_60 = arith.constant dense<0.000000e+00> : vector<16xf32>
    %164 = vector.multi_reduction <add>, %161, %cst_60 [1] : vector<16x32xf32> to vector<16xf32>
    %165 = vector.shape_cast %164 : vector<16xf32> to vector<16x1xf32>
    %cst_61 = arith.constant 3.200000e+01 : f32
    %166 = vector.broadcast %cst_61 : f32 to vector<16x1xf32>
    %167 = arith.divf %165, %166 : vector<16x1xf32>
    %168 = vector.broadcast %167 : vector<16x1xf32> to vector<16x32xf32>
    %169 = arith.subf %161, %168 : vector<16x32xf32>
    %170 = arith.mulf %169, %169 : vector<16x32xf32>
    %cst_62 = arith.constant dense<0.000000e+00> : vector<16xf32>
    %171 = vector.multi_reduction <add>, %170, %cst_62 [1] : vector<16x32xf32> to vector<16xf32>
    %172 = vector.shape_cast %171 : vector<16xf32> to vector<16x1xf32>
    %cst_63 = arith.constant 3.200000e+01 : f32
    %173 = vector.broadcast %cst_63 : f32 to vector<16x1xf32>
    %174 = arith.divf %172, %173 : vector<16x1xf32>
    %175 = vector.broadcast %167 : vector<16x1xf32> to vector<16x32xf32>
    %176 = arith.subf %161, %175 : vector<16x32xf32>
    %cst_64 = arith.constant 9.99999996E-13 : f32
    %177 = vector.broadcast %cst_64 : f32 to vector<16x1xf32>
    %178 = arith.addf %174, %177 : vector<16x1xf32>
    %179 = math.rsqrt %178 : vector<16x1xf32>
    %180 = vector.broadcast %179 : vector<16x1xf32> to vector<16x32xf32>
    %181 = arith.mulf %176, %180 : vector<16x32xf32>
    %182 = vector.broadcast %162 : vector<1x32xf32> to vector<16x32xf32>
    %183 = arith.mulf %181, %182 : vector<16x32xf32>
    %184 = vector.broadcast %163 : vector<1x32xf32> to vector<16x32xf32>
    %185 = arith.addf %183, %184 : vector<16x32xf32>
    %c1_65 = arith.constant 1 : index
    %c0_66 = arith.constant 0 : index
    %c0_67 = arith.constant 0 : index
    %186 = vector.load %arg4[%c1_65, %c0_66, %c0_67] : memref<2x32x96xf32, #tpu.memory_space<vmem>>, vector<1x32x96xf32>
    %187 = vector.shape_cast %186 : vector<1x32x96xf32> to vector<32x96xf32>
    %cst_68 = arith.constant dense<0.000000e+00> : vector<16x96xf32>
    %188 = tpu.matmul %185, %187, %cst_68 {dimension_numbers = #tpu.dot_dimension_numbers<[1], [0], [0], [1], [0, 0, 1, 1], [], []>} : vector<16x32xf32>, vector<32x96xf32>, vector<16x96xf32> -> vector<16x96xf32>
    %c1_69 = arith.constant 1 : index
    %c0_70 = arith.constant 0 : index
    %c0_71 = arith.constant 0 : index
    %189 = vector.load %arg5[%c1_69, %c0_70, %c0_71] : memref<2x1x96xf32, #tpu.memory_space<vmem>>, vector<1x1x96xf32>
    %190 = vector.shape_cast %189 : vector<1x1x96xf32> to vector<1x96xf32>
    %191 = vector.broadcast %190 : vector<1x96xf32> to vector<16x96xf32>
    %192 = arith.addf %188, %191 : vector<16x96xf32>
    %193 = vector.extract_strided_slice %192 {offsets = [0, 0], sizes = [16, 8], strides = [1, 1]} : vector<16x96xf32> to vector<16x8xf32>
    %194 = vector.extract_strided_slice %192 {offsets = [0, 32], sizes = [16, 8], strides = [1, 1]} : vector<16x96xf32> to vector<16x8xf32>
    %195 = vector.extract_strided_slice %192 {offsets = [0, 64], sizes = [16, 8], strides = [1, 1]} : vector<16x96xf32> to vector<16x8xf32>
    %196 = tpu.transpose %194, [1, 0] : vector<16x8xf32> -> vector<8x16xf32>
    %cst_72 = arith.constant dense<0.000000e+00> : vector<16x16xf32>
    %197 = tpu.matmul %193, %196, %cst_72 {dimension_numbers = #tpu.dot_dimension_numbers<[1], [0], [0], [1], [0, 0, 1, 1], [], []>} : vector<16x8xf32>, vector<8x16xf32>, vector<16x16xf32> -> vector<16x16xf32>
    %198 = arith.addf %197, %25 : vector<16x16xf32>
    %cst_73 = arith.constant dense<0xFF800000> : vector<16xf32>
    %199 = vector.multi_reduction <maximumf>, %198, %cst_73 [1] : vector<16x16xf32> to vector<16xf32>
    %200 = vector.shape_cast %199 : vector<16xf32> to vector<16x1xf32>
    %201 = vector.broadcast %200 : vector<16x1xf32> to vector<16x16xf32>
    %202 = arith.subf %198, %201 : vector<16x16xf32>
    %203 = math.exp %202 : vector<16x16xf32>
    %cst_74 = arith.constant dense<0.000000e+00> : vector<16xf32>
    %204 = vector.multi_reduction <add>, %203, %cst_74 [1] : vector<16x16xf32> to vector<16xf32>
    %205 = vector.shape_cast %204 : vector<16xf32> to vector<16x1xf32>
    %206 = tpu.reciprocal %205 {approx = true} : vector<16x1xf32> -> vector<16x1xf32>
    %207 = vector.broadcast %206 : vector<16x1xf32> to vector<16x16xf32>
    %208 = arith.mulf %203, %207 : vector<16x16xf32>
    %cst_75 = arith.constant dense<0.000000e+00> : vector<16x8xf32>
    %209 = tpu.matmul %208, %195, %cst_75 {dimension_numbers = #tpu.dot_dimension_numbers<[1], [0], [0], [1], [0, 0, 1, 1], [], []>} : vector<16x16xf32>, vector<16x8xf32>, vector<16x8xf32> -> vector<16x8xf32>
    %210 = vector.extract_strided_slice %192 {offsets = [0, 8], sizes = [16, 8], strides = [1, 1]} : vector<16x96xf32> to vector<16x8xf32>
    %211 = vector.extract_strided_slice %192 {offsets = [0, 40], sizes = [16, 8], strides = [1, 1]} : vector<16x96xf32> to vector<16x8xf32>
    %212 = vector.extract_strided_slice %192 {offsets = [0, 72], sizes = [16, 8], strides = [1, 1]} : vector<16x96xf32> to vector<16x8xf32>
    %213 = tpu.transpose %211, [1, 0] : vector<16x8xf32> -> vector<8x16xf32>
    %cst_76 = arith.constant dense<0.000000e+00> : vector<16x16xf32>
    %214 = tpu.matmul %210, %213, %cst_76 {dimension_numbers = #tpu.dot_dimension_numbers<[1], [0], [0], [1], [0, 0, 1, 1], [], []>} : vector<16x8xf32>, vector<8x16xf32>, vector<16x16xf32> -> vector<16x16xf32>
    %215 = arith.addf %214, %25 : vector<16x16xf32>
    %cst_77 = arith.constant dense<0xFF800000> : vector<16xf32>
    %216 = vector.multi_reduction <maximumf>, %215, %cst_77 [1] : vector<16x16xf32> to vector<16xf32>
    %217 = vector.shape_cast %216 : vector<16xf32> to vector<16x1xf32>
    %218 = vector.broadcast %217 : vector<16x1xf32> to vector<16x16xf32>
    %219 = arith.subf %215, %218 : vector<16x16xf32>
    %220 = math.exp %219 : vector<16x16xf32>
    %cst_78 = arith.constant dense<0.000000e+00> : vector<16xf32>
    %221 = vector.multi_reduction <add>, %220, %cst_78 [1] : vector<16x16xf32> to vector<16xf32>
    %222 = vector.shape_cast %221 : vector<16xf32> to vector<16x1xf32>
    %223 = tpu.reciprocal %222 {approx = true} : vector<16x1xf32> -> vector<16x1xf32>
    %224 = vector.broadcast %223 : vector<16x1xf32> to vector<16x16xf32>
    %225 = arith.mulf %220, %224 : vector<16x16xf32>
    %cst_79 = arith.constant dense<0.000000e+00> : vector<16x8xf32>
    %226 = tpu.matmul %225, %212, %cst_79 {dimension_numbers = #tpu.dot_dimension_numbers<[1], [0], [0], [1], [0, 0, 1, 1], [], []>} : vector<16x16xf32>, vector<16x8xf32>, vector<16x8xf32> -> vector<16x8xf32>
    %227 = vector.extract_strided_slice %192 {offsets = [0, 16], sizes = [16, 8], strides = [1, 1]} : vector<16x96xf32> to vector<16x8xf32>
    %228 = vector.extract_strided_slice %192 {offsets = [0, 48], sizes = [16, 8], strides = [1, 1]} : vector<16x96xf32> to vector<16x8xf32>
    %229 = vector.extract_strided_slice %192 {offsets = [0, 80], sizes = [16, 8], strides = [1, 1]} : vector<16x96xf32> to vector<16x8xf32>
    %230 = tpu.transpose %228, [1, 0] : vector<16x8xf32> -> vector<8x16xf32>
    %cst_80 = arith.constant dense<0.000000e+00> : vector<16x16xf32>
    %231 = tpu.matmul %227, %230, %cst_80 {dimension_numbers = #tpu.dot_dimension_numbers<[1], [0], [0], [1], [0, 0, 1, 1], [], []>} : vector<16x8xf32>, vector<8x16xf32>, vector<16x16xf32> -> vector<16x16xf32>
    %232 = arith.addf %231, %25 : vector<16x16xf32>
    %cst_81 = arith.constant dense<0xFF800000> : vector<16xf32>
    %233 = vector.multi_reduction <maximumf>, %232, %cst_81 [1] : vector<16x16xf32> to vector<16xf32>
    %234 = vector.shape_cast %233 : vector<16xf32> to vector<16x1xf32>
    %235 = vector.broadcast %234 : vector<16x1xf32> to vector<16x16xf32>
    %236 = arith.subf %232, %235 : vector<16x16xf32>
    %237 = math.exp %236 : vector<16x16xf32>
    %cst_82 = arith.constant dense<0.000000e+00> : vector<16xf32>
    %238 = vector.multi_reduction <add>, %237, %cst_82 [1] : vector<16x16xf32> to vector<16xf32>
    %239 = vector.shape_cast %238 : vector<16xf32> to vector<16x1xf32>
    %240 = tpu.reciprocal %239 {approx = true} : vector<16x1xf32> -> vector<16x1xf32>
    %241 = vector.broadcast %240 : vector<16x1xf32> to vector<16x16xf32>
    %242 = arith.mulf %237, %241 : vector<16x16xf32>
    %cst_83 = arith.constant dense<0.000000e+00> : vector<16x8xf32>
    %243 = tpu.matmul %242, %229, %cst_83 {dimension_numbers = #tpu.dot_dimension_numbers<[1], [0], [0], [1], [0, 0, 1, 1], [], []>} : vector<16x16xf32>, vector<16x8xf32>, vector<16x8xf32> -> vector<16x8xf32>
    %244 = vector.extract_strided_slice %192 {offsets = [0, 24], sizes = [16, 8], strides = [1, 1]} : vector<16x96xf32> to vector<16x8xf32>
    %245 = vector.extract_strided_slice %192 {offsets = [0, 56], sizes = [16, 8], strides = [1, 1]} : vector<16x96xf32> to vector<16x8xf32>
    %246 = vector.extract_strided_slice %192 {offsets = [0, 88], sizes = [16, 8], strides = [1, 1]} : vector<16x96xf32> to vector<16x8xf32>
    %247 = tpu.transpose %245, [1, 0] : vector<16x8xf32> -> vector<8x16xf32>
    %cst_84 = arith.constant dense<0.000000e+00> : vector<16x16xf32>
    %248 = tpu.matmul %244, %247, %cst_84 {dimension_numbers = #tpu.dot_dimension_numbers<[1], [0], [0], [1], [0, 0, 1, 1], [], []>} : vector<16x8xf32>, vector<8x16xf32>, vector<16x16xf32> -> vector<16x16xf32>
    %249 = arith.addf %248, %25 : vector<16x16xf32>
    %cst_85 = arith.constant dense<0xFF800000> : vector<16xf32>
    %250 = vector.multi_reduction <maximumf>, %249, %cst_85 [1] : vector<16x16xf32> to vector<16xf32>
    %251 = vector.shape_cast %250 : vector<16xf32> to vector<16x1xf32>
    %252 = vector.broadcast %251 : vector<16x1xf32> to vector<16x16xf32>
    %253 = arith.subf %249, %252 : vector<16x16xf32>
    %254 = math.exp %253 : vector<16x16xf32>
    %cst_86 = arith.constant dense<0.000000e+00> : vector<16xf32>
    %255 = vector.multi_reduction <add>, %254, %cst_86 [1] : vector<16x16xf32> to vector<16xf32>
    %256 = vector.shape_cast %255 : vector<16xf32> to vector<16x1xf32>
    %257 = tpu.reciprocal %256 {approx = true} : vector<16x1xf32> -> vector<16x1xf32>
    %258 = vector.broadcast %257 : vector<16x1xf32> to vector<16x16xf32>
    %259 = arith.mulf %254, %258 : vector<16x16xf32>
    %cst_87 = arith.constant dense<0.000000e+00> : vector<16x8xf32>
    %260 = tpu.matmul %259, %246, %cst_87 {dimension_numbers = #tpu.dot_dimension_numbers<[1], [0], [0], [1], [0, 0, 1, 1], [], []>} : vector<16x16xf32>, vector<16x8xf32>, vector<16x8xf32> -> vector<16x8xf32>
    %261 = tpu.concatenate %209, %226, %243, %260 in 1 : vector<16x8xf32>, vector<16x8xf32>, vector<16x8xf32>, vector<16x8xf32> -> vector<16x32xf32>
    %c1_88 = arith.constant 1 : index
    %c0_89 = arith.constant 0 : index
    %c0_90 = arith.constant 0 : index
    %262 = vector.load %arg10[%c1_88, %c0_89, %c0_90] : memref<2x6x32xf32, #tpu.memory_space<vmem>>, vector<1x6x32xf32>
    %263 = vector.shape_cast %262 : vector<1x6x32xf32> to vector<6x32xf32>
    %c1_91 = arith.constant 1 : index
    %c0_92 = arith.constant 0 : index
    %c0_93 = arith.constant 0 : index
    %264 = vector.load %arg6[%c1_91, %c0_92, %c0_93] : memref<2x32x32xf32, #tpu.memory_space<vmem>>, vector<1x32x32xf32>
    %265 = vector.shape_cast %264 : vector<1x32x32xf32> to vector<32x32xf32>
    %cst_94 = arith.constant dense<0.000000e+00> : vector<16x32xf32>
    %266 = tpu.matmul %261, %265, %cst_94 {dimension_numbers = #tpu.dot_dimension_numbers<[1], [0], [0], [1], [0, 0, 1, 1], [], []>} : vector<16x32xf32>, vector<32x32xf32>, vector<16x32xf32> -> vector<16x32xf32>
    %267 = vector.extract_strided_slice %263 {offsets = [0, 0], sizes = [1, 32], strides = [1, 1]} : vector<6x32xf32> to vector<1x32xf32>
    %268 = vector.broadcast %267 : vector<1x32xf32> to vector<16x32xf32>
    %269 = arith.addf %266, %268 : vector<16x32xf32>
    %270 = arith.addf %185, %269 : vector<16x32xf32>
    %271 = vector.extract_strided_slice %263 {offsets = [1, 0], sizes = [1, 32], strides = [1, 1]} : vector<6x32xf32> to vector<1x32xf32>
    %272 = vector.extract_strided_slice %263 {offsets = [2, 0], sizes = [1, 32], strides = [1, 1]} : vector<6x32xf32> to vector<1x32xf32>
    %cst_95 = arith.constant dense<0.000000e+00> : vector<16xf32>
    %273 = vector.multi_reduction <add>, %270, %cst_95 [1] : vector<16x32xf32> to vector<16xf32>
    %274 = vector.shape_cast %273 : vector<16xf32> to vector<16x1xf32>
    %cst_96 = arith.constant 3.200000e+01 : f32
    %275 = vector.broadcast %cst_96 : f32 to vector<16x1xf32>
    %276 = arith.divf %274, %275 : vector<16x1xf32>
    %277 = vector.broadcast %276 : vector<16x1xf32> to vector<16x32xf32>
    %278 = arith.subf %270, %277 : vector<16x32xf32>
    %279 = arith.mulf %278, %278 : vector<16x32xf32>
    %cst_97 = arith.constant dense<0.000000e+00> : vector<16xf32>
    %280 = vector.multi_reduction <add>, %279, %cst_97 [1] : vector<16x32xf32> to vector<16xf32>
    %281 = vector.shape_cast %280 : vector<16xf32> to vector<16x1xf32>
    %cst_98 = arith.constant 3.200000e+01 : f32
    %282 = vector.broadcast %cst_98 : f32 to vector<16x1xf32>
    %283 = arith.divf %281, %282 : vector<16x1xf32>
    %284 = vector.broadcast %276 : vector<16x1xf32> to vector<16x32xf32>
    %285 = arith.subf %270, %284 : vector<16x32xf32>
    %cst_99 = arith.constant 9.99999996E-13 : f32
    %286 = vector.broadcast %cst_99 : f32 to vector<16x1xf32>
    %287 = arith.addf %283, %286 : vector<16x1xf32>
    %288 = math.rsqrt %287 : vector<16x1xf32>
    %289 = vector.broadcast %288 : vector<16x1xf32> to vector<16x32xf32>
    %290 = arith.mulf %285, %289 : vector<16x32xf32>
    %291 = vector.broadcast %271 : vector<1x32xf32> to vector<16x32xf32>
    %292 = arith.mulf %290, %291 : vector<16x32xf32>
    %293 = vector.broadcast %272 : vector<1x32xf32> to vector<16x32xf32>
    %294 = arith.addf %292, %293 : vector<16x32xf32>
    %c1_100 = arith.constant 1 : index
    %c0_101 = arith.constant 0 : index
    %c0_102 = arith.constant 0 : index
    %295 = vector.load %arg7[%c1_100, %c0_101, %c0_102] : memref<2x32x64xf32, #tpu.memory_space<vmem>>, vector<1x32x64xf32>
    %296 = vector.shape_cast %295 : vector<1x32x64xf32> to vector<32x64xf32>
    %cst_103 = arith.constant dense<0.000000e+00> : vector<16x64xf32>
    %297 = tpu.matmul %294, %296, %cst_103 {dimension_numbers = #tpu.dot_dimension_numbers<[1], [0], [0], [1], [0, 0, 1, 1], [], []>} : vector<16x32xf32>, vector<32x64xf32>, vector<16x64xf32> -> vector<16x64xf32>
    %c1_104 = arith.constant 1 : index
    %c0_105 = arith.constant 0 : index
    %c0_106 = arith.constant 0 : index
    %298 = vector.load %arg8[%c1_104, %c0_105, %c0_106] : memref<2x1x64xf32, #tpu.memory_space<vmem>>, vector<1x1x64xf32>
    %299 = vector.shape_cast %298 : vector<1x1x64xf32> to vector<1x64xf32>
    %300 = vector.broadcast %299 : vector<1x64xf32> to vector<16x64xf32>
    %301 = arith.addf %297, %300 : vector<16x64xf32>
    %cst_107 = arith.constant 5.000000e-01 : f32
    %302 = vector.broadcast %cst_107 : f32 to vector<16x64xf32>
    %303 = arith.mulf %302, %301 : vector<16x64xf32>
    %cst_108 = arith.constant 4.471500e-02 : f32
    %304 = vector.broadcast %cst_108 : f32 to vector<16x64xf32>
    %305 = arith.mulf %304, %301 : vector<16x64xf32>
    %306 = arith.mulf %305, %301 : vector<16x64xf32>
    %307 = arith.mulf %306, %301 : vector<16x64xf32>
    %308 = arith.addf %301, %307 : vector<16x64xf32>
    %cst_109 = arith.constant 0.797884583 : f32
    %309 = vector.broadcast %cst_109 : f32 to vector<16x64xf32>
    %310 = arith.mulf %309, %308 : vector<16x64xf32>
    %311 = math.tanh %310 : vector<16x64xf32>
    %cst_110 = arith.constant 1.000000e+00 : f32
    %312 = vector.broadcast %cst_110 : f32 to vector<16x64xf32>
    %313 = arith.addf %312, %311 : vector<16x64xf32>
    %314 = arith.mulf %303, %313 : vector<16x64xf32>
    %c1_111 = arith.constant 1 : index
    %c0_112 = arith.constant 0 : index
    %c0_113 = arith.constant 0 : index
    %315 = vector.load %arg9[%c1_111, %c0_112, %c0_113] : memref<2x64x32xf32, #tpu.memory_space<vmem>>, vector<1x64x32xf32>
    %316 = vector.shape_cast %315 : vector<1x64x32xf32> to vector<64x32xf32>
    %cst_114 = arith.constant dense<0.000000e+00> : vector<16x32xf32>
    %317 = tpu.matmul %314, %316, %cst_114 {dimension_numbers = #tpu.dot_dimension_numbers<[1], [0], [0], [1], [0, 0, 1, 1], [], []>} : vector<16x64xf32>, vector<64x32xf32>, vector<16x32xf32> -> vector<16x32xf32>
    %318 = vector.extract_strided_slice %263 {offsets = [3, 0], sizes = [1, 32], strides = [1, 1]} : vector<6x32xf32> to vector<1x32xf32>
    %319 = vector.broadcast %318 : vector<1x32xf32> to vector<16x32xf32>
    %320 = arith.addf %317, %319 : vector<16x32xf32>
    %321 = arith.addf %294, %320 : vector<16x32xf32>
    %322 = vector.extract_strided_slice %263 {offsets = [4, 0], sizes = [1, 32], strides = [1, 1]} : vector<6x32xf32> to vector<1x32xf32>
    %323 = vector.extract_strided_slice %263 {offsets = [5, 0], sizes = [1, 32], strides = [1, 1]} : vector<6x32xf32> to vector<1x32xf32>
    %cst_115 = arith.constant dense<0.000000e+00> : vector<16xf32>
    %324 = vector.multi_reduction <add>, %321, %cst_115 [1] : vector<16x32xf32> to vector<16xf32>
    %325 = vector.shape_cast %324 : vector<16xf32> to vector<16x1xf32>
    %cst_116 = arith.constant 3.200000e+01 : f32
    %326 = vector.broadcast %cst_116 : f32 to vector<16x1xf32>
    %327 = arith.divf %325, %326 : vector<16x1xf32>
    %328 = vector.broadcast %327 : vector<16x1xf32> to vector<16x32xf32>
    %329 = arith.subf %321, %328 : vector<16x32xf32>
    %330 = arith.mulf %329, %329 : vector<16x32xf32>
    %cst_117 = arith.constant dense<0.000000e+00> : vector<16xf32>
    %331 = vector.multi_reduction <add>, %330, %cst_117 [1] : vector<16x32xf32> to vector<16xf32>
    %332 = vector.shape_cast %331 : vector<16xf32> to vector<16x1xf32>
    %cst_118 = arith.constant 3.200000e+01 : f32
    %333 = vector.broadcast %cst_118 : f32 to vector<16x1xf32>
    %334 = arith.divf %332, %333 : vector<16x1xf32>
    %335 = vector.broadcast %327 : vector<16x1xf32> to vector<16x32xf32>
    %336 = arith.subf %321, %335 : vector<16x32xf32>
    %cst_119 = arith.constant 9.99999996E-13 : f32
    %337 = vector.broadcast %cst_119 : f32 to vector<16x1xf32>
    %338 = arith.addf %334, %337 : vector<16x1xf32>
    %339 = math.rsqrt %338 : vector<16x1xf32>
    %340 = vector.broadcast %339 : vector<16x1xf32> to vector<16x32xf32>
    %341 = arith.mulf %336, %340 : vector<16x32xf32>
    %342 = vector.broadcast %322 : vector<1x32xf32> to vector<16x32xf32>
    %343 = arith.mulf %341, %342 : vector<16x32xf32>
    %344 = vector.broadcast %323 : vector<1x32xf32> to vector<16x32xf32>
    %345 = arith.addf %343, %344 : vector<16x32xf32>
    %c0_120 = arith.constant 0 : index
    %c0_121 = arith.constant 0 : index
    %346 = vector.load %arg11[%c0_120, %c0_121] : memref<16x32xf32, #tpu.memory_space<vmem>>, vector<16x32xf32>
    tpu.vector_store %arg11[%c0_120, %c0_121], %345 {strides = array<i32>} : memref<16x32xf32, #tpu.memory_space<vmem>>, vector<16x32xf32>,
    return
  }
  func.func @transform_0(%arg0: i32) -> (i32, i32) {
    %c0_i32 = arith.constant 0 : i32
    %c0_i32_0 = arith.constant 0 : i32
    %c0_i32_1 = arith.constant 0 : i32
    return %c0_i32, %c0_i32_0 : i32, i32
  }
  func.func @transform_1(%arg0: i32) -> (i32, i32) {
    %c0_i32 = arith.constant 0 : i32
    %c0_i32_0 = arith.constant 0 : i32
    %c0_i32_1 = arith.constant 0 : i32
    return %c0_i32, %c0_i32_0 : i32, i32
  }
  func.func @transform_2(%arg0: i32) -> (i32, i32) {
    %c0_i32 = arith.constant 0 : i32
    %c0_i32_0 = arith.constant 0 : i32
    %c0_i32_1 = arith.constant 0 : i32
    return %c0_i32, %c0_i32_0 : i32, i32
  }
  func.func @transform_3(%arg0: i32) -> (i32, i32, i32) {
    %c0_i32 = arith.constant 0 : i32
    %c0_i32_0 = arith.constant 0 : i32
    %c0_i32_1 = arith.constant 0 : i32
    %c0_i32_2 = arith.constant 0 : i32
    return %c0_i32, %c0_i32_0, %c0_i32_1 : i32, i32, i32
  }
  func.func @transform_4(%arg0: i32) -> (i32, i32, i32) {
    %c0_i32 = arith.constant 0 : i32
    %c0_i32_0 = arith.constant 0 : i32
    %c0_i32_1 = arith.constant 0 : i32
    %c0_i32_2 = arith.constant 0 : i32
    return %c0_i32, %c0_i32_0, %c0_i32_1 : i32, i32, i32
  }
  func.func @transform_5(%arg0: i32) -> (i32, i32, i32) {
    %c0_i32 = arith.constant 0 : i32
    %c0_i32_0 = arith.constant 0 : i32
    %c0_i32_1 = arith.constant 0 : i32
    %c0_i32_2 = arith.constant 0 : i32
    return %c0_i32, %c0_i32_0, %c0_i32_1 : i32, i32, i32
  }
  func.func @transform_6(%arg0: i32) -> (i32, i32, i32) {
    %c0_i32 = arith.constant 0 : i32
    %c0_i32_0 = arith.constant 0 : i32
    %c0_i32_1 = arith.constant 0 : i32
    %c0_i32_2 = arith.constant 0 : i32
    return %c0_i32, %c0_i32_0, %c0_i32_1 : i32, i32, i32
  }
  func.func @transform_7(%arg0: i32) -> (i32, i32, i32) {
    %c0_i32 = arith.constant 0 : i32
    %c0_i32_0 = arith.constant 0 : i32
    %c0_i32_1 = arith.constant 0 : i32
    %c0_i32_2 = arith.constant 0 : i32
    return %c0_i32, %c0_i32_0, %c0_i32_1 : i32, i32, i32
  }
  func.func @transform_8(%arg0: i32) -> (i32, i32, i32) {
    %c0_i32 = arith.constant 0 : i32
    %c0_i32_0 = arith.constant 0 : i32
    %c0_i32_1 = arith.constant 0 : i32
    %c0_i32_2 = arith.constant 0 : i32
    return %c0_i32, %c0_i32_0, %c0_i32_1 : i32, i32, i32
  }
  func.func @transform_9(%arg0: i32) -> (i32, i32, i32) {
    %c0_i32 = arith.constant 0 : i32
    %c0_i32_0 = arith.constant 0 : i32
    %c0_i32_1 = arith.constant 0 : i32
    %c0_i32_2 = arith.constant 0 : i32
    return %c0_i32, %c0_i32_0, %c0_i32_1 : i32, i32, i32
  }
  func.func @transform_10(%arg0: i32) -> (i32, i32) {
    %c0_i32 = arith.constant 0 : i32
    %c0_i32_0 = arith.constant 0 : i32
    %c0_i32_1 = arith.constant 0 : i32
    return %c0_i32, %c0_i32_0 : i32, i32
  }
}

</mosaic_0001>

<llo_original>
// kernel: tpu_custom_call.1
$region0: #{tpu_custom_call.1}
  #allocation0 [shape = 'u32[]', space=smem, size = 0x4, offset = 0x4, fixed_abs, tag = 'smem constant byte address 0x4 - core index']
  #allocation1 [shape = 'u32[144,128]{1,0:T(1,128)}', space=vmem, size = 0x12000, scoped, tag = 'internal scratch']
  %s0 = inlined_call_operand.vmem [shape: f32[16,32], index: 0, kind: input, shape index: {}]
  %s1 = inlined_call_operand.hbm [shape: f32[16,16], index: 1, kind: input, shape index: {}]
  %s2 = inlined_call_operand.vmem [shape: f32[2,32], index: 2, kind: input, shape index: {}]
  %s3 = inlined_call_operand.vmem [shape: f32[2,32,96], index: 3, kind: input, shape index: {}]
  %s4 = inlined_call_operand.vmem [shape: f32[2,1,96], index: 4, kind: input, shape index: {}]
  %s5 = inlined_call_operand.vmem [shape: f32[2,32,32], index: 5, kind: input, shape index: {}]
  %s6 = inlined_call_operand.vmem [shape: f32[2,32,64], index: 6, kind: input, shape index: {}]
  %s7 = inlined_call_operand.vmem [shape: f32[2,1,64], index: 7, kind: input, shape index: {}]
  %s8 = inlined_call_operand.vmem [shape: f32[2,64,32], index: 8, kind: input, shape index: {}]
  %s9 = inlined_call_operand.vmem [shape: f32[2,6,32], index: 9, kind: input, shape index: {}]
  %s10 = inlined_call_operand.hbm [shape: f32[16,32], index: 10, kind: output, shape index: {}]
  %s11 = sld [smem:[#allocation0]]
  $region54: #{tpu_custom_call.1} parent=0
    _
  %s13 = ssub.s32 1, %s11
  %s14 = scalar_select 0, %s13, %s11
  $region1: #{tpu_custom_call.1} parent=0
    #allocation2 [shape = 'u8[8192]{0}', space=vmem, size = 0x2000, scoped, tag = 'input window, operand 1, single buffered']
    #allocation3 [shape = 's32[1]{0}', space=sflag, size = 0x4, scoped, tag = 'scoped memory for tpu_custom_call.1']
    #allocation4 [shape = 's32[1]{0}', space=sflag, size = 0x4, scoped, tag = 'scoped memory for tpu_custom_call.1']
    #allocation5 [shape = 'u8[8192]{0}', space=vmem, size = 0x2000, scoped, tag = 'output window, operand 0, single buffered']
    %15 = vsyncpa [#allocation3], 0
    %16 = vsyncpa [#allocation4], 0
    // Predicated region
    $region2: #{tpu_custom_call.1} parent=1 // pred_check
      _
    $region3: #{tpu_custom_call.1} parent=1 // pred_check_branch
      %18 = sbr.rel (0) target = $region5
    $region4: #{tpu_custom_call.1} parent=1 // pred_region
      _
    $region5: #{tpu_custom_call.1} parent=1 // pred_fallthru
      _
    // Predicated region
    $region6: #{tpu_custom_call.1} parent=1 // pred_check
      _
    $region7: #{tpu_custom_call.1} parent=1 // pred_check_branch
      %20 = sbr.rel (0) target = $region9
    $region8: #{tpu_custom_call.1} parent=1 // pred_region
      %s22 = ssub.s32 256, 256
      %23 = vsyncadd [#allocation3], %s22
      %s24 = sshll.u32 [#allocation2], 4
      %s25 = int_to_ptr.vmem [resolvable:$true] %s24
      %30 = dma.hbm_to_vmem [thread:$0]  %s1, 256, %s25, [#allocation3], 128, 128, 8
    $region9: #{tpu_custom_call.1} parent=1 // pred_fallthru
      _
    // Predicated region
    $region10: #{tpu_custom_call.1} parent=1 // pred_check
      _
    $region11: #{tpu_custom_call.1} parent=1 // pred_check_branch
      %32 = sbr.rel (0) target = $region13
    $region12: #{tpu_custom_call.1} parent=1 // pred_region
      _
    $region13: #{tpu_custom_call.1} parent=1 // pred_fallthru
      _
    // Predicated region
    $region14: #{tpu_custom_call.1} parent=1 // pred_check
      _
    $region15: #{tpu_custom_call.1} parent=1 // pred_check_branch
      %34 = sbr.rel (0) target = $region17
    $region16: #{tpu_custom_call.1} parent=1 // pred_region
      _
    $region17: #{tpu_custom_call.1} parent=1 // pred_fallthru
      _
    // Predicated region
    $region18: #{tpu_custom_call.1} parent=1 // pred_check
      _
    $region19: #{tpu_custom_call.1} parent=1 // pred_check_branch
      %36 = sbr.rel (0) target = $region21
    $region20: #{tpu_custom_call.1} parent=1 // pred_region
      _
    $region21: #{tpu_custom_call.1} parent=1 // pred_fallthru
      _
    // Predicated region
    $region22: #{tpu_custom_call.1} parent=1 // pred_check
      _
    $region23: #{tpu_custom_call.1} parent=1 // pred_check_branch
      %38 = sbr.rel (0) target = $region25
    $region24: #{tpu_custom_call.1} parent=1 // pred_region
      _
    $region25: #{tpu_custom_call.1} parent=1 // pred_fallthru
      _
    // Predicated region
    $region26: #{tpu_custom_call.1} parent=1 // pred_check
      _
    $region27: #{tpu_custom_call.1} parent=1 // pred_check_branch
      %40 = sbr.rel (0) target = $region29
    $region28: #{tpu_custom_call.1} parent=1 // pred_region
      _
    $region29: #{tpu_custom_call.1} parent=1 // pred_fallthru
      _
    // Predicated region
    $region30: #{tpu_custom_call.1} parent=1 // pred_check
      _
    $region31: #{tpu_custom_call.1} parent=1 // pred_check_branch
      %42 = sbr.rel (0) target = $region33
    $region32: #{tpu_custom_call.1} parent=1 // pred_region
      _
    $region33: #{tpu_custom_call.1} parent=1 // pred_fallthru
      _
    // Predicated region
    $region34: #{tpu_custom_call.1} parent=1 // pred_check
      _
    $region35: #{tpu_custom_call.1} parent=1 // pred_check_branch
      %44 = sbr.rel (0) target = $region37
    $region36: #{tpu_custom_call.1} parent=1 // pred_region
      _
    $region37: #{tpu_custom_call.1} parent=1 // pred_fallthru
      _
    // Predicated region
    $region38: #{tpu_custom_call.1} parent=1 // pred_check
      _
    $region39: #{tpu_custom_call.1} parent=1 // pred_check_branch
      %46 = sbr.rel (0) target = $region41
    $region40: #{tpu_custom_call.1} parent=1 // pred_region
      _
    $region41: #{tpu_custom_call.1} parent=1 // pred_fallthru
      _
    // Predicated region
    $region42: #{tpu_custom_call.1} parent=1 // pred_check
      _
    $region43: #{tpu_custom_call.1} parent=1 // pred_check_branch
      %48 = sbr.rel (0) target = $region45
    $region44: #{tpu_custom_call.1} parent=1 // pred_region
      %49 = dma.done [#allocation3], 256
    $region45: #{tpu_custom_call.1} parent=1 // pred_fallthru
      _
    %v50 = vld [vmem:[%s0] sm:$0xff]
    %v51 = vld [vmem:[%s0 + $0x8] sm:$0xff]
    %v52 = vld [vmem:[%s2] sm:$0x1]
    %v53 = vld [vmem:[%s2 + $0x1] sm:$0x1]
    %vm54 = vcmask 261120
    %v55 = vsel %vm54, %v50, 0.0
    %56 = vadd.xlane.f32.xlu0 %v55
    %v57 = vpop.xlane.xlu0 %56
    %v58 = vsel %vm54, %v51, 0.0
    %59 = vadd.xlane.f32.xlu0 %v58
    %v60 = vpop.xlane.xlu0 %59
    %v61 = vrcp.pop 32.0
    %v62 = vmul.f32 %v57, %v61
    %v63 = vmul.f32 %v60, %v61
    %v64 = vsub.f32 %v50, %v62
    %v65 = vsub.f32 %v51, %v63
    %v66 = vmul.f32 %v64, %v64
    %v67 = vmul.f32 %v65, %v65
    %v68 = vsel %vm54, %v66, 0.0
    %69 = vadd.xlane.f32.xlu0 %v68
    %v70 = vpop.xlane.xlu0 %69
    %v71 = vsel %vm54, %v67, 0.0
    %72 = vadd.xlane.f32.xlu0 %v71
    %v73 = vpop.xlane.xlu0 %72
    %v74 = vmul.f32 %v70, %v61
    %v75 = vmul.f32 %v73, %v61
    %v76 = vadd.f32 %v74, 1e-12
    %v77 = vadd.f32 %v75, 1e-12
    %v78 = vrsqrt.pop %v76
    %v79 = vrsqrt.pop %v77
    %v80 = vmul.f32 %v64, %v78
    %v81 = vmul.f32 %v65, %v79
    %v82 = vlaneseq
    %v83 = vshrl.u32 %v82, 7
    %v84 = vsub.s32 0, %v83
    %v85 = vrot.slane %v52, %v84
    %v86 = vmul.f32 %v80, %v85
    %v87 = vmul.f32 %v81, %v85
    %v88 = vlaneseq
    %v89 = vshrl.u32 %v88, 7
    %v90 = vsub.s32 0, %v89
    %v91 = vrot.slane %v53, %v90
    %v92 = vadd.f32 %v86, %v91
    %v93 = vadd.f32 %v87, %v91
    %v94 = vld [vmem:[#allocation2] sm:$0xff]
    %v95 = vld [vmem:[#allocation2 + $0x8] sm:$0xff]
    %v96 = vld [vmem:[%s3] sm:$0xff]
    %v97 = vld [vmem:[%s3 + $0x8] sm:$0xff]
    %v98 = vld [vmem:[%s3 + $0x10] sm:$0xff]
    %v99 = vld [vmem:[%s3 + $0x18] sm:$0xff]
    %v100 = vld [vmem:[%s4] sm:$0x1]
    %v102 = vlaneseq
    %v103 = vshrl.u32 %v102, 7
    %v104 = vsub.s32 0, %v103
    %v105 = vrot.slane %v100, %v104
    %v108 = vsel %vm54, %v92, 0
    %v111 = vsel %vm54, %v93, 0
    %113 = vmatprep.subr.mxu0 0.0
    %114 = vmatpush1.msra.mxu0 %v96
    %115 = vmatprep.subr.mxu0 0.0
    %116 = vmatpush1.msra.mxu0 %v97
    %117 = vmatprep.subr.mxu0 0.0
    %118 = vmatpush1.msra.mxu0 %v98
    %119 = vmatprep.subr.mxu0 0.0
    %120 = vmatpush1.msra.mxu0 %v99
    %121 = vmatprep.subr.mxu0 0.0
    %122 = vmatpush1.msra.mxu0 0.0
    %123 = vmatprep.subr.mxu0 0.0
    %124 = vmatpush1.msra.mxu0 0.0
    %125 = vmatprep.subr.mxu0 0.0
    %126 = vmatpush1.msra.mxu0 0.0
    %127 = vmatprep.subr.mxu0 0.0
    %128 = vmatpush1.msra.mxu0 0.0
    %129 = vmatprep.subr.mxu0 0.0
    %130 = vmatpush1.msra.mxu0 0.0
    %131 = vmatprep.subr.mxu0 0.0
    %132 = vmatpush1.msra.mxu0 0.0
    %133 = vmatprep.subr.mxu0 0.0
    %134 = vmatpush1.msra.mxu0 0.0
    %135 = vmatprep.subr.mxu0 0.0
    %136 = vmatpush1.msra.mxu0 0.0
    %137 = vmatprep.subr.mxu0 0.0
    %138 = vmatpush1.msra.mxu0 0.0
    %139 = vmatprep.subr.mxu0 0.0
    %140 = vmatpush1.msra.mxu0 0.0
    %141 = vmatprep.subr.mxu0 0.0
    %142 = vmatpush1.msra.mxu0 0.0
    %143 = vmatprep.subr.mxu0 0.0
    %144 = vmatpush1.msra.mxu0 0.0
    %145 = vmatprep.subr.mxu0 0.0
    %146 = vmatpush1.msra.mxu0 0.0
    %147 = vmatprep.subr.mxu0 0.0
    %148 = vmatpush1.msra.mxu0 0.0
    %149 = vmatprep.subr.mxu0 0.0
    %150 = vmatpush1.msra.mxu0 0.0
    %151 = vmatprep.subr.mxu0 0.0
    %152 = vmatpush1.msra.mxu0 0.0
    %153 = vmatprep.subr.mxu0 0.0
    %154 = vmatpush1.msra.mxu0 0.0
    %155 = vmatprep.subr.mxu0 0.0
    %156 = vmatpush1.msra.mxu0 0.0
    %157 = vmatprep.subr.mxu0 0.0
    %158 = vmatpush1.msra.mxu0 0.0
    %159 = vmatprep.subr.mxu0 0.0
    %160 = vmatpush1.msra.mxu0 0.0
    %161 = vmatprep.subr.mxu0 0.0
    %162 = vmatpush1.msra.mxu0 0.0
    %163 = vmatprep.subr.mxu0 0.0
    %164 = vmatpush1.msra.mxu0 0.0
    %165 = vmatprep.subr.mxu0 0.0
    %166 = vmatpush1.msra.mxu0 0.0
    %167 = vmatprep.subr.mxu0 0.0
    %168 = vmatpush1.msra.mxu0 0.0
    %169 = vmatprep.subr.mxu0 0.0
    %170 = vmatpush1.msra.mxu0 0.0
    %171 = vmatprep.subr.mxu0 0.0
    %172 = vmatpush1.msra.mxu0 0.0
    %173 = vmatprep.subr.mxu0 0.0
    %174 = vmatpush1.msra.mxu0 0.0
    %175 = vmatprep.subr.mxu0 0.0
    %176 = vmatpush1.msra.mxu0 0.0
    %177 = vmatprep.mubr.f32.mxu0 0.0
    %178 = vmatmul.mubr.f32.gmra.mrb[0].mxu0 %v108
    %v179 = vpop.f32.mrb[0].mxu0
    %v180 = vadd.f32 %v105, %v179
    %v181 = vpop.f32.mrb[0].mxu0
    %182 = vmatprep.mubr.f32.mxu0 0.0
    %183 = vmatmul.mubr.f32.gmra.mrb[0].mxu0 %v111
    %v184 = vpop.f32.mrb[0].mxu0
    %v185 = vadd.f32 %v105, %v184
    %v186 = vpop.f32.mrb[0].mxu0
    %187 = vdwg.mxu0
    %190 = vrot.lane.b32.xlu0 %v180, 96
    %v191 = vpop.permute.xlu0 %190
    %192 = vrot.lane.b32.xlu0 %v185, 96
    %v193 = vpop.permute.xlu0 %192
    %vm194 = vcmask 64512
    %v195 = vsel %vm194, %v180, 0
    %v197 = vsel %vm194, %v185, 0
    %v199 = vsel %vm194, %v191, 0
    %v201 = vsel %vm194, %v193, 0
    %203 = vmatprep.subr.mxu0 0.0
    %204 = vmatpush1.xpose.msra.mxu0 %v199
    %205 = vmatprep.subr.mxu0 0.0
    %206 = vmatpush1.xpose.msra.mxu0 %v201
    %207 = vmatprep.subr.mxu0 0.0
    %208 = vmatpush1.xpose.msra.mxu0 0.0
    %209 = vmatprep.subr.mxu0 0.0
    %210 = vmatpush1.xpose.msra.mxu0 0.0
    %211 = vmatprep.subr.mxu0 0.0
    %212 = vmatpush1.xpose.msra.mxu0 0.0
    %213 = vmatprep.subr.mxu0 0.0
    %214 = vmatpush1.xpose.msra.mxu0 0.0
    %215 = vmatprep.subr.mxu0 0.0
    %216 = vmatpush1.xpose.msra.mxu0 0.0
    %217 = vmatprep.subr.mxu0 0.0
    %218 = vmatpush1.xpose.msra.mxu0 0.0
    %219 = vmatprep.subr.mxu0 0.0
    %220 = vmatpush1.xpose.msra.mxu0 0.0
    %221 = vmatprep.subr.mxu0 0.0
    %222 = vmatpush1.xpose.msra.mxu0 0.0
    %223 = vmatprep.subr.mxu0 0.0
    %224 = vmatpush1.xpose.msra.mxu0 0.0
    %225 = vmatprep.subr.mxu0 0.0
    %226 = vmatpush1.xpose.msra.mxu0 0.0
    %227 = vmatprep.subr.mxu0 0.0
    %228 = vmatpush1.xpose.msra.mxu0 0.0
    %229 = vmatprep.subr.mxu0 0.0
    %230 = vmatpush1.xpose.msra.mxu0 0.0
    %231 = vmatprep.subr.mxu0 0.0
    %232 = vmatpush1.xpose.msra.mxu0 0.0
    %233 = vmatprep.subr.mxu0 0.0
    %234 = vmatpush1.xpose.msra.mxu0 0.0
    %235 = vmatprep.subr.mxu0 0.0
    %236 = vmatpush1.xpose.msra.mxu0 0.0
    %237 = vmatprep.subr.mxu0 0.0
    %238 = vmatpush1.xpose.msra.mxu0 0.0
    %239 = vmatprep.subr.mxu0 0.0
    %240 = vmatpush1.xpose.msra.mxu0 0.0
    %241 = vmatprep.subr.mxu0 0.0
    %242 = vmatpush1.xpose.msra.mxu0 0.0
    %243 = vmatprep.subr.mxu0 0.0
    %244 = vmatpush1.xpose.msra.mxu0 0.0
    %245 = vmatprep.subr.mxu0 0.0
    %246 = vmatpush1.xpose.msra.mxu0 0.0
    %247 = vmatprep.subr.mxu0 0.0
    %248 = vmatpush1.xpose.msra.mxu0 0.0
    %249 = vmatprep.subr.mxu0 0.0
    %250 = vmatpush1.xpose.msra.mxu0 0.0
    %251 = vmatprep.subr.mxu0 0.0
    %252 = vmatpush1.xpose.msra.mxu0 0.0
    %253 = vmatprep.subr.mxu0 0.0
    %254 = vmatpush1.xpose.msra.mxu0 0.0
    %255 = vmatprep.subr.mxu0 0.0
    %256 = vmatpush1.xpose.msra.mxu0 0.0
    %257 = vmatprep.subr.mxu0 0.0
    %258 = vmatpush1.xpose.msra.mxu0 0.0
    %259 = vmatprep.subr.mxu0 0.0
    %260 = vmatpush1.xpose.msra.mxu0 0.0
    %261 = vmatprep.subr.mxu0 0.0
    %262 = vmatpush1.xpose.msra.mxu0 0.0
    %263 = vmatprep.subr.mxu0 0.0
    %264 = vmatpush1.xpose.msra.mxu0 0.0
    %265 = vmatprep.subr.mxu0 0.0
    %266 = vmatpush1.xpose.msra.mxu0 0.0
    %267 = vmatprep.mubr.f32.mxu0 0.0
    %268 = vmatmul.mubr.f32.gmra.mrb[0].mxu0 %v195
    %v269 = vpop.f32.mrb[0].mxu0
    %v270 = vadd.f32 %v94, %v269
    %v271 = vpop.f32.mrb[0].mxu0
    %272 = vmatprep.mubr.f32.mxu0 0.0
    %273 = vmatmul.mubr.f32.gmra.mrb[0].mxu0 %v197
    %v274 = vpop.f32.mrb[0].mxu0
    %v275 = vadd.f32 %v95, %v274
    %v276 = vpop.f32.mrb[0].mxu0
    %277 = vdwg.mxu0
    %vm278 = vcmask 130048
    %v279 = vsel %vm278, %v270, -inf
    %280 = vmax.xlane.f32.xlu0 %v279
    %v281 = vpop.xlane.xlu0 %280
    %v282 = vsel %vm278, %v275, -inf
    %283 = vmax.xlane.f32.xlu0 %v282
    %v284 = vpop.xlane.xlu0 %283
    %v285 = vsub.f32 %v270, %v281
    %v286 = vsub.f32 %v275, %v284
    %v287 = vmul.f32 %v285, 1.442695
    %v288 = vpow.pop %v287
    %v289 = vmul.f32 %v286, 1.442695
    %v290 = vpow.pop %v289
    %v291 = vsel %vm278, %v288, 0.0
    %292 = vadd.xlane.f32.xlu0 %v291
    %v293 = vpop.xlane.xlu0 %292
    %v294 = vsel %vm278, %v290, 0.0
    %295 = vadd.xlane.f32.xlu0 %v294
    %v296 = vpop.xlane.xlu0 %295
    %v297 = vrcp.pop %v293
    %v298 = vrcp.pop %v296
    %v299 = vmul.f32 %v288, %v297
    %v300 = vmul.f32 %v290, %v298
    %301 = vrot.lane.b32.xlu0 %v180, 64
    %v302 = vpop.permute.xlu0 %301
    %303 = vrot.lane.b32.xlu0 %v185, 64
    %v304 = vpop.permute.xlu0 %303
    %v308 = vsel %vm278, %v299, 0
    %v311 = vsel %vm278, %v300, 0
    %313 = vmatprep.subr.mxu0 0.0
    %314 = vmatpush1.msra.mxu0 %v302
    %315 = vmatprep.subr.mxu0 0.0
    %316 = vmatpush1.msra.mxu0 %v304
    %317 = vmatprep.subr.mxu0 0.0
    %318 = vmatpush1.msra.mxu0 0.0
    %319 = vmatprep.subr.mxu0 0.0
    %320 = vmatpush1.msra.mxu0 0.0
    %321 = vmatprep.subr.mxu0 0.0
    %322 = vmatpush1.msra.mxu0 0.0
    %323 = vmatprep.subr.mxu0 0.0
    %324 = vmatpush1.msra.mxu0 0.0
    %325 = vmatprep.subr.mxu0 0.0
    %326 = vmatpush1.msra.mxu0 0.0
    %327 = vmatprep.subr.mxu0 0.0
    %328 = vmatpush1.msra.mxu0 0.0
    %329 = vmatprep.subr.mxu0 0.0
    %330 = vmatpush1.msra.mxu0 0.0
    %331 = vmatprep.subr.mxu0 0.0
    %332 = vmatpush1.msra.mxu0 0.0
    %333 = vmatprep.subr.mxu0 0.0
    %334 = vmatpush1.msra.mxu0 0.0
    %335 = vmatprep.subr.mxu0 0.0
    %336 = vmatpush1.msra.mxu0 0.0
    %337 = vmatprep.subr.mxu0 0.0
    %338 = vmatpush1.msra.mxu0 0.0
    %339 = vmatprep.subr.mxu0 0.0
    %340 = vmatpush1.msra.mxu0 0.0
    %341 = vmatprep.subr.mxu0 0.0
    %342 = vmatpush1.msra.mxu0 0.0
    %343 = vmatprep.subr.mxu0 0.0
    %344 = vmatpush1.msra.mxu0 0.0
    %345 = vmatprep.subr.mxu0 0.0
    %346 = vmatpush1.msra.mxu0 0.0
    %347 = vmatprep.subr.mxu0 0.0
    %348 = vmatpush1.msra.mxu0 0.0
    %349 = vmatprep.subr.mxu0 0.0
    %350 = vmatpush1.msra.mxu0 0.0
    %351 = vmatprep.subr.mxu0 0.0
    %352 = vmatpush1.msra.mxu0 0.0
    %353 = vmatprep.subr.mxu0 0.0
    %354 = vmatpush1.msra.mxu0 0.0
    %355 = vmatprep.subr.mxu0 0.0
    %356 = vmatpush1.msra.mxu0 0.0
    %357 = vmatprep.subr.mxu0 0.0
    %358 = vmatpush1.msra.mxu0 0.0
    %359 = vmatprep.subr.mxu0 0.0
    %360 = vmatpush1.msra.mxu0 0.0
    %361 = vmatprep.subr.mxu0 0.0
    %362 = vmatpush1.msra.mxu0 0.0
    %363 = vmatprep.subr.mxu0 0.0
    %364 = vmatpush1.msra.mxu0 0.0
    %365 = vmatprep.subr.mxu0 0.0
    %366 = vmatpush1.msra.mxu0 0.0
    %367 = vmatprep.subr.mxu0 0.0
    %368 = vmatpush1.msra.mxu0 0.0
    %369 = vmatprep.subr.mxu0 0.0
    %370 = vmatpush1.msra.mxu0 0.0
    %371 = vmatprep.subr.mxu0 0.0
    %372 = vmatpush1.msra.mxu0 0.0
    %373 = vmatprep.subr.mxu0 0.0
    %374 = vmatpush1.msra.mxu0 0.0
    %375 = vmatprep.subr.mxu0 0.0
    %376 = vmatpush1.msra.mxu0 0.0
    %377 = vmatprep.mubr.f32.mxu0 0.0
    %378 = vmatmul.mubr.f32.gmra.mrb[0].mxu0 %v308
    %v379 = vpop.f32.mrb[0].mxu0
    %v380 = vadd.f32 0.0, %v379
    %v381 = vpop.f32.mrb[0].mxu0
    %382 = vmatprep.mubr.f32.mxu0 0.0
    %383 = vmatmul.mubr.f32.gmra.mrb[0].mxu0 %v311
    %v384 = vpop.f32.mrb[0].mxu0
    %v385 = vadd.f32 0.0, %v384
    %v386 = vpop.f32.mrb[0].mxu0
    %387 = vdwg.mxu0
    %388 = vrot.lane.b32.xlu0 %v180, 120
    %v389 = vpop.permute.xlu0 %388
    %390 = vrot.lane.b32.xlu0 %v185, 120
    %v391 = vpop.permute.xlu0 %390
    %392 = vrot.lane.b32.xlu0 %v180, 88
    %v393 = vpop.permute.xlu0 %392
    %394 = vrot.lane.b32.xlu0 %v185, 88
    %v395 = vpop.permute.xlu0 %394
    %v396 = vsel %vm194, %v389, 0
    %v398 = vsel %vm194, %v391, 0
    %v400 = vsel %vm194, %v393, 0
    %v402 = vsel %vm194, %v395, 0
    %404 = vmatprep.subr.mxu0 0.0
    %405 = vmatpush1.xpose.msra.mxu0 %v400
    %406 = vmatprep.subr.mxu0 0.0
    %407 = vmatpush1.xpose.msra.mxu0 %v402
    %408 = vmatprep.subr.mxu0 0.0
    %409 = vmatpush1.xpose.msra.mxu0 0.0
    %410 = vmatprep.subr.mxu0 0.0
    %411 = vmatpush1.xpose.msra.mxu0 0.0
    %412 = vmatprep.subr.mxu0 0.0
    %413 = vmatpush1.xpose.msra.mxu0 0.0
    %414 = vmatprep.subr.mxu0 0.0
    %415 = vmatpush1.xpose.msra.mxu0 0.0
    %416 = vmatprep.subr.mxu0 0.0
    %417 = vmatpush1.xpose.msra.mxu0 0.0
    %418 = vmatprep.subr.mxu0 0.0
    %419 = vmatpush1.xpose.msra.mxu0 0.0
    %420 = vmatprep.subr.mxu0 0.0
    %421 = vmatpush1.xpose.msra.mxu0 0.0
    %422 = vmatprep.subr.mxu0 0.0
    %423 = vmatpush1.xpose.msra.mxu0 0.0
    %424 = vmatprep.subr.mxu0 0.0
    %425 = vmatpush1.xpose.msra.mxu0 0.0
    %426 = vmatprep.subr.mxu0 0.0
    %427 = vmatpush1.xpose.msra.mxu0 0.0
    %428 = vmatprep.subr.mxu0 0.0
    %429 = vmatpush1.xpose.msra.mxu0 0.0
    %430 = vmatprep.subr.mxu0 0.0
    %431 = vmatpush1.xpose.msra.mxu0 0.0
    %432 = vmatprep.subr.mxu0 0.0
    %433 = vmatpush1.xpose.msra.mxu0 0.0
    %434 = vmatprep.subr.mxu0 0.0
    %435 = vmatpush1.xpose.msra.mxu0 0.0
    %436 = vmatprep.subr.mxu0 0.0
    %437 = vmatpush1.xpose.msra.mxu0 0.0
    %438 = vmatprep.subr.mxu0 0.0
    %439 = vmatpush1.xpose.msra.mxu0 0.0
    %440 = vmatprep.subr.mxu0 0.0
    %441 = vmatpush1.xpose.msra.mxu0 0.0
    %442 = vmatprep.subr.mxu0 0.0
    %443 = vmatpush1.xpose.msra.mxu0 0.0
    %444 = vmatprep.subr.mxu0 0.0
    %445 = vmatpush1.xpose.msra.mxu0 0.0
    %446 = vmatprep.subr.mxu0 0.0
    %447 = vmatpush1.xpose.msra.mxu0 0.0
    %448 = vmatprep.subr.mxu0 0.0
    %449 = vmatpush1.xpose.msra.mxu0 0.0
    %450 = vmatprep.subr.mxu0 0.0
    %451 = vmatpush1.xpose.msra.mxu0 0.0
    %452 = vmatprep.subr.mxu0 0.0
    %453 = vmatpush1.xpose.msra.mxu0 0.0
    %454 = vmatprep.subr.mxu0 0.0
    %455 = vmatpush1.xpose.msra.mxu0 0.0
    %456 = vmatprep.subr.mxu0 0.0
    %457 = vmatpush1.xpose.msra.mxu0 0.0
    %458 = vmatprep.subr.mxu0 0.0
    %459 = vmatpush1.xpose.msra.mxu0 0.0
    %460 = vmatprep.subr.mxu0 0.0
    %461 = vmatpush1.xpose.msra.mxu0 0.0
    %462 = vmatprep.subr.mxu0 0.0
    %463 = vmatpush1.xpose.msra.mxu0 0.0
    %464 = vmatprep.subr.mxu0 0.0
    %465 = vmatpush1.xpose.msra.mxu0 0.0
    %466 = vmatprep.subr.mxu0 0.0
    %467 = vmatpush1.xpose.msra.mxu0 0.0
    %468 = vmatprep.mubr.f32.mxu0 0.0
    %469 = vmatmul.mubr.f32.gmra.mrb[0].mxu0 %v396
    %v470 = vpop.f32.mrb[0].mxu0
    %v471 = vadd.f32 %v94, %v470
    %v472 = vpop.f32.mrb[0].mxu0
    %473 = vmatprep.mubr.f32.mxu0 0.0
    %474 = vmatmul.mubr.f32.gmra.mrb[0].mxu0 %v398
    %v475 = vpop.f32.mrb[0].mxu0
    %v476 = vadd.f32 %v95, %v475
    %v477 = vpop.f32.mrb[0].mxu0
    %478 = vdwg.mxu0
    %v479 = vsel %vm278, %v471, -inf
    %480 = vmax.xlane.f32.xlu0 %v479
    %v481 = vpop.xlane.xlu0 %480
    %v482 = vsel %vm278, %v476, -inf
    %483 = vmax.xlane.f32.xlu0 %v482
    %v484 = vpop.xlane.xlu0 %483
    %v485 = vsub.f32 %v471, %v481
    %v486 = vsub.f32 %v476, %v484
    %v487 = vmul.f32 %v485, 1.442695
    %v488 = vpow.pop %v487
    %v489 = vmul.f32 %v486, 1.442695
    %v490 = vpow.pop %v489
    %v491 = vsel %vm278, %v488, 0.0
    %492 = vadd.xlane.f32.xlu0 %v491
    %v493 = vpop.xlane.xlu0 %492
    %v494 = vsel %vm278, %v490, 0.0
    %495 = vadd.xlane.f32.xlu0 %v494
    %v496 = vpop.xlane.xlu0 %495
    %v497 = vrcp.pop %v493
    %v498 = vrcp.pop %v496
    %v499 = vmul.f32 %v488, %v497
    %v500 = vmul.f32 %v490, %v498
    %501 = vrot.lane.b32.xlu0 %v180, 56
    %v502 = vpop.permute.xlu0 %501
    %503 = vrot.lane.b32.xlu0 %v185, 56
    %v504 = vpop.permute.xlu0 %503
    %v508 = vsel %vm278, %v499, 0
    %v511 = vsel %vm278, %v500, 0
    %513 = vmatprep.subr.mxu0 0.0
    %514 = vmatpush1.msra.mxu0 %v502
    %515 = vmatprep.subr.mxu0 0.0
    %516 = vmatpush1.msra.mxu0 %v504
    %517 = vmatprep.subr.mxu0 0.0
    %518 = vmatpush1.msra.mxu0 0.0
    %519 = vmatprep.subr.mxu0 0.0
    %520 = vmatpush1.msra.mxu0 0.0
    %521 = vmatprep.subr.mxu0 0.0
    %522 = vmatpush1.msra.mxu0 0.0
    %523 = vmatprep.subr.mxu0 0.0
    %524 = vmatpush1.msra.mxu0 0.0
    %525 = vmatprep.subr.mxu0 0.0
    %526 = vmatpush1.msra.mxu0 0.0
    %527 = vmatprep.subr.mxu0 0.0
    %528 = vmatpush1.msra.mxu0 0.0
    %529 = vmatprep.subr.mxu0 0.0
    %530 = vmatpush1.msra.mxu0 0.0
    %531 = vmatprep.subr.mxu0 0.0
    %532 = vmatpush1.msra.mxu0 0.0
    %533 = vmatprep.subr.mxu0 0.0
    %534 = vmatpush1.msra.mxu0 0.0
    %535 = vmatprep.subr.mxu0 0.0
    %536 = vmatpush1.msra.mxu0 0.0
    %537 = vmatprep.subr.mxu0 0.0
    %538 = vmatpush1.msra.mxu0 0.0
    %539 = vmatprep.subr.mxu0 0.0
    %540 = vmatpush1.msra.mxu0 0.0
    %541 = vmatprep.subr.mxu0 0.0
    %542 = vmatpush1.msra.mxu0 0.0
    %543 = vmatprep.subr.mxu0 0.0
    %544 = vmatpush1.msra.mxu0 0.0
    %545 = vmatprep.subr.mxu0 0.0
    %546 = vmatpush1.msra.mxu0 0.0
    %547 = vmatprep.subr.mxu0 0.0
    %548 = vmatpush1.msra.mxu0 0.0
    %549 = vmatprep.subr.mxu0 0.0
    %550 = vmatpush1.msra.mxu0 0.0
    %551 = vmatprep.subr.mxu0 0.0
    %552 = vmatpush1.msra.mxu0 0.0
    %553 = vmatprep.subr.mxu0 0.0
    %554 = vmatpush1.msra.mxu0 0.0
    %555 = vmatprep.subr.mxu0 0.0
    %556 = vmatpush1.msra.mxu0 0.0
    %557 = vmatprep.subr.mxu0 0.0
    %558 = vmatpush1.msra.mxu0 0.0
    %559 = vmatprep.subr.mxu0 0.0
    %560 = vmatpush1.msra.mxu0 0.0
    %561 = vmatprep.subr.mxu0 0.0
    %562 = vmatpush1.msra.mxu0 0.0
    %563 = vmatprep.subr.mxu0 0.0
    %564 = vmatpush1.msra.mxu0 0.0
    %565 = vmatprep.subr.mxu0 0.0
    %566 = vmatpush1.msra.mxu0 0.0
    %567 = vmatprep.subr.mxu0 0.0
    %568 = vmatpush1.msra.mxu0 0.0
    %569 = vmatprep.subr.mxu0 0.0
    %570 = vmatpush1.msra.mxu0 0.0
    %571 = vmatprep.subr.mxu0 0.0
    %572 = vmatpush1.msra.mxu0 0.0
    %573 = vmatprep.subr.mxu0 0.0
    %574 = vmatpush1.msra.mxu0 0.0
    %575 = vmatprep.subr.mxu0 0.0
    %576 = vmatpush1.msra.mxu0 0.0
    %577 = vmatprep.mubr.f32.mxu0 0.0
    %578 = vmatmul.mubr.f32.gmra.mrb[0].mxu0 %v508
    %v579 = vpop.f32.mrb[0].mxu0
    %v580 = vadd.f32 0.0, %v579
    %v581 = vpop.f32.mrb[0].mxu0
    %582 = vmatprep.mubr.f32.mxu0 0.0
    %583 = vmatmul.mubr.f32.gmra.mrb[0].mxu0 %v511
    %v584 = vpop.f32.mrb[0].mxu0
    %v585 = vadd.f32 0.0, %v584
    %v586 = vpop.f32.mrb[0].mxu0
    %587 = vdwg.mxu0
    %588 = vrot.lane.b32.xlu0 %v180, 112
    %v589 = vpop.permute.xlu0 %588
    %590 = vrot.lane.b32.xlu0 %v185, 112
    %v591 = vpop.permute.xlu0 %590
    %592 = vrot.lane.b32.xlu0 %v180, 80
    %v593 = vpop.permute.xlu0 %592
    %594 = vrot.lane.b32.xlu0 %v185, 80
    %v595 = vpop.permute.xlu0 %594
    %v596 = vsel %vm194, %v589, 0
    %v598 = vsel %vm194, %v591, 0
    %v600 = vsel %vm194, %v593, 0
    %v602 = vsel %vm194, %v595, 0
    %604 = vmatprep.subr.mxu0 0.0
    %605 = vmatpush1.xpose.msra.mxu0 %v600
    %606 = vmatprep.subr.mxu0 0.0
    %607 = vmatpush1.xpose.msra.mxu0 %v602
    %608 = vmatprep.subr.mxu0 0.0
    %609 = vmatpush1.xpose.msra.mxu0 0.0
    %610 = vmatprep.subr.mxu0 0.0
    %611 = vmatpush1.xpose.msra.mxu0 0.0
    %612 = vmatprep.subr.mxu0 0.0
    %613 = vmatpush1.xpose.msra.mxu0 0.0
    %614 = vmatprep.subr.mxu0 0.0
    %615 = vmatpush1.xpose.msra.mxu0 0.0
    %616 = vmatprep.subr.mxu0 0.0
    %617 = vmatpush1.xpose.msra.mxu0 0.0
    %618 = vmatprep.subr.mxu0 0.0
    %619 = vmatpush1.xpose.msra.mxu0 0.0
    %620 = vmatprep.subr.mxu0 0.0
    %621 = vmatpush1.xpose.msra.mxu0 0.0
    %622 = vmatprep.subr.mxu0 0.0
    %623 = vmatpush1.xpose.msra.mxu0 0.0
    %624 = vmatprep.subr.mxu0 0.0
    %625 = vmatpush1.xpose.msra.mxu0 0.0
    %626 = vmatprep.subr.mxu0 0.0
    %627 = vmatpush1.xpose.msra.mxu0 0.0
    %628 = vmatprep.subr.mxu0 0.0
    %629 = vmatpush1.xpose.msra.mxu0 0.0
    %630 = vmatprep.subr.mxu0 0.0
    %631 = vmatpush1.xpose.msra.mxu0 0.0
    %632 = vmatprep.subr.mxu0 0.0
    %633 = vmatpush1.xpose.msra.mxu0 0.0
    %634 = vmatprep.subr.mxu0 0.0
    %635 = vmatpush1.xpose.msra.mxu0 0.0
    %636 = vmatprep.subr.mxu0 0.0
    %637 = vmatpush1.xpose.msra.mxu0 0.0
    %638 = vmatprep.subr.mxu0 0.0
    %639 = vmatpush1.xpose.msra.mxu0 0.0
    %640 = vmatprep.subr.mxu0 0.0
    %641 = vmatpush1.xpose.msra.mxu0 0.0
    %642 = vmatprep.subr.mxu0 0.0
    %643 = vmatpush1.xpose.msra.mxu0 0.0
    %644 = vmatprep.subr.mxu0 0.0
    %645 = vmatpush1.xpose.msra.mxu0 0.0
    %646 = vmatprep.subr.mxu0 0.0
    %647 = vmatpush1.xpose.msra.mxu0 0.0
    %648 = vmatprep.subr.mxu0 0.0
    %649 = vmatpush1.xpose.msra.mxu0 0.0
    %650 = vmatprep.subr.mxu0 0.0
    %651 = vmatpush1.xpose.msra.mxu0 0.0
    %652 = vmatprep.subr.mxu0 0.0
    %653 = vmatpush1.xpose.msra.mxu0 0.0
    %654 = vmatprep.subr.mxu0 0.0
    %655 = vmatpush1.xpose.msra.mxu0 0.0
    %656 = vmatprep.subr.mxu0 0.0
    %657 = vmatpush1.xpose.msra.mxu0 0.0
    %658 = vmatprep.subr.mxu0 0.0
    %659 = vmatpush1.xpose.msra.mxu0 0.0
    %660 = vmatprep.subr.mxu0 0.0
    %661 = vmatpush1.xpose.msra.mxu0 0.0
    %662 = vmatprep.subr.mxu0 0.0
    %663 = vmatpush1.xpose.msra.mxu0 0.0
    %664 = vmatprep.subr.mxu0 0.0
    %665 = vmatpush1.xpose.msra.mxu0 0.0
    %666 = vmatprep.subr.mxu0 0.0
    %667 = vmatpush1.xpose.msra.mxu0 0.0
    %668 = vmatprep.mubr.f32.mxu0 0.0
    %669 = vmatmul.mubr.f32.gmra.mrb[0].mxu0 %v596
    %v670 = vpop.f32.mrb[0].mxu0
    %v671 = vadd.f32 %v94, %v670
    %v672 = vpop.f32.mrb[0].mxu0
    %673 = vmatprep.mubr.f32.mxu0 0.0
    %674 = vmatmul.mubr.f32.gmra.mrb[0].mxu0 %v598
    %v675 = vpop.f32.mrb[0].mxu0
    %v676 = vadd.f32 %v95, %v675
    %v677 = vpop.f32.mrb[0].mxu0
    %678 = vdwg.mxu0
    %v679 = vsel %vm278, %v671, -inf
    %680 = vmax.xlane.f32.xlu0 %v679
    %v681 = vpop.xlane.xlu0 %680
    %v682 = vsel %vm278, %v676, -inf
    %683 = vmax.xlane.f32.xlu0 %v682
    %v684 = vpop.xlane.xlu0 %683
    %v685 = vsub.f32 %v671, %v681
    %v686 = vsub.f32 %v676, %v684
    %v687 = vmul.f32 %v685, 1.442695
    %v688 = vpow.pop %v687
    %v689 = vmul.f32 %v686, 1.442695
    %v690 = vpow.pop %v689
    %v691 = vsel %vm278, %v688, 0.0
    %692 = vadd.xlane.f32.xlu0 %v691
    %v693 = vpop.xlane.xlu0 %692
    %v694 = vsel %vm278, %v690, 0.0
    %695 = vadd.xlane.f32.xlu0 %v694
    %v696 = vpop.xlane.xlu0 %695
    %v697 = vrcp.pop %v693
    %v698 = vrcp.pop %v696
    %v699 = vmul.f32 %v688, %v697
    %v700 = vmul.f32 %v690, %v698
    %701 = vrot.lane.b32.xlu0 %v180, 48
    %v702 = vpop.permute.xlu0 %701
    %703 = vrot.lane.b32.xlu0 %v185, 48
    %v704 = vpop.permute.xlu0 %703
    %v708 = vsel %vm278, %v699, 0
    %v711 = vsel %vm278, %v700, 0
    %713 = vmatprep.subr.mxu0 0.0
    %714 = vmatpush1.msra.mxu0 %v702
    %715 = vmatprep.subr.mxu0 0.0
    %716 = vmatpush1.msra.mxu0 %v704
    %717 = vmatprep.subr.mxu0 0.0
    %718 = vmatpush1.msra.mxu0 0.0
    %719 = vmatprep.subr.mxu0 0.0
    %720 = vmatpush1.msra.mxu0 0.0
    %721 = vmatprep.subr.mxu0 0.0
    %722 = vmatpush1.msra.mxu0 0.0
    %723 = vmatprep.subr.mxu0 0.0
    %724 = vmatpush1.msra.mxu0 0.0
    %725 = vmatprep.subr.mxu0 0.0
    %726 = vmatpush1.msra.mxu0 0.0
    %727 = vmatprep.subr.mxu0 0.0
    %728 = vmatpush1.msra.mxu0 0.0
    %729 = vmatprep.subr.mxu0 0.0
    %730 = vmatpush1.msra.mxu0 0.0
    %731 = vmatprep.subr.mxu0 0.0
    %732 = vmatpush1.msra.mxu0 0.0
    %733 = vmatprep.subr.mxu0 0.0
    %734 = vmatpush1.msra.mxu0 0.0
    %735 = vmatprep.subr.mxu0 0.0
    %736 = vmatpush1.msra.mxu0 0.0
    %737 = vmatprep.subr.mxu0 0.0
    %738 = vmatpush1.msra.mxu0 0.0
    %739 = vmatprep.subr.mxu0 0.0
    %740 = vmatpush1.msra.mxu0 0.0
    %741 = vmatprep.subr.mxu0 0.0
    %742 = vmatpush1.msra.mxu0 0.0
    %743 = vmatprep.subr.mxu0 0.0
    %744 = vmatpush1.msra.mxu0 0.0
    %745 = vmatprep.subr.mxu0 0.0
    %746 = vmatpush1.msra.mxu0 0.0
    %747 = vmatprep.subr.mxu0 0.0
    %748 = vmatpush1.msra.mxu0 0.0
    %749 = vmatprep.subr.mxu0 0.0
    %750 = vmatpush1.msra.mxu0 0.0
    %751 = vmatprep.subr.mxu0 0.0
    %752 = vmatpush1.msra.mxu0 0.0
    %753 = vmatprep.subr.mxu0 0.0
    %754 = vmatpush1.msra.mxu0 0.0
    %755 = vmatprep.subr.mxu0 0.0
    %756 = vmatpush1.msra.mxu0 0.0
    %757 = vmatprep.subr.mxu0 0.0
    %758 = vmatpush1.msra.mxu0 0.0
    %759 = vmatprep.subr.mxu0 0.0
    %760 = vmatpush1.msra.mxu0 0.0
    %761 = vmatprep.subr.mxu0 0.0
    %762 = vmatpush1.msra.mxu0 0.0
    %763 = vmatprep.subr.mxu0 0.0
    %764 = vmatpush1.msra.mxu0 0.0
    %765 = vmatprep.subr.mxu0 0.0
    %766 = vmatpush1.msra.mxu0 0.0
    %767 = vmatprep.subr.mxu0 0.0
    %768 = vmatpush1.msra.mxu0 0.0
    %769 = vmatprep.subr.mxu0 0.0
    %770 = vmatpush1.msra.mxu0 0.0
    %771 = vmatprep.subr.mxu0 0.0
    %772 = vmatpush1.msra.mxu0 0.0
    %773 = vmatprep.subr.mxu0 0.0
    %774 = vmatpush1.msra.mxu0 0.0
    %775 = vmatprep.subr.mxu0 0.0
    %776 = vmatpush1.msra.mxu0 0.0
    %777 = vmatprep.mubr.f32.mxu0 0.0
    %778 = vmatmul.mubr.f32.gmra.mrb[0].mxu0 %v708
    %v779 = vpop.f32.mrb[0].mxu0
    %v780 = vadd.f32 0.0, %v779
    %v781 = vpop.f32.mrb[0].mxu0
    %782 = vmatprep.mubr.f32.mxu0 0.0
    %783 = vmatmul.mubr.f32.gmra.mrb[0].mxu0 %v711
    %v784 = vpop.f32.mrb[0].mxu0
    %v785 = vadd.f32 0.0, %v784
    %v786 = vpop.f32.mrb[0].mxu0
    %787 = vdwg.mxu0
    %788 = vrot.lane.b32.xlu0 %v180, 104
    %v789 = vpop.permute.xlu0 %788
    %790 = vrot.lane.b32.xlu0 %v185, 104
    %v791 = vpop.permute.xlu0 %790
    %792 = vrot.lane.b32.xlu0 %v180, 72
    %v793 = vpop.permute.xlu0 %792
    %794 = vrot.lane.b32.xlu0 %v185, 72
    %v795 = vpop.permute.xlu0 %794
    %v796 = vsel %vm194, %v789, 0
    %v798 = vsel %vm194, %v791, 0
    %v800 = vsel %vm194, %v793, 0
    %v802 = vsel %vm194, %v795, 0
    %804 = vmatprep.subr.mxu0 0.0
    %805 = vmatpush1.xpose.msra.mxu0 %v800
    %806 = vmatprep.subr.mxu0 0.0
    %807 = vmatpush1.xpose.msra.mxu0 %v802
    %808 = vmatprep.subr.mxu0 0.0
    %809 = vmatpush1.xpose.msra.mxu0 0.0
    %810 = vmatprep.subr.mxu0 0.0
    %811 = vmatpush1.xpose.msra.mxu0 0.0
    %812 = vmatprep.subr.mxu0 0.0
    %813 = vmatpush1.xpose.msra.mxu0 0.0
    %814 = vmatprep.subr.mxu0 0.0
    %815 = vmatpush1.xpose.msra.mxu0 0.0
    %816 = vmatprep.subr.mxu0 0.0
    %817 = vmatpush1.xpose.msra.mxu0 0.0
    %818 = vmatprep.subr.mxu0 0.0
    %819 = vmatpush1.xpose.msra.mxu0 0.0
    %820 = vmatprep.subr.mxu0 0.0
    %821 = vmatpush1.xpose.msra.mxu0 0.0
    %822 = vmatprep.subr.mxu0 0.0
    %823 = vmatpush1.xpose.msra.mxu0 0.0
    %824 = vmatprep.subr.mxu0 0.0
    %825 = vmatpush1.xpose.msra.mxu0 0.0
    %826 = vmatprep.subr.mxu0 0.0
    %827 = vmatpush1.xpose.msra.mxu0 0.0
    %828 = vmatprep.subr.mxu0 0.0
    %829 = vmatpush1.xpose.msra.mxu0 0.0
    %830 = vmatprep.subr.mxu0 0.0
    %831 = vmatpush1.xpose.msra.mxu0 0.0
    %832 = vmatprep.subr.mxu0 0.0
    %833 = vmatpush1.xpose.msra.mxu0 0.0
    %834 = vmatprep.subr.mxu0 0.0
    %835 = vmatpush1.xpose.msra.mxu0 0.0
    %836 = vmatprep.subr.mxu0 0.0
    %837 = vmatpush1.xpose.msra.mxu0 0.0
    %838 = vmatprep.subr.mxu0 0.0
    %839 = vmatpush1.xpose.msra.mxu0 0.0
    %840 = vmatprep.subr.mxu0 0.0
    %841 = vmatpush1.xpose.msra.mxu0 0.0
    %842 = vmatprep.subr.mxu0 0.0
    %843 = vmatpush1.xpose.msra.mxu0 0.0
    %844 = vmatprep.subr.mxu0 0.0
    %845 = vmatpush1.xpose.msra.mxu0 0.0
    %846 = vmatprep.subr.mxu0 0.0
    %847 = vmatpush1.xpose.msra.mxu0 0.0
    %848 = vmatprep.subr.mxu0 0.0
    %849 = vmatpush1.xpose.msra.mxu0 0.0
    %850 = vmatprep.subr.mxu0 0.0
    %851 = vmatpush1.xpose.msra.mxu0 0.0
    %852 = vmatprep.subr.mxu0 0.0
    %853 = vmatpush1.xpose.msra.mxu0 0.0
    %854 = vmatprep.subr.mxu0 0.0
    %855 = vmatpush1.xpose.msra.mxu0 0.0
    %856 = vmatprep.subr.mxu0 0.0
    %857 = vmatpush1.xpose.msra.mxu0 0.0
    %858 = vmatprep.subr.mxu0 0.0
    %859 = vmatpush1.xpose.msra.mxu0 0.0
    %860 = vmatprep.subr.mxu0 0.0
    %861 = vmatpush1.xpose.msra.mxu0 0.0
    %862 = vmatprep.subr.mxu0 0.0
    %863 = vmatpush1.xpose.msra.mxu0 0.0
    %864 = vmatprep.subr.mxu0 0.0
    %865 = vmatpush1.xpose.msra.mxu0 0.0
    %866 = vmatprep.subr.mxu0 0.0
    %867 = vmatpush1.xpose.msra.mxu0 0.0
    %868 = vmatprep.mubr.f32.mxu0 0.0
    %869 = vmatmul.mubr.f32.gmra.mrb[0].mxu0 %v796
    %v870 = vpop.f32.mrb[0].mxu0
    %v871 = vadd.f32 %v94, %v870
    %v872 = vpop.f32.mrb[0].mxu0
    %873 = vmatprep.mubr.f32.mxu0 0.0
    %874 = vmatmul.mubr.f32.gmra.mrb[0].mxu0 %v798
    %v875 = vpop.f32.mrb[0].mxu0
    %v876 = vadd.f32 %v95, %v875
    %v877 = vpop.f32.mrb[0].mxu0
    %878 = vdwg.mxu0
    %v879 = vsel %vm278, %v871, -inf
    %880 = vmax.xlane.f32.xlu0 %v879
    %v881 = vpop.xlane.xlu0 %880
    %v882 = vsel %vm278, %v876, -inf
    %883 = vmax.xlane.f32.xlu0 %v882
    %v884 = vpop.xlane.xlu0 %883
    %v885 = vsub.f32 %v871, %v881
    %v886 = vsub.f32 %v876, %v884
    %v887 = vmul.f32 %v885, 1.442695
    %v888 = vpow.pop %v887
    %v889 = vmul.f32 %v886, 1.442695
    %v890 = vpow.pop %v889
    %v891 = vsel %vm278, %v888, 0.0
    %892 = vadd.xlane.f32.xlu0 %v891
    %v893 = vpop.xlane.xlu0 %892
    %v894 = vsel %vm278, %v890, 0.0
    %895 = vadd.xlane.f32.xlu0 %v894
    %v896 = vpop.xlane.xlu0 %895
    %v897 = vrcp.pop %v893
    %v898 = vrcp.pop %v896
    %v899 = vmul.f32 %v888, %v897
    %v900 = vmul.f32 %v890, %v898
    %901 = vrot.lane.b32.xlu0 %v180, 40
    %v902 = vpop.permute.xlu0 %901
    %903 = vrot.lane.b32.xlu0 %v185, 40
    %v904 = vpop.permute.xlu0 %903
    %v908 = vsel %vm278, %v899, 0
    %v911 = vsel %vm278, %v900, 0
    %913 = vmatprep.subr.mxu0 0.0
    %914 = vmatpush1.msra.mxu0 %v902
    %915 = vmatprep.subr.mxu0 0.0
    %916 = vmatpush1.msra.mxu0 %v904
    %917 = vmatprep.subr.mxu0 0.0
    %918 = vmatpush1.msra.mxu0 0.0
    %919 = vmatprep.subr.mxu0 0.0
    %920 = vmatpush1.msra.mxu0 0.0
    %921 = vmatprep.subr.mxu0 0.0
    %922 = vmatpush1.msra.mxu0 0.0
    %923 = vmatprep.subr.mxu0 0.0
    %924 = vmatpush1.msra.mxu0 0.0
    %925 = vmatprep.subr.mxu0 0.0
    %926 = vmatpush1.msra.mxu0 0.0
    %927 = vmatprep.subr.mxu0 0.0
    %928 = vmatpush1.msra.mxu0 0.0
    %929 = vmatprep.subr.mxu0 0.0
    %930 = vmatpush1.msra.mxu0 0.0
    %931 = vmatprep.subr.mxu0 0.0
    %932 = vmatpush1.msra.mxu0 0.0
    %933 = vmatprep.subr.mxu0 0.0
    %934 = vmatpush1.msra.mxu0 0.0
    %935 = vmatprep.subr.mxu0 0.0
    %936 = vmatpush1.msra.mxu0 0.0
    %937 = vmatprep.subr.mxu0 0.0
    %938 = vmatpush1.msra.mxu0 0.0
    %939 = vmatprep.subr.mxu0 0.0
    %940 = vmatpush1.msra.mxu0 0.0
    %941 = vmatprep.subr.mxu0 0.0
    %942 = vmatpush1.msra.mxu0 0.0
    %943 = vmatprep.subr.mxu0 0.0
    %944 = vmatpush1.msra.mxu0 0.0
    %945 = vmatprep.subr.mxu0 0.0
    %946 = vmatpush1.msra.mxu0 0.0
    %947 = vmatprep.subr.mxu0 0.0
    %948 = vmatpush1.msra.mxu0 0.0
    %949 = vmatprep.subr.mxu0 0.0
    %950 = vmatpush1.msra.mxu0 0.0
    %951 = vmatprep.subr.mxu0 0.0
    %952 = vmatpush1.msra.mxu0 0.0
    %953 = vmatprep.subr.mxu0 0.0
    %954 = vmatpush1.msra.mxu0 0.0
    %955 = vmatprep.subr.mxu0 0.0
    %956 = vmatpush1.msra.mxu0 0.0
    %957 = vmatprep.subr.mxu0 0.0
    %958 = vmatpush1.msra.mxu0 0.0
    %959 = vmatprep.subr.mxu0 0.0
    %960 = vmatpush1.msra.mxu0 0.0
    %961 = vmatprep.subr.mxu0 0.0
    %962 = vmatpush1.msra.mxu0 0.0
    %963 = vmatprep.subr.mxu0 0.0
    %964 = vmatpush1.msra.mxu0 0.0
    %965 = vmatprep.subr.mxu0 0.0
    %966 = vmatpush1.msra.mxu0 0.0
    %967 = vmatprep.subr.mxu0 0.0
    %968 = vmatpush1.msra.mxu0 0.0
    %969 = vmatprep.subr.mxu0 0.0
    %970 = vmatpush1.msra.mxu0 0.0
    %971 = vmatprep.subr.mxu0 0.0
    %972 = vmatpush1.msra.mxu0 0.0
    %973 = vmatprep.subr.mxu0 0.0
    %974 = vmatpush1.msra.mxu0 0.0
    %975 = vmatprep.subr.mxu0 0.0
    %976 = vmatpush1.msra.mxu0 0.0
    %977 = vmatprep.mubr.f32.mxu0 0.0
    %978 = vmatmul.mubr.f32.gmra.mrb[0].mxu0 %v908
    %v979 = vpop.f32.mrb[0].mxu0
    %v980 = vadd.f32 0.0, %v979
    %v981 = vpop.f32.mrb[0].mxu0
    %982 = vmatprep.mubr.f32.mxu0 0.0
    %983 = vmatmul.mubr.f32.gmra.mrb[0].mxu0 %v911
    %v984 = vpop.f32.mrb[0].mxu0
    %v985 = vadd.f32 0.0, %v984
    %v986 = vpop.f32.mrb[0].mxu0
    %987 = vdwg.mxu0
    %990 = vrot.lane.b32.xlu0 %v580, 8
    %v991 = vpop.permute.xlu0 %990
    %992 = vrot.lane.b32.xlu0 %v585, 8
    %v993 = vpop.permute.xlu0 %992
    %998 = vrot.lane.b32.xlu0 %v780, 16
    %v999 = vpop.permute.xlu0 %998
    %1000 = vrot.lane.b32.xlu0 %v785, 16
    %v1001 = vpop.permute.xlu0 %1000
    %1006 = vrot.lane.b32.xlu0 %v980, 24
    %v1007 = vpop.permute.xlu0 %1006
    %1008 = vrot.lane.b32.xlu0 %v985, 24
    %v1009 = vpop.permute.xlu0 %1008
    %v1012 = vsel %vm194, %v380, %v991
    %v1013 = vsel %vm194, %v385, %v993
    %v1014 = vsel %vm278, %v1012, %v999
    %v1015 = vsel %vm278, %v1013, %v1001
    %vm1016 = vcmask 195584
    %v1017 = vsel %vm1016, %v1014, %v1007
    %v1018 = vsel %vm1016, %v1015, %v1009
    %v1019 = vld [vmem:[%s9] sm:$0x3f]
    %v1020 = vld [vmem:[%s5] sm:$0xff]
    %v1021 = vld [vmem:[%s5 + $0x8] sm:$0xff]
    %v1022 = vld [vmem:[%s5 + $0x10] sm:$0xff]
    %v1023 = vld [vmem:[%s5 + $0x18] sm:$0xff]
    %v1024 = vlaneseq
    %v1025 = vshrl.u32 %v1024, 7
    %v1026 = vsub.s32 0, %v1025
    %v1027 = vrot.slane %v1019, %v1026
    %v1029 = vsel %vm54, %v1017, 0
    %v1032 = vsel %vm54, %v1018, 0
    %1034 = vmatprep.subr.mxu0 0.0
    %1035 = vmatpush1.msra.mxu0 %v1020
    %1036 = vmatprep.subr.mxu0 0.0
    %1037 = vmatpush1.msra.mxu0 %v1021
    %1038 = vmatprep.subr.mxu0 0.0
    %1039 = vmatpush1.msra.mxu0 %v1022
    %1040 = vmatprep.subr.mxu0 0.0
    %1041 = vmatpush1.msra.mxu0 %v1023
    %1042 = vmatprep.subr.mxu0 0.0
    %1043 = vmatpush1.msra.mxu0 0.0
    %1044 = vmatprep.subr.mxu0 0.0
    %1045 = vmatpush1.msra.mxu0 0.0
    %1046 = vmatprep.subr.mxu0 0.0
    %1047 = vmatpush1.msra.mxu0 0.0
    %1048 = vmatprep.subr.mxu0 0.0
    %1049 = vmatpush1.msra.mxu0 0.0
    %1050 = vmatprep.subr.mxu0 0.0
    %1051 = vmatpush1.msra.mxu0 0.0
    %1052 = vmatprep.subr.mxu0 0.0
    %1053 = vmatpush1.msra.mxu0 0.0
    %1054 = vmatprep.subr.mxu0 0.0
    %1055 = vmatpush1.msra.mxu0 0.0
    %1056 = vmatprep.subr.mxu0 0.0
    %1057 = vmatpush1.msra.mxu0 0.0
    %1058 = vmatprep.subr.mxu0 0.0
    %1059 = vmatpush1.msra.mxu0 0.0
    %1060 = vmatprep.subr.mxu0 0.0
    %1061 = vmatpush1.msra.mxu0 0.0
    %1062 = vmatprep.subr.mxu0 0.0
    %1063 = vmatpush1.msra.mxu0 0.0
    %1064 = vmatprep.subr.mxu0 0.0
    %1065 = vmatpush1.msra.mxu0 0.0
    %1066 = vmatprep.subr.mxu0 0.0
    %1067 = vmatpush1.msra.mxu0 0.0
    %1068 = vmatprep.subr.mxu0 0.0
    %1069 = vmatpush1.msra.mxu0 0.0
    %1070 = vmatprep.subr.mxu0 0.0
    %1071 = vmatpush1.msra.mxu0 0.0
    %1072 = vmatprep.subr.mxu0 0.0
    %1073 = vmatpush1.msra.mxu0 0.0
    %1074 = vmatprep.subr.mxu0 0.0
    %1075 = vmatpush1.msra.mxu0 0.0
    %1076 = vmatprep.subr.mxu0 0.0
    %1077 = vmatpush1.msra.mxu0 0.0
    %1078 = vmatprep.subr.mxu0 0.0
    %1079 = vmatpush1.msra.mxu0 0.0
    %1080 = vmatprep.subr.mxu0 0.0
    %1081 = vmatpush1.msra.mxu0 0.0
    %1082 = vmatprep.subr.mxu0 0.0
    %1083 = vmatpush1.msra.mxu0 0.0
    %1084 = vmatprep.subr.mxu0 0.0
    %1085 = vmatpush1.msra.mxu0 0.0
    %1086 = vmatprep.subr.mxu0 0.0
    %1087 = vmatpush1.msra.mxu0 0.0
    %1088 = vmatprep.subr.mxu0 0.0
    %1089 = vmatpush1.msra.mxu0 0.0
    %1090 = vmatprep.subr.mxu0 0.0
    %1091 = vmatpush1.msra.mxu0 0.0
    %1092 = vmatprep.subr.mxu0 0.0
    %1093 = vmatpush1.msra.mxu0 0.0
    %1094 = vmatprep.subr.mxu0 0.0
    %1095 = vmatpush1.msra.mxu0 0.0
    %1096 = vmatprep.subr.mxu0 0.0
    %1097 = vmatpush1.msra.mxu0 0.0
    %1098 = vmatprep.mubr.f32.mxu0 0.0
    %1099 = vmatmul.mubr.f32.gmra.mrb[0].mxu0 %v1029
    %v1100 = vpop.f32.mrb[0].mxu0
    %v1101 = vadd.f32 %v1027, %v1100
    %v1102 = vpop.f32.mrb[0].mxu0
    %1103 = vmatprep.mubr.f32.mxu0 0.0
    %1104 = vmatmul.mubr.f32.gmra.mrb[0].mxu0 %v1032
    %v1105 = vpop.f32.mrb[0].mxu0
    %v1106 = vadd.f32 %v1027, %v1105
    %v1107 = vpop.f32.mrb[0].mxu0
    %1108 = vdwg.mxu0
    %v1109 = vadd.f32 %v92, %v1101
    %v1110 = vadd.f32 %v93, %v1106
    %v1111 = vsel %vm54, %v1109, 0.0
    %1112 = vadd.xlane.f32.xlu0 %v1111
    %v1113 = vpop.xlane.xlu0 %1112
    %v1114 = vsel %vm54, %v1110, 0.0
    %1115 = vadd.xlane.f32.xlu0 %v1114
    %v1116 = vpop.xlane.xlu0 %1115
    %v1117 = vmul.f32 %v1113, %v61
    %v1118 = vmul.f32 %v1116, %v61
    %v1119 = vsub.f32 %v1109, %v1117
    %v1120 = vsub.f32 %v1110, %v1118
    %v1121 = vmul.f32 %v1119, %v1119
    %v1122 = vmul.f32 %v1120, %v1120
    %v1123 = vsel %vm54, %v1121, 0.0
    %1124 = vadd.xlane.f32.xlu0 %v1123
    %v1125 = vpop.xlane.xlu0 %1124
    %v1126 = vsel %vm54, %v1122, 0.0
    %1127 = vadd.xlane.f32.xlu0 %v1126
    %v1128 = vpop.xlane.xlu0 %1127
    %v1129 = vmul.f32 %v1125, %v61
    %v1130 = vmul.f32 %v1128, %v61
    %v1131 = vadd.f32 %v1129, 1e-12
    %v1132 = vadd.f32 %v1130, 1e-12
    %v1133 = vrsqrt.pop %v1131
    %v1134 = vrsqrt.pop %v1132
    %v1135 = vmul.f32 %v1119, %v1133
    %v1136 = vmul.f32 %v1120, %v1134
    %v1137 = vlaneseq
    %v1138 = vshrl.u32 %v1137, 7
    %v1139 = vsub.s32 1, %v1138
    %v1140 = vrot.slane %v1019, %v1139
    %v1141 = vmul.f32 %v1135, %v1140
    %v1142 = vmul.f32 %v1136, %v1140
    %v1143 = vlaneseq
    %v1144 = vshrl.u32 %v1143, 7
    %v1145 = vsub.s32 2, %v1144
    %v1146 = vrot.slane %v1019, %v1145
    %v1147 = vadd.f32 %v1141, %v1146
    %v1148 = vadd.f32 %v1142, %v1146
    %v1149 = vld [vmem:[%s6] sm:$0xff]
    %v1150 = vld [vmem:[%s6 + $0x8] sm:$0xff]
    %v1151 = vld [vmem:[%s6 + $0x10] sm:$0xff]
    %v1152 = vld [vmem:[%s6 + $0x18] sm:$0xff]
    %v1153 = vld [vmem:[%s7] sm:$0x1]
    %v1155 = vlaneseq
    %v1156 = vshrl.u32 %v1155, 7
    %v1157 = vsub.s32 0, %v1156
    %v1158 = vrot.slane %v1153, %v1157
    %v1161 = vsel %vm54, %v1147, 0
    %v1164 = vsel %vm54, %v1148, 0
    %1166 = vmatprep.subr.mxu0 0.0
    %1167 = vmatpush1.msra.mxu0 %v1149
    %1168 = vmatprep.subr.mxu0 0.0
    %1169 = vmatpush1.msra.mxu0 %v1150
    %1170 = vmatprep.subr.mxu0 0.0
    %1171 = vmatpush1.msra.mxu0 %v1151
    %1172 = vmatprep.subr.mxu0 0.0
    %1173 = vmatpush1.msra.mxu0 %v1152
    %1174 = vmatprep.subr.mxu0 0.0
    %1175 = vmatpush1.msra.mxu0 0.0
    %1176 = vmatprep.subr.mxu0 0.0
    %1177 = vmatpush1.msra.mxu0 0.0
    %1178 = vmatprep.subr.mxu0 0.0
    %1179 = vmatpush1.msra.mxu0 0.0
    %1180 = vmatprep.subr.mxu0 0.0
    %1181 = vmatpush1.msra.mxu0 0.0
    %1182 = vmatprep.subr.mxu0 0.0
    %1183 = vmatpush1.msra.mxu0 0.0
    %1184 = vmatprep.subr.mxu0 0.0
    %1185 = vmatpush1.msra.mxu0 0.0
    %1186 = vmatprep.subr.mxu0 0.0
    %1187 = vmatpush1.msra.mxu0 0.0
    %1188 = vmatprep.subr.mxu0 0.0
    %1189 = vmatpush1.msra.mxu0 0.0
    %1190 = vmatprep.subr.mxu0 0.0
    %1191 = vmatpush1.msra.mxu0 0.0
    %1192 = vmatprep.subr.mxu0 0.0
    %1193 = vmatpush1.msra.mxu0 0.0
    %1194 = vmatprep.subr.mxu0 0.0
    %1195 = vmatpush1.msra.mxu0 0.0
    %1196 = vmatprep.subr.mxu0 0.0
    %1197 = vmatpush1.msra.mxu0 0.0
    %1198 = vmatprep.subr.mxu0 0.0
    %1199 = vmatpush1.msra.mxu0 0.0
    %1200 = vmatprep.subr.mxu0 0.0
    %1201 = vmatpush1.msra.mxu0 0.0
    %1202 = vmatprep.subr.mxu0 0.0
    %1203 = vmatpush1.msra.mxu0 0.0
    %1204 = vmatprep.subr.mxu0 0.0
    %1205 = vmatpush1.msra.mxu0 0.0
    %1206 = vmatprep.subr.mxu0 0.0
    %1207 = vmatpush1.msra.mxu0 0.0
    %1208 = vmatprep.subr.mxu0 0.0
    %1209 = vmatpush1.msra.mxu0 0.0
    %1210 = vmatprep.subr.mxu0 0.0
    %1211 = vmatpush1.msra.mxu0 0.0
    %1212 = vmatprep.subr.mxu0 0.0
    %1213 = vmatpush1.msra.mxu0 0.0
    %1214 = vmatprep.subr.mxu0 0.0
    %1215 = vmatpush1.msra.mxu0 0.0
    %1216 = vmatprep.subr.mxu0 0.0
    %1217 = vmatpush1.msra.mxu0 0.0
    %1218 = vmatprep.subr.mxu0 0.0
    %1219 = vmatpush1.msra.mxu0 0.0
    %1220 = vmatprep.subr.mxu0 0.0
    %1221 = vmatpush1.msra.mxu0 0.0
    %1222 = vmatprep.subr.mxu0 0.0
    %1223 = vmatpush1.msra.mxu0 0.0
    %1224 = vmatprep.subr.mxu0 0.0
    %1225 = vmatpush1.msra.mxu0 0.0
    %1226 = vmatprep.subr.mxu0 0.0
    %1227 = vmatpush1.msra.mxu0 0.0
    %1228 = vmatprep.subr.mxu0 0.0
    %1229 = vmatpush1.msra.mxu0 0.0
    %1230 = vmatprep.mubr.f32.mxu0 0.0
    %1231 = vmatmul.mubr.f32.gmra.mrb[0].mxu0 %v1161
    %v1232 = vpop.f32.mrb[0].mxu0
    %v1233 = vadd.f32 %v1158, %v1232
    %v1234 = vpop.f32.mrb[0].mxu0
    %1235 = vmatprep.mubr.f32.mxu0 0.0
    %1236 = vmatmul.mubr.f32.gmra.mrb[0].mxu0 %v1164
    %v1237 = vpop.f32.mrb[0].mxu0
    %v1238 = vadd.f32 %v1158, %v1237
    %v1239 = vpop.f32.mrb[0].mxu0
    %1240 = vdwg.mxu0
    %v1241 = vmul.f32 %v1233, 0.5
    %v1242 = vmul.f32 %v1238, 0.5
    %v1243 = vmul.f32 %v1233, 0.044715
    %v1244 = vmul.f32 %v1238, 0.044715
    %v1245 = vmul.f32 %v1243, %v1233
    %v1246 = vmul.f32 %v1244, %v1238
    %v1247 = vmul.f32 %v1245, %v1233
    %v1248 = vmul.f32 %v1246, %v1238
    %v1249 = vadd.f32 %v1233, %v1247
    %v1250 = vadd.f32 %v1238, %v1248
    %v1251 = vmul.f32 %v1249, 0.7978846
    %v1252 = vmul.f32 %v1250, 0.7978846
    %v1253 = vtanh.pop %v1251
    %v1254 = vtanh.pop %v1252
    %v1255 = vadd.f32 %v1253, 1.0
    %v1256 = vadd.f32 %v1254, 1.0
    %v1257 = vmul.f32 %v1241, %v1255
    %v1258 = vmul.f32 %v1242, %v1256
    %v1259 = vld [vmem:[%s8] sm:$0xff]
    %v1260 = vld [vmem:[%s8 + $0x8] sm:$0xff]
    %v1261 = vld [vmem:[%s8 + $0x10] sm:$0xff]
    %v1262 = vld [vmem:[%s8 + $0x18] sm:$0xff]
    %v1263 = vld [vmem:[%s8 + $0x20] sm:$0xff]
    %v1264 = vld [vmem:[%s8 + $0x28] sm:$0xff]
    %v1265 = vld [vmem:[%s8 + $0x30] sm:$0xff]
    %v1266 = vld [vmem:[%s8 + $0x38] sm:$0xff]
    %v1267 = vlaneseq
    %v1268 = vshrl.u32 %v1267, 7
    %v1269 = vsub.s32 3, %v1268
    %v1270 = vrot.slane %v1019, %v1269
    %vm1271 = vcmask 523264
    %v1273 = vsel %vm1271, %v1257, 0
    %v1276 = vsel %vm1271, %v1258, 0
    %1278 = vmatprep.subr.mxu0 0.0
    %1279 = vmatpush1.msra.mxu0 %v1259
    %1280 = vmatprep.subr.mxu0 0.0
    %1281 = vmatpush1.msra.mxu0 %v1260
    %1282 = vmatprep.subr.mxu0 0.0
    %1283 = vmatpush1.msra.mxu0 %v1261
    %1284 = vmatprep.subr.mxu0 0.0
    %1285 = vmatpush1.msra.mxu0 %v1262
    %1286 = vmatprep.subr.mxu0 0.0
    %1287 = vmatpush1.msra.mxu0 %v1263
    %1288 = vmatprep.subr.mxu0 0.0
    %1289 = vmatpush1.msra.mxu0 %v1264
    %1290 = vmatprep.subr.mxu0 0.0
    %1291 = vmatpush1.msra.mxu0 %v1265
    %1292 = vmatprep.subr.mxu0 0.0
    %1293 = vmatpush1.msra.mxu0 %v1266
    %1294 = vmatprep.subr.mxu0 0.0
    %1295 = vmatpush1.msra.mxu0 0.0
    %1296 = vmatprep.subr.mxu0 0.0
    %1297 = vmatpush1.msra.mxu0 0.0
    %1298 = vmatprep.subr.mxu0 0.0
    %1299 = vmatpush1.msra.mxu0 0.0
    %1300 = vmatprep.subr.mxu0 0.0
    %1301 = vmatpush1.msra.mxu0 0.0
    %1302 = vmatprep.subr.mxu0 0.0
    %1303 = vmatpush1.msra.mxu0 0.0
    %1304 = vmatprep.subr.mxu0 0.0
    %1305 = vmatpush1.msra.mxu0 0.0
    %1306 = vmatprep.subr.mxu0 0.0
    %1307 = vmatpush1.msra.mxu0 0.0
    %1308 = vmatprep.subr.mxu0 0.0
    %1309 = vmatpush1.msra.mxu0 0.0
    %1310 = vmatprep.subr.mxu0 0.0
    %1311 = vmatpush1.msra.mxu0 0.0
    %1312 = vmatprep.subr.mxu0 0.0
    %1313 = vmatpush1.msra.mxu0 0.0
    %1314 = vmatprep.subr.mxu0 0.0
    %1315 = vmatpush1.msra.mxu0 0.0
    %1316 = vmatprep.subr.mxu0 0.0
    %1317 = vmatpush1.msra.mxu0 0.0
    %1318 = vmatprep.subr.mxu0 0.0
    %1319 = vmatpush1.msra.mxu0 0.0
    %1320 = vmatprep.subr.mxu0 0.0
    %1321 = vmatpush1.msra.mxu0 0.0
    %1322 = vmatprep.subr.mxu0 0.0
    %1323 = vmatpush1.msra.mxu0 0.0
    %1324 = vmatprep.subr.mxu0 0.0
    %1325 = vmatpush1.msra.mxu0 0.0
    %1326 = vmatprep.subr.mxu0 0.0
    %1327 = vmatpush1.msra.mxu0 0.0
    %1328 = vmatprep.subr.mxu0 0.0
    %1329 = vmatpush1.msra.mxu0 0.0
    %1330 = vmatprep.subr.mxu0 0.0
    %1331 = vmatpush1.msra.mxu0 0.0
    %1332 = vmatprep.subr.mxu0 0.0
    %1333 = vmatpush1.msra.mxu0 0.0
    %1334 = vmatprep.subr.mxu0 0.0
    %1335 = vmatpush1.msra.mxu0 0.0
    %1336 = vmatprep.subr.mxu0 0.0
    %1337 = vmatpush1.msra.mxu0 0.0
    %1338 = vmatprep.subr.mxu0 0.0
    %1339 = vmatpush1.msra.mxu0 0.0
    %1340 = vmatprep.subr.mxu0 0.0
    %1341 = vmatpush1.msra.mxu0 0.0
    %1342 = vmatprep.mubr.f32.mxu0 0.0
    %1343 = vmatmul.mubr.f32.gmra.mrb[0].mxu0 %v1273
    %v1344 = vpop.f32.mrb[0].mxu0
    %v1345 = vadd.f32 %v1270, %v1344
    %v1346 = vpop.f32.mrb[0].mxu0
    %1347 = vmatprep.mubr.f32.mxu0 0.0
    %1348 = vmatmul.mubr.f32.gmra.mrb[0].mxu0 %v1276
    %v1349 = vpop.f32.mrb[0].mxu0
    %v1350 = vadd.f32 %v1270, %v1349
    %v1351 = vpop.f32.mrb[0].mxu0
    %1352 = vdwg.mxu0
    %v1353 = vadd.f32 %v1147, %v1345
    %v1354 = vadd.f32 %v1148, %v1350
    %v1355 = vsel %vm54, %v1353, 0.0
    %1356 = vadd.xlane.f32.xlu0 %v1355
    %v1357 = vpop.xlane.xlu0 %1356
    %v1358 = vsel %vm54, %v1354, 0.0
    %1359 = vadd.xlane.f32.xlu0 %v1358
    %v1360 = vpop.xlane.xlu0 %1359
    %v1361 = vmul.f32 %v1357, %v61
    %v1362 = vmul.f32 %v1360, %v61
    %v1363 = vsub.f32 %v1353, %v1361
    %v1364 = vsub.f32 %v1354, %v1362
    %v1365 = vmul.f32 %v1363, %v1363
    %v1366 = vmul.f32 %v1364, %v1364
    %v1367 = vsel %vm54, %v1365, 0.0
    %1368 = vadd.xlane.f32.xlu0 %v1367
    %v1369 = vpop.xlane.xlu0 %1368
    %v1370 = vsel %vm54, %v1366, 0.0
    %1371 = vadd.xlane.f32.xlu0 %v1370
    %v1372 = vpop.xlane.xlu0 %1371
    %v1373 = vmul.f32 %v1369, %v61
    %v1374 = vmul.f32 %v1372, %v61
    %v1375 = vadd.f32 %v1373, 1e-12
    %v1376 = vadd.f32 %v1374, 1e-12
    %v1377 = vrsqrt.pop %v1375
    %v1378 = vrsqrt.pop %v1376
    %v1379 = vmul.f32 %v1363, %v1377
    %v1380 = vmul.f32 %v1364, %v1378
    %v1381 = vlaneseq
    %v1382 = vshrl.u32 %v1381, 7
    %v1383 = vsub.s32 4, %v1382
    %v1384 = vrot.slane %v1019, %v1383
    %v1385 = vmul.f32 %v1379, %v1384
    %v1386 = vmul.f32 %v1380, %v1384
    %v1387 = vlaneseq
    %v1388 = vshrl.u32 %v1387, 7
    %v1389 = vsub.s32 5, %v1388
    %v1390 = vrot.slane %v1019, %v1389
    %v1391 = vadd.f32 %v1385, %v1390
    %v1392 = vadd.f32 %v1386, %v1390
    %s1393 = scalar_lea.vmem %s3, 32
    %v1394 = vld [vmem:[%s1393] sm:$0xff]
    %v1395 = vld [vmem:[%s1393 + $0x8] sm:$0xff]
    %v1396 = vld [vmem:[%s1393 + $0x10] sm:$0xff]
    %v1397 = vld [vmem:[%s1393 + $0x18] sm:$0xff]
    %s1398 = scalar_lea.vmem %s4, 1
    %v1399 = vld [vmem:[%s1398] sm:$0x1]
    %v1401 = vlaneseq
    %v1402 = vshrl.u32 %v1401, 7
    %v1403 = vsub.s32 0, %v1402
    %v1404 = vrot.slane %v1399, %v1403
    %v1407 = vsel %vm54, %v1391, 0
    %v1410 = vsel %vm54, %v1392, 0
    %1412 = vmatprep.subr.mxu0 0.0
    %1413 = vmatpush1.msra.mxu0 %v1394
    %1414 = vmatprep.subr.mxu0 0.0
    %1415 = vmatpush1.msra.mxu0 %v1395
    %1416 = vmatprep.subr.mxu0 0.0
    %1417 = vmatpush1.msra.mxu0 %v1396
    %1418 = vmatprep.subr.mxu0 0.0
    %1419 = vmatpush1.msra.mxu0 %v1397
    %1420 = vmatprep.subr.mxu0 0.0
    %1421 = vmatpush1.msra.mxu0 0.0
    %1422 = vmatprep.subr.mxu0 0.0
    %1423 = vmatpush1.msra.mxu0 0.0
    %1424 = vmatprep.subr.mxu0 0.0
    %1425 = vmatpush1.msra.mxu0 0.0
    %1426 = vmatprep.subr.mxu0 0.0
    %1427 = vmatpush1.msra.mxu0 0.0
    %1428 = vmatprep.subr.mxu0 0.0
    %1429 = vmatpush1.msra.mxu0 0.0
    %1430 = vmatprep.subr.mxu0 0.0
    %1431 = vmatpush1.msra.mxu0 0.0
    %1432 = vmatprep.subr.mxu0 0.0
    %1433 = vmatpush1.msra.mxu0 0.0
    %1434 = vmatprep.subr.mxu0 0.0
    %1435 = vmatpush1.msra.mxu0 0.0
    %1436 = vmatprep.subr.mxu0 0.0
    %1437 = vmatpush1.msra.mxu0 0.0
    %1438 = vmatprep.subr.mxu0 0.0
    %1439 = vmatpush1.msra.mxu0 0.0
    %1440 = vmatprep.subr.mxu0 0.0
    %1441 = vmatpush1.msra.mxu0 0.0
    %1442 = vmatprep.subr.mxu0 0.0
    %1443 = vmatpush1.msra.mxu0 0.0
    %1444 = vmatprep.subr.mxu0 0.0
    %1445 = vmatpush1.msra.mxu0 0.0
    %1446 = vmatprep.subr.mxu0 0.0
    %1447 = vmatpush1.msra.mxu0 0.0
    %1448 = vmatprep.subr.mxu0 0.0
    %1449 = vmatpush1.msra.mxu0 0.0
    %1450 = vmatprep.subr.mxu0 0.0
    %1451 = vmatpush1.msra.mxu0 0.0
    %1452 = vmatprep.subr.mxu0 0.0
    %1453 = vmatpush1.msra.mxu0 0.0
    %1454 = vmatprep.subr.mxu0 0.0
    %1455 = vmatpush1.msra.mxu0 0.0
    %1456 = vmatprep.subr.mxu0 0.0
    %1457 = vmatpush1.msra.mxu0 0.0
    %1458 = vmatprep.subr.mxu0 0.0
    %1459 = vmatpush1.msra.mxu0 0.0
    %1460 = vmatprep.subr.mxu0 0.0
    %1461 = vmatpush1.msra.mxu0 0.0
    %1462 = vmatprep.subr.mxu0 0.0
    %1463 = vmatpush1.msra.mxu0 0.0
    %1464 = vmatprep.subr.mxu0 0.0
    %1465 = vmatpush1.msra.mxu0 0.0
    %1466 = vmatprep.subr.mxu0 0.0
    %1467 = vmatpush1.msra.mxu0 0.0
    %1468 = vmatprep.subr.mxu0 0.0
    %1469 = vmatpush1.msra.mxu0 0.0
    %1470 = vmatprep.subr.mxu0 0.0
    %1471 = vmatpush1.msra.mxu0 0.0
    %1472 = vmatprep.subr.mxu0 0.0
    %1473 = vmatpush1.msra.mxu0 0.0
    %1474 = vmatprep.subr.mxu0 0.0
    %1475 = vmatpush1.msra.mxu0 0.0
    %1476 = vmatprep.mubr.f32.mxu0 0.0
    %1477 = vmatmul.mubr.f32.gmra.mrb[0].mxu0 %v1407
    %v1478 = vpop.f32.mrb[0].mxu0
    %v1479 = vadd.f32 %v1404, %v1478
    %v1480 = vpop.f32.mrb[0].mxu0
    %1481 = vmatprep.mubr.f32.mxu0 0.0
    %1482 = vmatmul.mubr.f32.gmra.mrb[0].mxu0 %v1410
    %v1483 = vpop.f32.mrb[0].mxu0
    %v1484 = vadd.f32 %v1404, %v1483
    %v1485 = vpop.f32.mrb[0].mxu0
    %1486 = vdwg.mxu0
    %1489 = vrot.lane.b32.xlu0 %v1479, 96
    %v1490 = vpop.permute.xlu0 %1489
    %1491 = vrot.lane.b32.xlu0 %v1484, 96
    %v1492 = vpop.permute.xlu0 %1491
    %v1493 = vsel %vm194, %v1479, 0
    %v1495 = vsel %vm194, %v1484, 0
    %v1497 = vsel %vm194, %v1490, 0
    %v1499 = vsel %vm194, %v1492, 0
    %1501 = vmatprep.subr.mxu0 0.0
    %1502 = vmatpush1.xpose.msra.mxu0 %v1497
    %1503 = vmatprep.subr.mxu0 0.0
    %1504 = vmatpush1.xpose.msra.mxu0 %v1499
    %1505 = vmatprep.subr.mxu0 0.0
    %1506 = vmatpush1.xpose.msra.mxu0 0.0
    %1507 = vmatprep.subr.mxu0 0.0
    %1508 = vmatpush1.xpose.msra.mxu0 0.0
    %1509 = vmatprep.subr.mxu0 0.0
    %1510 = vmatpush1.xpose.msra.mxu0 0.0
    %1511 = vmatprep.subr.mxu0 0.0
    %1512 = vmatpush1.xpose.msra.mxu0 0.0
    %1513 = vmatprep.subr.mxu0 0.0
    %1514 = vmatpush1.xpose.msra.mxu0 0.0
    %1515 = vmatprep.subr.mxu0 0.0
    %1516 = vmatpush1.xpose.msra.mxu0 0.0
    %1517 = vmatprep.subr.mxu0 0.0
    %1518 = vmatpush1.xpose.msra.mxu0 0.0
    %1519 = vmatprep.subr.mxu0 0.0
    %1520 = vmatpush1.xpose.msra.mxu0 0.0
    %1521 = vmatprep.subr.mxu0 0.0
    %1522 = vmatpush1.xpose.msra.mxu0 0.0
    %1523 = vmatprep.subr.mxu0 0.0
    %1524 = vmatpush1.xpose.msra.mxu0 0.0
    %1525 = vmatprep.subr.mxu0 0.0
    %1526 = vmatpush1.xpose.msra.mxu0 0.0
    %1527 = vmatprep.subr.mxu0 0.0
    %1528 = vmatpush1.xpose.msra.mxu0 0.0
    %1529 = vmatprep.subr.mxu0 0.0
    %1530 = vmatpush1.xpose.msra.mxu0 0.0
    %1531 = vmatprep.subr.mxu0 0.0
    %1532 = vmatpush1.xpose.msra.mxu0 0.0
    %1533 = vmatprep.subr.mxu0 0.0
    %1534 = vmatpush1.xpose.msra.mxu0 0.0
    %1535 = vmatprep.subr.mxu0 0.0
    %1536 = vmatpush1.xpose.msra.mxu0 0.0
    %1537 = vmatprep.subr.mxu0 0.0
    %1538 = vmatpush1.xpose.msra.mxu0 0.0
    %1539 = vmatprep.subr.mxu0 0.0
    %1540 = vmatpush1.xpose.msra.mxu0 0.0
    %1541 = vmatprep.subr.mxu0 0.0
    %1542 = vmatpush1.xpose.msra.mxu0 0.0
    %1543 = vmatprep.subr.mxu0 0.0
    %1544 = vmatpush1.xpose.msra.mxu0 0.0
    %1545 = vmatprep.subr.mxu0 0.0
    %1546 = vmatpush1.xpose.msra.mxu0 0.0
    %1547 = vmatprep.subr.mxu0 0.0
    %1548 = vmatpush1.xpose.msra.mxu0 0.0
    %1549 = vmatprep.subr.mxu0 0.0
    %1550 = vmatpush1.xpose.msra.mxu0 0.0
    %1551 = vmatprep.subr.mxu0 0.0
    %1552 = vmatpush1.xpose.msra.mxu0 0.0
    %1553 = vmatprep.subr.mxu0 0.0
    %1554 = vmatpush1.xpose.msra.mxu0 0.0
    %1555 = vmatprep.subr.mxu0 0.0
    %1556 = vmatpush1.xpose.msra.mxu0 0.0
    %1557 = vmatprep.subr.mxu0 0.0
    %1558 = vmatpush1.xpose.msra.mxu0 0.0
    %1559 = vmatprep.subr.mxu0 0.0
    %1560 = vmatpush1.xpose.msra.mxu0 0.0
    %1561 = vmatprep.subr.mxu0 0.0
    %1562 = vmatpush1.xpose.msra.mxu0 0.0
    %1563 = vmatprep.subr.mxu0 0.0
    %1564 = vmatpush1.xpose.msra.mxu0 0.0
    %1565 = vmatprep.mubr.f32.mxu0 0.0
    %1566 = vmatmul.mubr.f32.gmra.mrb[0].mxu0 %v1493
    %v1567 = vpop.f32.mrb[0].mxu0
    %v1568 = vadd.f32 %v94, %v1567
    %v1569 = vpop.f32.mrb[0].mxu0
    %1570 = vmatprep.mubr.f32.mxu0 0.0
    %1571 = vmatmul.mubr.f32.gmra.mrb[0].mxu0 %v1495
    %v1572 = vpop.f32.mrb[0].mxu0
    %v1573 = vadd.f32 %v95, %v1572
    %v1574 = vpop.f32.mrb[0].mxu0
    %1575 = vdwg.mxu0
    %v1576 = vsel %vm278, %v1568, -inf
    %1577 = vmax.xlane.f32.xlu0 %v1576
    %v1578 = vpop.xlane.xlu0 %1577
    %v1579 = vsel %vm278, %v1573, -inf
    %1580 = vmax.xlane.f32.xlu0 %v1579
    %v1581 = vpop.xlane.xlu0 %1580
    %v1582 = vsub.f32 %v1568, %v1578
    %v1583 = vsub.f32 %v1573, %v1581
    %v1584 = vmul.f32 %v1582, 1.442695
    %v1585 = vpow.pop %v1584
    %v1586 = vmul.f32 %v1583, 1.442695
    %v1587 = vpow.pop %v1586
    %v1588 = vsel %vm278, %v1585, 0.0
    %1589 = vadd.xlane.f32.xlu0 %v1588
    %v1590 = vpop.xlane.xlu0 %1589
    %v1591 = vsel %vm278, %v1587, 0.0
    %1592 = vadd.xlane.f32.xlu0 %v1591
    %v1593 = vpop.xlane.xlu0 %1592
    %v1594 = vrcp.pop %v1590
    %v1595 = vrcp.pop %v1593
    %v1596 = vmul.f32 %v1585, %v1594
    %v1597 = vmul.f32 %v1587, %v1595
    %1598 = vrot.lane.b32.xlu0 %v1479, 64
    %v1599 = vpop.permute.xlu0 %1598
    %1600 = vrot.lane.b32.xlu0 %v1484, 64
    %v1601 = vpop.permute.xlu0 %1600
    %v1605 = vsel %vm278, %v1596, 0
    %v1608 = vsel %vm278, %v1597, 0
    %1610 = vmatprep.subr.mxu0 0.0
    %1611 = vmatpush1.msra.mxu0 %v1599
    %1612 = vmatprep.subr.mxu0 0.0
    %1613 = vmatpush1.msra.mxu0 %v1601
    %1614 = vmatprep.subr.mxu0 0.0
    %1615 = vmatpush1.msra.mxu0 0.0
    %1616 = vmatprep.subr.mxu0 0.0
    %1617 = vmatpush1.msra.mxu0 0.0
    %1618 = vmatprep.subr.mxu0 0.0
    %1619 = vmatpush1.msra.mxu0 0.0
    %1620 = vmatprep.subr.mxu0 0.0
    %1621 = vmatpush1.msra.mxu0 0.0
    %1622 = vmatprep.subr.mxu0 0.0
    %1623 = vmatpush1.msra.mxu0 0.0
    %1624 = vmatprep.subr.mxu0 0.0
    %1625 = vmatpush1.msra.mxu0 0.0
    %1626 = vmatprep.subr.mxu0 0.0
    %1627 = vmatpush1.msra.mxu0 0.0
    %1628 = vmatprep.subr.mxu0 0.0
    %1629 = vmatpush1.msra.mxu0 0.0
    %1630 = vmatprep.subr.mxu0 0.0
    %1631 = vmatpush1.msra.mxu0 0.0
    %1632 = vmatprep.subr.mxu0 0.0
    %1633 = vmatpush1.msra.mxu0 0.0
    %1634 = vmatprep.subr.mxu0 0.0
    %1635 = vmatpush1.msra.mxu0 0.0
    %1636 = vmatprep.subr.mxu0 0.0
    %1637 = vmatpush1.msra.mxu0 0.0
    %1638 = vmatprep.subr.mxu0 0.0
    %1639 = vmatpush1.msra.mxu0 0.0
    %1640 = vmatprep.subr.mxu0 0.0
    %1641 = vmatpush1.msra.mxu0 0.0
    %1642 = vmatprep.subr.mxu0 0.0
    %1643 = vmatpush1.msra.mxu0 0.0
    %1644 = vmatprep.subr.mxu0 0.0
    %1645 = vmatpush1.msra.mxu0 0.0
    %1646 = vmatprep.subr.mxu0 0.0
    %1647 = vmatpush1.msra.mxu0 0.0
    %1648 = vmatprep.subr.mxu0 0.0
    %1649 = vmatpush1.msra.mxu0 0.0
    %1650 = vmatprep.subr.mxu0 0.0
    %1651 = vmatpush1.msra.mxu0 0.0
    %1652 = vmatprep.subr.mxu0 0.0
    %1653 = vmatpush1.msra.mxu0 0.0
    %1654 = vmatprep.subr.mxu0 0.0
    %1655 = vmatpush1.msra.mxu0 0.0
    %1656 = vmatprep.subr.mxu0 0.0
    %1657 = vmatpush1.msra.mxu0 0.0
    %1658 = vmatprep.subr.mxu0 0.0
    %1659 = vmatpush1.msra.mxu0 0.0
    %1660 = vmatprep.subr.mxu0 0.0
    %1661 = vmatpush1.msra.mxu0 0.0
    %1662 = vmatprep.subr.mxu0 0.0
    %1663 = vmatpush1.msra.mxu0 0.0
    %1664 = vmatprep.subr.mxu0 0.0
    %1665 = vmatpush1.msra.mxu0 0.0
    %1666 = vmatprep.subr.mxu0 0.0
    %1667 = vmatpush1.msra.mxu0 0.0
    %1668 = vmatprep.subr.mxu0 0.0
    %1669 = vmatpush1.msra.mxu0 0.0
    %1670 = vmatprep.subr.mxu0 0.0
    %1671 = vmatpush1.msra.mxu0 0.0
    %1672 = vmatprep.subr.mxu0 0.0
    %1673 = vmatpush1.msra.mxu0 0.0
    %1674 = vmatprep.mubr.f32.mxu0 0.0
    %1675 = vmatmul.mubr.f32.gmra.mrb[0].mxu0 %v1605
    %v1676 = vpop.f32.mrb[0].mxu0
    %v1677 = vadd.f32 0.0, %v1676
    %v1678 = vpop.f32.mrb[0].mxu0
    %1679 = vmatprep.mubr.f32.mxu0 0.0
    %1680 = vmatmul.mubr.f32.gmra.mrb[0].mxu0 %v1608
    %v1681 = vpop.f32.mrb[0].mxu0
    %v1682 = vadd.f32 0.0, %v1681
    %v1683 = vpop.f32.mrb[0].mxu0
    %1684 = vdwg.mxu0
    %1685 = vrot.lane.b32.xlu0 %v1479, 120
    %v1686 = vpop.permute.xlu0 %1685
    %1687 = vrot.lane.b32.xlu0 %v1484, 120
    %v1688 = vpop.permute.xlu0 %1687
    %1689 = vrot.lane.b32.xlu0 %v1479, 88
    %v1690 = vpop.permute.xlu0 %1689
    %1691 = vrot.lane.b32.xlu0 %v1484, 88
    %v1692 = vpop.permute.xlu0 %1691
    %v1693 = vsel %vm194, %v1686, 0
    %v1695 = vsel %vm194, %v1688, 0
    %v1697 = vsel %vm194, %v1690, 0
    %v1699 = vsel %vm194, %v1692, 0
    %1701 = vmatprep.subr.mxu0 0.0
    %1702 = vmatpush1.xpose.msra.mxu0 %v1697
    %1703 = vmatprep.subr.mxu0 0.0
    %1704 = vmatpush1.xpose.msra.mxu0 %v1699
    %1705 = vmatprep.subr.mxu0 0.0
    %1706 = vmatpush1.xpose.msra.mxu0 0.0
    %1707 = vmatprep.subr.mxu0 0.0
    %1708 = vmatpush1.xpose.msra.mxu0 0.0
    %1709 = vmatprep.subr.mxu0 0.0
    %1710 = vmatpush1.xpose.msra.mxu0 0.0
    %1711 = vmatprep.subr.mxu0 0.0
    %1712 = vmatpush1.xpose.msra.mxu0 0.0
    %1713 = vmatprep.subr.mxu0 0.0
    %1714 = vmatpush1.xpose.msra.mxu0 0.0
    %1715 = vmatprep.subr.mxu0 0.0
    %1716 = vmatpush1.xpose.msra.mxu0 0.0
    %1717 = vmatprep.subr.mxu0 0.0
    %1718 = vmatpush1.xpose.msra.mxu0 0.0
    %1719 = vmatprep.subr.mxu0 0.0
    %1720 = vmatpush1.xpose.msra.mxu0 0.0
    %1721 = vmatprep.subr.mxu0 0.0
    %1722 = vmatpush1.xpose.msra.mxu0 0.0
    %1723 = vmatprep.subr.mxu0 0.0
    %1724 = vmatpush1.xpose.msra.mxu0 0.0
    %1725 = vmatprep.subr.mxu0 0.0
    %1726 = vmatpush1.xpose.msra.mxu0 0.0
    %1727 = vmatprep.subr.mxu0 0.0
    %1728 = vmatpush1.xpose.msra.mxu0 0.0
    %1729 = vmatprep.subr.mxu0 0.0
    %1730 = vmatpush1.xpose.msra.mxu0 0.0
    %1731 = vmatprep.subr.mxu0 0.0
    %1732 = vmatpush1.xpose.msra.mxu0 0.0
    %1733 = vmatprep.subr.mxu0 0.0
    %1734 = vmatpush1.xpose.msra.mxu0 0.0
    %1735 = vmatprep.subr.mxu0 0.0
    %1736 = vmatpush1.xpose.msra.mxu0 0.0
    %1737 = vmatprep.subr.mxu0 0.0
    %1738 = vmatpush1.xpose.msra.mxu0 0.0
    %1739 = vmatprep.subr.mxu0 0.0
    %1740 = vmatpush1.xpose.msra.mxu0 0.0
    %1741 = vmatprep.subr.mxu0 0.0
    %1742 = vmatpush1.xpose.msra.mxu0 0.0
    %1743 = vmatprep.subr.mxu0 0.0
    %1744 = vmatpush1.xpose.msra.mxu0 0.0
    %1745 = vmatprep.subr.mxu0 0.0
    %1746 = vmatpush1.xpose.msra.mxu0 0.0
    %1747 = vmatprep.subr.mxu0 0.0
    %1748 = vmatpush1.xpose.msra.mxu0 0.0
    %1749 = vmatprep.subr.mxu0 0.0
    %1750 = vmatpush1.xpose.msra.mxu0 0.0
    %1751 = vmatprep.subr.mxu0 0.0
    %1752 = vmatpush1.xpose.msra.mxu0 0.0
    %1753 = vmatprep.subr.mxu0 0.0
    %1754 = vmatpush1.xpose.msra.mxu0 0.0
    %1755 = vmatprep.subr.mxu0 0.0
    %1756 = vmatpush1.xpose.msra.mxu0 0.0
    %1757 = vmatprep.subr.mxu0 0.0
    %1758 = vmatpush1.xpose.msra.mxu0 0.0
    %1759 = vmatprep.subr.mxu0 0.0
    %1760 = vmatpush1.xpose.msra.mxu0 0.0
    %1761 = vmatprep.subr.mxu0 0.0
    %1762 = vmatpush1.xpose.msra.mxu0 0.0
    %1763 = vmatprep.subr.mxu0 0.0
    %1764 = vmatpush1.xpose.msra.mxu0 0.0
    %1765 = vmatprep.mubr.f32.mxu0 0.0
    %1766 = vmatmul.mubr.f32.gmra.mrb[0].mxu0 %v1693
    %v1767 = vpop.f32.mrb[0].mxu0
    %v1768 = vadd.f32 %v94, %v1767
    %v1769 = vpop.f32.mrb[0].mxu0
    %1770 = vmatprep.mubr.f32.mxu0 0.0
    %1771 = vmatmul.mubr.f32.gmra.mrb[0].mxu0 %v1695
    %v1772 = vpop.f32.mrb[0].mxu0
    %v1773 = vadd.f32 %v95, %v1772
    %v1774 = vpop.f32.mrb[0].mxu0
    %1775 = vdwg.mxu0
    %v1776 = vsel %vm278, %v1768, -inf
    %1777 = vmax.xlane.f32.xlu0 %v1776
    %v1778 = vpop.xlane.xlu0 %1777
    %v1779 = vsel %vm278, %v1773, -inf
    %1780 = vmax.xlane.f32.xlu0 %v1779
    %v1781 = vpop.xlane.xlu0 %1780
    %v1782 = vsub.f32 %v1768, %v1778
    %v1783 = vsub.f32 %v1773, %v1781
    %v1784 = vmul.f32 %v1782, 1.442695
    %v1785 = vpow.pop %v1784
    %v1786 = vmul.f32 %v1783, 1.442695
    %v1787 = vpow.pop %v1786
    %v1788 = vsel %vm278, %v1785, 0.0
    %1789 = vadd.xlane.f32.xlu0 %v1788
    %v1790 = vpop.xlane.xlu0 %1789
    %v1791 = vsel %vm278, %v1787, 0.0
    %1792 = vadd.xlane.f32.xlu0 %v1791
    %v1793 = vpop.xlane.xlu0 %1792
    %v1794 = vrcp.pop %v1790
    %v1795 = vrcp.pop %v1793
    %v1796 = vmul.f32 %v1785, %v1794
    %v1797 = vmul.f32 %v1787, %v1795
    %1798 = vrot.lane.b32.xlu0 %v1479, 56
    %v1799 = vpop.permute.xlu0 %1798
    %1800 = vrot.lane.b32.xlu0 %v1484, 56
    %v1801 = vpop.permute.xlu0 %1800
    %v1805 = vsel %vm278, %v1796, 0
    %v1808 = vsel %vm278, %v1797, 0
    %1810 = vmatprep.subr.mxu0 0.0
    %1811 = vmatpush1.msra.mxu0 %v1799
    %1812 = vmatprep.subr.mxu0 0.0
    %1813 = vmatpush1.msra.mxu0 %v1801
    %1814 = vmatprep.subr.mxu0 0.0
    %1815 = vmatpush1.msra.mxu0 0.0
    %1816 = vmatprep.subr.mxu0 0.0
    %1817 = vmatpush1.msra.mxu0 0.0
    %1818 = vmatprep.subr.mxu0 0.0
    %1819 = vmatpush1.msra.mxu0 0.0
    %1820 = vmatprep.subr.mxu0 0.0
    %1821 = vmatpush1.msra.mxu0 0.0
    %1822 = vmatprep.subr.mxu0 0.0
    %1823 = vmatpush1.msra.mxu0 0.0
    %1824 = vmatprep.subr.mxu0 0.0
    %1825 = vmatpush1.msra.mxu0 0.0
    %1826 = vmatprep.subr.mxu0 0.0
    %1827 = vmatpush1.msra.mxu0 0.0
    %1828 = vmatprep.subr.mxu0 0.0
    %1829 = vmatpush1.msra.mxu0 0.0
    %1830 = vmatprep.subr.mxu0 0.0
    %1831 = vmatpush1.msra.mxu0 0.0
    %1832 = vmatprep.subr.mxu0 0.0
    %1833 = vmatpush1.msra.mxu0 0.0
    %1834 = vmatprep.subr.mxu0 0.0
    %1835 = vmatpush1.msra.mxu0 0.0
    %1836 = vmatprep.subr.mxu0 0.0
    %1837 = vmatpush1.msra.mxu0 0.0
    %1838 = vmatprep.subr.mxu0 0.0
    %1839 = vmatpush1.msra.mxu0 0.0
    %1840 = vmatprep.subr.mxu0 0.0
    %1841 = vmatpush1.msra.mxu0 0.0
    %1842 = vmatprep.subr.mxu0 0.0
    %1843 = vmatpush1.msra.mxu0 0.0
    %1844 = vmatprep.subr.mxu0 0.0
    %1845 = vmatpush1.msra.mxu0 0.0
    %1846 = vmatprep.subr.mxu0 0.0
    %1847 = vmatpush1.msra.mxu0 0.0
    %1848 = vmatprep.subr.mxu0 0.0
    %1849 = vmatpush1.msra.mxu0 0.0
    %1850 = vmatprep.subr.mxu0 0.0
    %1851 = vmatpush1.msra.mxu0 0.0
    %1852 = vmatprep.subr.mxu0 0.0
    %1853 = vmatpush1.msra.mxu0 0.0
    %1854 = vmatprep.subr.mxu0 0.0
    %1855 = vmatpush1.msra.mxu0 0.0
    %1856 = vmatprep.subr.mxu0 0.0
    %1857 = vmatpush1.msra.mxu0 0.0
    %1858 = vmatprep.subr.mxu0 0.0
    %1859 = vmatpush1.msra.mxu0 0.0
    %1860 = vmatprep.subr.mxu0 0.0
    %1861 = vmatpush1.msra.mxu0 0.0
    %1862 = vmatprep.subr.mxu0 0.0
    %1863 = vmatpush1.msra.mxu0 0.0
    %1864 = vmatprep.subr.mxu0 0.0
    %1865 = vmatpush1.msra.mxu0 0.0
    %1866 = vmatprep.subr.mxu0 0.0
    %1867 = vmatpush1.msra.mxu0 0.0
    %1868 = vmatprep.subr.mxu0 0.0
    %1869 = vmatpush1.msra.mxu0 0.0
    %1870 = vmatprep.subr.mxu0 0.0
    %1871 = vmatpush1.msra.mxu0 0.0
    %1872 = vmatprep.subr.mxu0 0.0
    %1873 = vmatpush1.msra.mxu0 0.0
    %1874 = vmatprep.mubr.f32.mxu0 0.0
    %1875 = vmatmul.mubr.f32.gmra.mrb[0].mxu0 %v1805
    %v1876 = vpop.f32.mrb[0].mxu0
    %v1877 = vadd.f32 0.0, %v1876
    %v1878 = vpop.f32.mrb[0].mxu0
    %1879 = vmatprep.mubr.f32.mxu0 0.0
    %1880 = vmatmul.mubr.f32.gmra.mrb[0].mxu0 %v1808
    %v1881 = vpop.f32.mrb[0].mxu0
    %v1882 = vadd.f32 0.0, %v1881
    %v1883 = vpop.f32.mrb[0].mxu0
    %1884 = vdwg.mxu0
    %1885 = vrot.lane.b32.xlu0 %v1479, 112
    %v1886 = vpop.permute.xlu0 %1885
    %1887 = vrot.lane.b32.xlu0 %v1484, 112
    %v1888 = vpop.permute.xlu0 %1887
    %1889 = vrot.lane.b32.xlu0 %v1479, 80
    %v1890 = vpop.permute.xlu0 %1889
    %1891 = vrot.lane.b32.xlu0 %v1484, 80
    %v1892 = vpop.permute.xlu0 %1891
    %v1893 = vsel %vm194, %v1886, 0
    %v1895 = vsel %vm194, %v1888, 0
    %v1897 = vsel %vm194, %v1890, 0
    %v1899 = vsel %vm194, %v1892, 0
    %1901 = vmatprep.subr.mxu0 0.0
    %1902 = vmatpush1.xpose.msra.mxu0 %v1897
    %1903 = vmatprep.subr.mxu0 0.0
    %1904 = vmatpush1.xpose.msra.mxu0 %v1899
    %1905 = vmatprep.subr.mxu0 0.0
    %1906 = vmatpush1.xpose.msra.mxu0 0.0
    %1907 = vmatprep.subr.mxu0 0.0
    %1908 = vmatpush1.xpose.msra.mxu0 0.0
    %1909 = vmatprep.subr.mxu0 0.0
    %1910 = vmatpush1.xpose.msra.mxu0 0.0
    %1911 = vmatprep.subr.mxu0 0.0
    %1912 = vmatpush1.xpose.msra.mxu0 0.0
    %1913 = vmatprep.subr.mxu0 0.0
    %1914 = vmatpush1.xpose.msra.mxu0 0.0
    %1915 = vmatprep.subr.mxu0 0.0
    %1916 = vmatpush1.xpose.msra.mxu0 0.0
    %1917 = vmatprep.subr.mxu0 0.0
    %1918 = vmatpush1.xpose.msra.mxu0 0.0
    %1919 = vmatprep.subr.mxu0 0.0
    %1920 = vmatpush1.xpose.msra.mxu0 0.0
    %1921 = vmatprep.subr.mxu0 0.0
    %1922 = vmatpush1.xpose.msra.mxu0 0.0
    %1923 = vmatprep.subr.mxu0 0.0
    %1924 = vmatpush1.xpose.msra.mxu0 0.0
    %1925 = vmatprep.subr.mxu0 0.0
    %1926 = vmatpush1.xpose.msra.mxu0 0.0
    %1927 = vmatprep.subr.mxu0 0.0
    %1928 = vmatpush1.xpose.msra.mxu0 0.0
    %1929 = vmatprep.subr.mxu0 0.0
    %1930 = vmatpush1.xpose.msra.mxu0 0.0
    %1931 = vmatprep.subr.mxu0 0.0
    %1932 = vmatpush1.xpose.msra.mxu0 0.0
    %1933 = vmatprep.subr.mxu0 0.0
    %1934 = vmatpush1.xpose.msra.mxu0 0.0
    %1935 = vmatprep.subr.mxu0 0.0
    %1936 = vmatpush1.xpose.msra.mxu0 0.0
    %1937 = vmatprep.subr.mxu0 0.0
    %1938 = vmatpush1.xpose.msra.mxu0 0.0
    %1939 = vmatprep.subr.mxu0 0.0
    %1940 = vmatpush1.xpose.msra.mxu0 0.0
    %1941 = vmatprep.subr.mxu0 0.0
    %1942 = vmatpush1.xpose.msra.mxu0 0.0
    %1943 = vmatprep.subr.mxu0 0.0
    %1944 = vmatpush1.xpose.msra.mxu0 0.0
    %1945 = vmatprep.subr.mxu0 0.0
    %1946 = vmatpush1.xpose.msra.mxu0 0.0
    %1947 = vmatprep.subr.mxu0 0.0
    %1948 = vmatpush1.xpose.msra.mxu0 0.0
    %1949 = vmatprep.subr.mxu0 0.0
    %1950 = vmatpush1.xpose.msra.mxu0 0.0
    %1951 = vmatprep.subr.mxu0 0.0
    %1952 = vmatpush1.xpose.msra.mxu0 0.0
    %1953 = vmatprep.subr.mxu0 0.0
    %1954 = vmatpush1.xpose.msra.mxu0 0.0
    %1955 = vmatprep.subr.mxu0 0.0
    %1956 = vmatpush1.xpose.msra.mxu0 0.0
    %1957 = vmatprep.subr.mxu0 0.0
    %1958 = vmatpush1.xpose.msra.mxu0 0.0
    %1959 = vmatprep.subr.mxu0 0.0
    %1960 = vmatpush1.xpose.msra.mxu0 0.0
    %1961 = vmatprep.subr.mxu0 0.0
    %1962 = vmatpush1.xpose.msra.mxu0 0.0
    %1963 = vmatprep.subr.mxu0 0.0
    %1964 = vmatpush1.xpose.msra.mxu0 0.0
    %1965 = vmatprep.mubr.f32.mxu0 0.0
    %1966 = vmatmul.mubr.f32.gmra.mrb[0].mxu0 %v1893
    %v1967 = vpop.f32.mrb[0].mxu0
    %v1968 = vadd.f32 %v94, %v1967
    %v1969 = vpop.f32.mrb[0].mxu0
    %1970 = vmatprep.mubr.f32.mxu0 0.0
    %1971 = vmatmul.mubr.f32.gmra.mrb[0].mxu0 %v1895
    %v1972 = vpop.f32.mrb[0].mxu0
    %v1973 = vadd.f32 %v95, %v1972
    %v1974 = vpop.f32.mrb[0].mxu0
    %1975 = vdwg.mxu0
    %v1976 = vsel %vm278, %v1968, -inf
    %1977 = vmax.xlane.f32.xlu0 %v1976
    %v1978 = vpop.xlane.xlu0 %1977
    %v1979 = vsel %vm278, %v1973, -inf
    %1980 = vmax.xlane.f32.xlu0 %v1979
    %v1981 = vpop.xlane.xlu0 %1980
    %v1982 = vsub.f32 %v1968, %v1978
    %v1983 = vsub.f32 %v1973, %v1981
    %v1984 = vmul.f32 %v1982, 1.442695
    %v1985 = vpow.pop %v1984
    %v1986 = vmul.f32 %v1983, 1.442695
    %v1987 = vpow.pop %v1986
    %v1988 = vsel %vm278, %v1985, 0.0
    %1989 = vadd.xlane.f32.xlu0 %v1988
    %v1990 = vpop.xlane.xlu0 %1989
    %v1991 = vsel %vm278, %v1987, 0.0
    %1992 = vadd.xlane.f32.xlu0 %v1991
    %v1993 = vpop.xlane.xlu0 %1992
    %v1994 = vrcp.pop %v1990
    %v1995 = vrcp.pop %v1993
    %v1996 = vmul.f32 %v1985, %v1994
    %v1997 = vmul.f32 %v1987, %v1995
    %1998 = vrot.lane.b32.xlu0 %v1479, 48
    %v1999 = vpop.permute.xlu0 %1998
    %2000 = vrot.lane.b32.xlu0 %v1484, 48
    %v2001 = vpop.permute.xlu0 %2000
    %v2005 = vsel %vm278, %v1996, 0
    %v2008 = vsel %vm278, %v1997, 0
    %2010 = vmatprep.subr.mxu0 0.0
    %2011 = vmatpush1.msra.mxu0 %v1999
    %2012 = vmatprep.subr.mxu0 0.0
    %2013 = vmatpush1.msra.mxu0 %v2001
    %2014 = vmatprep.subr.mxu0 0.0
    %2015 = vmatpush1.msra.mxu0 0.0
    %2016 = vmatprep.subr.mxu0 0.0
    %2017 = vmatpush1.msra.mxu0 0.0
    %2018 = vmatprep.subr.mxu0 0.0
    %2019 = vmatpush1.msra.mxu0 0.0
    %2020 = vmatprep.subr.mxu0 0.0
    %2021 = vmatpush1.msra.mxu0 0.0
    %2022 = vmatprep.subr.mxu0 0.0
    %2023 = vmatpush1.msra.mxu0 0.0
    %2024 = vmatprep.subr.mxu0 0.0
    %2025 = vmatpush1.msra.mxu0 0.0
    %2026 = vmatprep.subr.mxu0 0.0
    %2027 = vmatpush1.msra.mxu0 0.0
    %2028 = vmatprep.subr.mxu0 0.0
    %2029 = vmatpush1.msra.mxu0 0.0
    %2030 = vmatprep.subr.mxu0 0.0
    %2031 = vmatpush1.msra.mxu0 0.0
    %2032 = vmatprep.subr.mxu0 0.0
    %2033 = vmatpush1.msra.mxu0 0.0
    %2034 = vmatprep.subr.mxu0 0.0
    %2035 = vmatpush1.msra.mxu0 0.0
    %2036 = vmatprep.subr.mxu0 0.0
    %2037 = vmatpush1.msra.mxu0 0.0
    %2038 = vmatprep.subr.mxu0 0.0
    %2039 = vmatpush1.msra.mxu0 0.0
    %2040 = vmatprep.subr.mxu0 0.0
    %2041 = vmatpush1.msra.mxu0 0.0
    %2042 = vmatprep.subr.mxu0 0.0
    %2043 = vmatpush1.msra.mxu0 0.0
    %2044 = vmatprep.subr.mxu0 0.0
    %2045 = vmatpush1.msra.mxu0 0.0
    %2046 = vmatprep.subr.mxu0 0.0
    %2047 = vmatpush1.msra.mxu0 0.0
    %2048 = vmatprep.subr.mxu0 0.0
    %2049 = vmatpush1.msra.mxu0 0.0
    %2050 = vmatprep.subr.mxu0 0.0
    %2051 = vmatpush1.msra.mxu0 0.0
    %2052 = vmatprep.subr.mxu0 0.0
    %2053 = vmatpush1.msra.mxu0 0.0
    %2054 = vmatprep.subr.mxu0 0.0
    %2055 = vmatpush1.msra.mxu0 0.0
    %2056 = vmatprep.subr.mxu0 0.0
    %2057 = vmatpush1.msra.mxu0 0.0
    %2058 = vmatprep.subr.mxu0 0.0
    %2059 = vmatpush1.msra.mxu0 0.0
    %2060 = vmatprep.subr.mxu0 0.0
    %2061 = vmatpush1.msra.mxu0 0.0
    %2062 = vmatprep.subr.mxu0 0.0
    %2063 = vmatpush1.msra.mxu0 0.0
    %2064 = vmatprep.subr.mxu0 0.0
    %2065 = vmatpush1.msra.mxu0 0.0
    %2066 = vmatprep.subr.mxu0 0.0
    %2067 = vmatpush1.msra.mxu0 0.0
    %2068 = vmatprep.subr.mxu0 0.0
    %2069 = vmatpush1.msra.mxu0 0.0
    %2070 = vmatprep.subr.mxu0 0.0
    %2071 = vmatpush1.msra.mxu0 0.0
    %2072 = vmatprep.subr.mxu0 0.0
    %2073 = vmatpush1.msra.mxu0 0.0
    %2074 = vmatprep.mubr.f32.mxu0 0.0
    %2075 = vmatmul.mubr.f32.gmra.mrb[0].mxu0 %v2005
    %v2076 = vpop.f32.mrb[0].mxu0
    %v2077 = vadd.f32 0.0, %v2076
    %v2078 = vpop.f32.mrb[0].mxu0
    %2079 = vmatprep.mubr.f32.mxu0 0.0
    %2080 = vmatmul.mubr.f32.gmra.mrb[0].mxu0 %v2008
    %v2081 = vpop.f32.mrb[0].mxu0
    %v2082 = vadd.f32 0.0, %v2081
    %v2083 = vpop.f32.mrb[0].mxu0
    %2084 = vdwg.mxu0
    %2085 = vrot.lane.b32.xlu0 %v1479, 104
    %v2086 = vpop.permute.xlu0 %2085
    %2087 = vrot.lane.b32.xlu0 %v1484, 104
    %v2088 = vpop.permute.xlu0 %2087
    %2089 = vrot.lane.b32.xlu0 %v1479, 72
    %v2090 = vpop.permute.xlu0 %2089
    %2091 = vrot.lane.b32.xlu0 %v1484, 72
    %v2092 = vpop.permute.xlu0 %2091
    %v2093 = vsel %vm194, %v2086, 0
    %v2095 = vsel %vm194, %v2088, 0
    %v2097 = vsel %vm194, %v2090, 0
    %v2099 = vsel %vm194, %v2092, 0
    %2101 = vmatprep.subr.mxu0 0.0
    %2102 = vmatpush1.xpose.msra.mxu0 %v2097
    %2103 = vmatprep.subr.mxu0 0.0
    %2104 = vmatpush1.xpose.msra.mxu0 %v2099
    %2105 = vmatprep.subr.mxu0 0.0
    %2106 = vmatpush1.xpose.msra.mxu0 0.0
    %2107 = vmatprep.subr.mxu0 0.0
    %2108 = vmatpush1.xpose.msra.mxu0 0.0
    %2109 = vmatprep.subr.mxu0 0.0
    %2110 = vmatpush1.xpose.msra.mxu0 0.0
    %2111 = vmatprep.subr.mxu0 0.0
    %2112 = vmatpush1.xpose.msra.mxu0 0.0
    %2113 = vmatprep.subr.mxu0 0.0
    %2114 = vmatpush1.xpose.msra.mxu0 0.0
    %2115 = vmatprep.subr.mxu0 0.0
    %2116 = vmatpush1.xpose.msra.mxu0 0.0
    %2117 = vmatprep.subr.mxu0 0.0
    %2118 = vmatpush1.xpose.msra.mxu0 0.0
    %2119 = vmatprep.subr.mxu0 0.0
    %2120 = vmatpush1.xpose.msra.mxu0 0.0
    %2121 = vmatprep.subr.mxu0 0.0
    %2122 = vmatpush1.xpose.msra.mxu0 0.0
    %2123 = vmatprep.subr.mxu0 0.0
    %2124 = vmatpush1.xpose.msra.mxu0 0.0
    %2125 = vmatprep.subr.mxu0 0.0
    %2126 = vmatpush1.xpose.msra.mxu0 0.0
    %2127 = vmatprep.subr.mxu0 0.0
    %2128 = vmatpush1.xpose.msra.mxu0 0.0
    %2129 = vmatprep.subr.mxu0 0.0
    %2130 = vmatpush1.xpose.msra.mxu0 0.0
    %2131 = vmatprep.subr.mxu0 0.0
    %2132 = vmatpush1.xpose.msra.mxu0 0.0
    %2133 = vmatprep.subr.mxu0 0.0
    %2134 = vmatpush1.xpose.msra.mxu0 0.0
    %2135 = vmatprep.subr.mxu0 0.0
    %2136 = vmatpush1.xpose.msra.mxu0 0.0
    %2137 = vmatprep.subr.mxu0 0.0
    %2138 = vmatpush1.xpose.msra.mxu0 0.0
    %2139 = vmatprep.subr.mxu0 0.0
    %2140 = vmatpush1.xpose.msra.mxu0 0.0
    %2141 = vmatprep.subr.mxu0 0.0
    %2142 = vmatpush1.xpose.msra.mxu0 0.0
    %2143 = vmatprep.subr.mxu0 0.0
    %2144 = vmatpush1.xpose.msra.mxu0 0.0
    %2145 = vmatprep.subr.mxu0 0.0
    %2146 = vmatpush1.xpose.msra.mxu0 0.0
    %2147 = vmatprep.subr.mxu0 0.0
    %2148 = vmatpush1.xpose.msra.mxu0 0.0
    %2149 = vmatprep.subr.mxu0 0.0
    %2150 = vmatpush1.xpose.msra.mxu0 0.0
    %2151 = vmatprep.subr.mxu0 0.0
    %2152 = vmatpush1.xpose.msra.mxu0 0.0
    %2153 = vmatprep.subr.mxu0 0.0
    %2154 = vmatpush1.xpose.msra.mxu0 0.0
    %2155 = vmatprep.subr.mxu0 0.0
    %2156 = vmatpush1.xpose.msra.mxu0 0.0
    %2157 = vmatprep.subr.mxu0 0.0
    %2158 = vmatpush1.xpose.msra.mxu0 0.0
    %2159 = vmatprep.subr.mxu0 0.0
    %2160 = vmatpush1.xpose.msra.mxu0 0.0
    %2161 = vmatprep.subr.mxu0 0.0
    %2162 = vmatpush1.xpose.msra.mxu0 0.0
    %2163 = vmatprep.subr.mxu0 0.0
    %2164 = vmatpush1.xpose.msra.mxu0 0.0
    %2165 = vmatprep.mubr.f32.mxu0 0.0
    %2166 = vmatmul.mubr.f32.gmra.mrb[0].mxu0 %v2093
    %v2167 = vpop.f32.mrb[0].mxu0
    %v2168 = vadd.f32 %v94, %v2167
    %v2169 = vpop.f32.mrb[0].mxu0
    %2170 = vmatprep.mubr.f32.mxu0 0.0
    %2171 = vmatmul.mubr.f32.gmra.mrb[0].mxu0 %v2095
    %v2172 = vpop.f32.mrb[0].mxu0
    %v2173 = vadd.f32 %v95, %v2172
    %v2174 = vpop.f32.mrb[0].mxu0
    %2175 = vdwg.mxu0
    %v2176 = vsel %vm278, %v2168, -inf
    %2177 = vmax.xlane.f32.xlu0 %v2176
    %v2178 = vpop.xlane.xlu0 %2177
    %v2179 = vsel %vm278, %v2173, -inf
    %2180 = vmax.xlane.f32.xlu0 %v2179
    %v2181 = vpop.xlane.xlu0 %2180
    %v2182 = vsub.f32 %v2168, %v2178
    %v2183 = vsub.f32 %v2173, %v2181
    %v2184 = vmul.f32 %v2182, 1.442695
    %v2185 = vpow.pop %v2184
    %v2186 = vmul.f32 %v2183, 1.442695
    %v2187 = vpow.pop %v2186
    %v2188 = vsel %vm278, %v2185, 0.0
    %2189 = vadd.xlane.f32.xlu0 %v2188
    %v2190 = vpop.xlane.xlu0 %2189
    %v2191 = vsel %vm278, %v2187, 0.0
    %2192 = vadd.xlane.f32.xlu0 %v2191
    %v2193 = vpop.xlane.xlu0 %2192
    %v2194 = vrcp.pop %v2190
    %v2195 = vrcp.pop %v2193
    %v2196 = vmul.f32 %v2185, %v2194
    %v2197 = vmul.f32 %v2187, %v2195
    %2198 = vrot.lane.b32.xlu0 %v1479, 40
    %v2199 = vpop.permute.xlu0 %2198
    %2200 = vrot.lane.b32.xlu0 %v1484, 40
    %v2201 = vpop.permute.xlu0 %2200
    %v2205 = vsel %vm278, %v2196, 0
    %v2208 = vsel %vm278, %v2197, 0
    %2210 = vmatprep.subr.mxu0 0.0
    %2211 = vmatpush1.msra.mxu0 %v2199
    %2212 = vmatprep.subr.mxu0 0.0
    %2213 = vmatpush1.msra.mxu0 %v2201
    %2214 = vmatprep.subr.mxu0 0.0
    %2215 = vmatpush1.msra.mxu0 0.0
    %2216 = vmatprep.subr.mxu0 0.0
    %2217 = vmatpush1.msra.mxu0 0.0
    %2218 = vmatprep.subr.mxu0 0.0
    %2219 = vmatpush1.msra.mxu0 0.0
    %2220 = vmatprep.subr.mxu0 0.0
    %2221 = vmatpush1.msra.mxu0 0.0
    %2222 = vmatprep.subr.mxu0 0.0
    %2223 = vmatpush1.msra.mxu0 0.0
    %2224 = vmatprep.subr.mxu0 0.0
    %2225 = vmatpush1.msra.mxu0 0.0
    %2226 = vmatprep.subr.mxu0 0.0
    %2227 = vmatpush1.msra.mxu0 0.0
    %2228 = vmatprep.subr.mxu0 0.0
    %2229 = vmatpush1.msra.mxu0 0.0
    %2230 = vmatprep.subr.mxu0 0.0
    %2231 = vmatpush1.msra.mxu0 0.0
    %2232 = vmatprep.subr.mxu0 0.0
    %2233 = vmatpush1.msra.mxu0 0.0
    %2234 = vmatprep.subr.mxu0 0.0
    %2235 = vmatpush1.msra.mxu0 0.0
    %2236 = vmatprep.subr.mxu0 0.0
    %2237 = vmatpush1.msra.mxu0 0.0
    %2238 = vmatprep.subr.mxu0 0.0
    %2239 = vmatpush1.msra.mxu0 0.0
    %2240 = vmatprep.subr.mxu0 0.0
    %2241 = vmatpush1.msra.mxu0 0.0
    %2242 = vmatprep.subr.mxu0 0.0
    %2243 = vmatpush1.msra.mxu0 0.0
    %2244 = vmatprep.subr.mxu0 0.0
    %2245 = vmatpush1.msra.mxu0 0.0
    %2246 = vmatprep.subr.mxu0 0.0
    %2247 = vmatpush1.msra.mxu0 0.0
    %2248 = vmatprep.subr.mxu0 0.0
    %2249 = vmatpush1.msra.mxu0 0.0
    %2250 = vmatprep.subr.mxu0 0.0
    %2251 = vmatpush1.msra.mxu0 0.0
    %2252 = vmatprep.subr.mxu0 0.0
    %2253 = vmatpush1.msra.mxu0 0.0
    %2254 = vmatprep.subr.mxu0 0.0
    %2255 = vmatpush1.msra.mxu0 0.0
    %2256 = vmatprep.subr.mxu0 0.0
    %2257 = vmatpush1.msra.mxu0 0.0
    %2258 = vmatprep.subr.mxu0 0.0
    %2259 = vmatpush1.msra.mxu0 0.0
    %2260 = vmatprep.subr.mxu0 0.0
    %2261 = vmatpush1.msra.mxu0 0.0
    %2262 = vmatprep.subr.mxu0 0.0
    %2263 = vmatpush1.msra.mxu0 0.0
    %2264 = vmatprep.subr.mxu0 0.0
    %2265 = vmatpush1.msra.mxu0 0.0
    %2266 = vmatprep.subr.mxu0 0.0
    %2267 = vmatpush1.msra.mxu0 0.0
    %2268 = vmatprep.subr.mxu0 0.0
    %2269 = vmatpush1.msra.mxu0 0.0
    %2270 = vmatprep.subr.mxu0 0.0
    %2271 = vmatpush1.msra.mxu0 0.0
    %2272 = vmatprep.subr.mxu0 0.0
    %2273 = vmatpush1.msra.mxu0 0.0
    %2274 = vmatprep.mubr.f32.mxu0 0.0
    %2275 = vmatmul.mubr.f32.gmra.mrb[0].mxu0 %v2205
    %v2276 = vpop.f32.mrb[0].mxu0
    %v2277 = vadd.f32 0.0, %v2276
    %v2278 = vpop.f32.mrb[0].mxu0
    %2279 = vmatprep.mubr.f32.mxu0 0.0
    %2280 = vmatmul.mubr.f32.gmra.mrb[0].mxu0 %v2208
    %v2281 = vpop.f32.mrb[0].mxu0
    %v2282 = vadd.f32 0.0, %v2281
    %v2283 = vpop.f32.mrb[0].mxu0
    %2284 = vdwg.mxu0
    %2287 = vrot.lane.b32.xlu0 %v1877, 8
    %v2288 = vpop.permute.xlu0 %2287
    %2289 = vrot.lane.b32.xlu0 %v1882, 8
    %v2290 = vpop.permute.xlu0 %2289
    %2295 = vrot.lane.b32.xlu0 %v2077, 16
    %v2296 = vpop.permute.xlu0 %2295
    %2297 = vrot.lane.b32.xlu0 %v2082, 16
    %v2298 = vpop.permute.xlu0 %2297
    %2303 = vrot.lane.b32.xlu0 %v2277, 24
    %v2304 = vpop.permute.xlu0 %2303
    %2305 = vrot.lane.b32.xlu0 %v2282, 24
    %v2306 = vpop.permute.xlu0 %2305
    %v2309 = vsel %vm194, %v1677, %v2288
    %v2310 = vsel %vm194, %v1682, %v2290
    %v2311 = vsel %vm278, %v2309, %v2296
    %v2312 = vsel %vm278, %v2310, %v2298
    %v2313 = vsel %vm1016, %v2311, %v2304
    %v2314 = vsel %vm1016, %v2312, %v2306
    %s2315 = scalar_lea.vmem %s9, 8
    %v2316 = vld [vmem:[%s2315] sm:$0x3f]
    %s2317 = scalar_lea.vmem %s5, 32
    %v2318 = vld [vmem:[%s2317] sm:$0xff]
    %v2319 = vld [vmem:[%s2317 + $0x8] sm:$0xff]
    %v2320 = vld [vmem:[%s2317 + $0x10] sm:$0xff]
    %v2321 = vld [vmem:[%s2317 + $0x18] sm:$0xff]
    %v2322 = vlaneseq
    %v2323 = vshrl.u32 %v2322, 7
    %v2324 = vsub.s32 0, %v2323
    %v2325 = vrot.slane %v2316, %v2324
    %v2327 = vsel %vm54, %v2313, 0
    %v2330 = vsel %vm54, %v2314, 0
    %2332 = vmatprep.subr.mxu0 0.0
    %2333 = vmatpush1.msra.mxu0 %v2318
    %2334 = vmatprep.subr.mxu0 0.0
    %2335 = vmatpush1.msra.mxu0 %v2319
    %2336 = vmatprep.subr.mxu0 0.0
    %2337 = vmatpush1.msra.mxu0 %v2320
    %2338 = vmatprep.subr.mxu0 0.0
    %2339 = vmatpush1.msra.mxu0 %v2321
    %2340 = vmatprep.subr.mxu0 0.0
    %2341 = vmatpush1.msra.mxu0 0.0
    %2342 = vmatprep.subr.mxu0 0.0
    %2343 = vmatpush1.msra.mxu0 0.0
    %2344 = vmatprep.subr.mxu0 0.0
    %2345 = vmatpush1.msra.mxu0 0.0
    %2346 = vmatprep.subr.mxu0 0.0
    %2347 = vmatpush1.msra.mxu0 0.0
    %2348 = vmatprep.subr.mxu0 0.0
    %2349 = vmatpush1.msra.mxu0 0.0
    %2350 = vmatprep.subr.mxu0 0.0
    %2351 = vmatpush1.msra.mxu0 0.0
    %2352 = vmatprep.subr.mxu0 0.0
    %2353 = vmatpush1.msra.mxu0 0.0
    %2354 = vmatprep.subr.mxu0 0.0
    %2355 = vmatpush1.msra.mxu0 0.0
    %2356 = vmatprep.subr.mxu0 0.0
    %2357 = vmatpush1.msra.mxu0 0.0
    %2358 = vmatprep.subr.mxu0 0.0
    %2359 = vmatpush1.msra.mxu0 0.0
    %2360 = vmatprep.subr.mxu0 0.0
    %2361 = vmatpush1.msra.mxu0 0.0
    %2362 = vmatprep.subr.mxu0 0.0
    %2363 = vmatpush1.msra.mxu0 0.0
    %2364 = vmatprep.subr.mxu0 0.0
    %2365 = vmatpush1.msra.mxu0 0.0
    %2366 = vmatprep.subr.mxu0 0.0
    %2367 = vmatpush1.msra.mxu0 0.0
    %2368 = vmatprep.subr.mxu0 0.0
    %2369 = vmatpush1.msra.mxu0 0.0
    %2370 = vmatprep.subr.mxu0 0.0
    %2371 = vmatpush1.msra.mxu0 0.0
    %2372 = vmatprep.subr.mxu0 0.0
    %2373 = vmatpush1.msra.mxu0 0.0
    %2374 = vmatprep.subr.mxu0 0.0
    %2375 = vmatpush1.msra.mxu0 0.0
    %2376 = vmatprep.subr.mxu0 0.0
    %2377 = vmatpush1.msra.mxu0 0.0
    %2378 = vmatprep.subr.mxu0 0.0
    %2379 = vmatpush1.msra.mxu0 0.0
    %2380 = vmatprep.subr.mxu0 0.0
    %2381 = vmatpush1.msra.mxu0 0.0
    %2382 = vmatprep.subr.mxu0 0.0
    %2383 = vmatpush1.msra.mxu0 0.0
    %2384 = vmatprep.subr.mxu0 0.0
    %2385 = vmatpush1.msra.mxu0 0.0
    %2386 = vmatprep.subr.mxu0 0.0
    %2387 = vmatpush1.msra.mxu0 0.0
    %2388 = vmatprep.subr.mxu0 0.0
    %2389 = vmatpush1.msra.mxu0 0.0
    %2390 = vmatprep.subr.mxu0 0.0
    %2391 = vmatpush1.msra.mxu0 0.0
    %2392 = vmatprep.subr.mxu0 0.0
    %2393 = vmatpush1.msra.mxu0 0.0
    %2394 = vmatprep.subr.mxu0 0.0
    %2395 = vmatpush1.msra.mxu0 0.0
    %2396 = vmatprep.mubr.f32.mxu0 0.0
    %2397 = vmatmul.mubr.f32.gmra.mrb[0].mxu0 %v2327
    %v2398 = vpop.f32.mrb[0].mxu0
    %v2399 = vadd.f32 %v2325, %v2398
    %v2400 = vpop.f32.mrb[0].mxu0
    %2401 = vmatprep.mubr.f32.mxu0 0.0
    %2402 = vmatmul.mubr.f32.gmra.mrb[0].mxu0 %v2330
    %v2403 = vpop.f32.mrb[0].mxu0
    %v2404 = vadd.f32 %v2325, %v2403
    %v2405 = vpop.f32.mrb[0].mxu0
    %2406 = vdwg.mxu0
    %v2407 = vadd.f32 %v1391, %v2399
    %v2408 = vadd.f32 %v1392, %v2404
    %v2409 = vsel %vm54, %v2407, 0.0
    %2410 = vadd.xlane.f32.xlu0 %v2409
    %v2411 = vpop.xlane.xlu0 %2410
    %v2412 = vsel %vm54, %v2408, 0.0
    %2413 = vadd.xlane.f32.xlu0 %v2412
    %v2414 = vpop.xlane.xlu0 %2413
    %v2415 = vmul.f32 %v2411, %v61
    %v2416 = vmul.f32 %v2414, %v61
    %v2417 = vsub.f32 %v2407, %v2415
    %v2418 = vsub.f32 %v2408, %v2416
    %v2419 = vmul.f32 %v2417, %v2417
    %v2420 = vmul.f32 %v2418, %v2418
    %v2421 = vsel %vm54, %v2419, 0.0
    %2422 = vadd.xlane.f32.xlu0 %v2421
    %v2423 = vpop.xlane.xlu0 %2422
    %v2424 = vsel %vm54, %v2420, 0.0
    %2425 = vadd.xlane.f32.xlu0 %v2424
    %v2426 = vpop.xlane.xlu0 %2425
    %v2427 = vmul.f32 %v2423, %v61
    %v2428 = vmul.f32 %v2426, %v61
    %v2429 = vadd.f32 %v2427, 1e-12
    %v2430 = vadd.f32 %v2428, 1e-12
    %v2431 = vrsqrt.pop %v2429
    %v2432 = vrsqrt.pop %v2430
    %v2433 = vmul.f32 %v2417, %v2431
    %v2434 = vmul.f32 %v2418, %v2432
    %v2435 = vlaneseq
    %v2436 = vshrl.u32 %v2435, 7
    %v2437 = vsub.s32 1, %v2436
    %v2438 = vrot.slane %v2316, %v2437
    %v2439 = vmul.f32 %v2433, %v2438
    %v2440 = vmul.f32 %v2434, %v2438
    %v2441 = vlaneseq
    %v2442 = vshrl.u32 %v2441, 7
    %v2443 = vsub.s32 2, %v2442
    %v2444 = vrot.slane %v2316, %v2443
    %v2445 = vadd.f32 %v2439, %v2444
    %v2446 = vadd.f32 %v2440, %v2444
    %s2447 = scalar_lea.vmem %s6, 32
    %v2448 = vld [vmem:[%s2447] sm:$0xff]
    %v2449 = vld [vmem:[%s2447 + $0x8] sm:$0xff]
    %v2450 = vld [vmem:[%s2447 + $0x10] sm:$0xff]
    %v2451 = vld [vmem:[%s2447 + $0x18] sm:$0xff]
    %s2452 = scalar_lea.vmem %s7, 1
    %v2453 = vld [vmem:[%s2452] sm:$0x1]
    %v2455 = vlaneseq
    %v2456 = vshrl.u32 %v2455, 7
    %v2457 = vsub.s32 0, %v2456
    %v2458 = vrot.slane %v2453, %v2457
    %v2461 = vsel %vm54, %v2445, 0
    %v2464 = vsel %vm54, %v2446, 0
    %2466 = vmatprep.subr.mxu0 0.0
    %2467 = vmatpush1.msra.mxu0 %v2448
    %2468 = vmatprep.subr.mxu0 0.0
    %2469 = vmatpush1.msra.mxu0 %v2449
    %2470 = vmatprep.subr.mxu0 0.0
    %2471 = vmatpush1.msra.mxu0 %v2450
    %2472 = vmatprep.subr.mxu0 0.0
    %2473 = vmatpush1.msra.mxu0 %v2451
    %2474 = vmatprep.subr.mxu0 0.0
    %2475 = vmatpush1.msra.mxu0 0.0
    %2476 = vmatprep.subr.mxu0 0.0
    %2477 = vmatpush1.msra.mxu0 0.0
    %2478 = vmatprep.subr.mxu0 0.0
    %2479 = vmatpush1.msra.mxu0 0.0
    %2480 = vmatprep.subr.mxu0 0.0
    %2481 = vmatpush1.msra.mxu0 0.0
    %2482 = vmatprep.subr.mxu0 0.0
    %2483 = vmatpush1.msra.mxu0 0.0
    %2484 = vmatprep.subr.mxu0 0.0
    %2485 = vmatpush1.msra.mxu0 0.0
    %2486 = vmatprep.subr.mxu0 0.0
    %2487 = vmatpush1.msra.mxu0 0.0
    %2488 = vmatprep.subr.mxu0 0.0
    %2489 = vmatpush1.msra.mxu0 0.0
    %2490 = vmatprep.subr.mxu0 0.0
    %2491 = vmatpush1.msra.mxu0 0.0
    %2492 = vmatprep.subr.mxu0 0.0
    %2493 = vmatpush1.msra.mxu0 0.0
    %2494 = vmatprep.subr.mxu0 0.0
    %2495 = vmatpush1.msra.mxu0 0.0
    %2496 = vmatprep.subr.mxu0 0.0
    %2497 = vmatpush1.msra.mxu0 0.0
    %2498 = vmatprep.subr.mxu0 0.0
    %2499 = vmatpush1.msra.mxu0 0.0
    %2500 = vmatprep.subr.mxu0 0.0
    %2501 = vmatpush1.msra.mxu0 0.0
    %2502 = vmatprep.subr.mxu0 0.0
    %2503 = vmatpush1.msra.mxu0 0.0
    %2504 = vmatprep.subr.mxu0 0.0
    %2505 = vmatpush1.msra.mxu0 0.0
    %2506 = vmatprep.subr.mxu0 0.0
    %2507 = vmatpush1.msra.mxu0 0.0
    %2508 = vmatprep.subr.mxu0 0.0
    %2509 = vmatpush1.msra.mxu0 0.0
    %2510 = vmatprep.subr.mxu0 0.0
    %2511 = vmatpush1.msra.mxu0 0.0
    %2512 = vmatprep.subr.mxu0 0.0
    %2513 = vmatpush1.msra.mxu0 0.0
    %2514 = vmatprep.subr.mxu0 0.0
    %2515 = vmatpush1.msra.mxu0 0.0
    %2516 = vmatprep.subr.mxu0 0.0
    %2517 = vmatpush1.msra.mxu0 0.0
    %2518 = vmatprep.subr.mxu0 0.0
    %2519 = vmatpush1.msra.mxu0 0.0
    %2520 = vmatprep.subr.mxu0 0.0
    %2521 = vmatpush1.msra.mxu0 0.0
    %2522 = vmatprep.subr.mxu0 0.0
    %2523 = vmatpush1.msra.mxu0 0.0
    %2524 = vmatprep.subr.mxu0 0.0
    %2525 = vmatpush1.msra.mxu0 0.0
    %2526 = vmatprep.subr.mxu0 0.0
    %2527 = vmatpush1.msra.mxu0 0.0
    %2528 = vmatprep.subr.mxu0 0.0
    %2529 = vmatpush1.msra.mxu0 0.0
    %2530 = vmatprep.mubr.f32.mxu0 0.0
    %2531 = vmatmul.mubr.f32.gmra.mrb[0].mxu0 %v2461
    %v2532 = vpop.f32.mrb[0].mxu0
    %v2533 = vadd.f32 %v2458, %v2532
    %v2534 = vpop.f32.mrb[0].mxu0
    %2535 = vmatprep.mubr.f32.mxu0 0.0
    %2536 = vmatmul.mubr.f32.gmra.mrb[0].mxu0 %v2464
    %v2537 = vpop.f32.mrb[0].mxu0
    %v2538 = vadd.f32 %v2458, %v2537
    %v2539 = vpop.f32.mrb[0].mxu0
    %2540 = vdwg.mxu0
    %v2541 = vmul.f32 %v2533, 0.5
    %v2542 = vmul.f32 %v2538, 0.5
    %v2543 = vmul.f32 %v2533, 0.044715
    %v2544 = vmul.f32 %v2538, 0.044715
    %v2545 = vmul.f32 %v2543, %v2533
    %v2546 = vmul.f32 %v2544, %v2538
    %v2547 = vmul.f32 %v2545, %v2533
    %v2548 = vmul.f32 %v2546, %v2538
    %v2549 = vadd.f32 %v2533, %v2547
    %v2550 = vadd.f32 %v2538, %v2548
    %v2551 = vmul.f32 %v2549, 0.7978846
    %v2552 = vmul.f32 %v2550, 0.7978846
    %v2553 = vtanh.pop %v2551
    %v2554 = vtanh.pop %v2552
    %v2555 = vadd.f32 %v2553, 1.0
    %v2556 = vadd.f32 %v2554, 1.0
    %v2557 = vmul.f32 %v2541, %v2555
    %v2558 = vmul.f32 %v2542, %v2556
    %s2559 = scalar_lea.vmem %s8, 64
    %v2560 = vld [vmem:[%s2559] sm:$0xff]
    %v2561 = vld [vmem:[%s2559 + $0x8] sm:$0xff]
    %v2562 = vld [vmem:[%s2559 + $0x10] sm:$0xff]
    %v2563 = vld [vmem:[%s2559 + $0x18] sm:$0xff]
    %v2564 = vld [vmem:[%s2559 + $0x20] sm:$0xff]
    %v2565 = vld [vmem:[%s2559 + $0x28] sm:$0xff]
    %v2566 = vld [vmem:[%s2559 + $0x30] sm:$0xff]
    %v2567 = vld [vmem:[%s2559 + $0x38] sm:$0xff]
    %v2568 = vlaneseq
    %v2569 = vshrl.u32 %v2568, 7
    %v2570 = vsub.s32 3, %v2569
    %v2571 = vrot.slane %v2316, %v2570
    %v2573 = vsel %vm1271, %v2557, 0
    %v2576 = vsel %vm1271, %v2558, 0
    %2578 = vmatprep.subr.mxu0 0.0
    %2579 = vmatpush1.msra.mxu0 %v2560
    %2580 = vmatprep.subr.mxu0 0.0
    %2581 = vmatpush1.msra.mxu0 %v2561
    %2582 = vmatprep.subr.mxu0 0.0
    %2583 = vmatpush1.msra.mxu0 %v2562
    %2584 = vmatprep.subr.mxu0 0.0
    %2585 = vmatpush1.msra.mxu0 %v2563
    %2586 = vmatprep.subr.mxu0 0.0
    %2587 = vmatpush1.msra.mxu0 %v2564
    %2588 = vmatprep.subr.mxu0 0.0
    %2589 = vmatpush1.msra.mxu0 %v2565
    %2590 = vmatprep.subr.mxu0 0.0
    %2591 = vmatpush1.msra.mxu0 %v2566
    %2592 = vmatprep.subr.mxu0 0.0
    %2593 = vmatpush1.msra.mxu0 %v2567
    %2594 = vmatprep.subr.mxu0 0.0
    %2595 = vmatpush1.msra.mxu0 0.0
    %2596 = vmatprep.subr.mxu0 0.0
    %2597 = vmatpush1.msra.mxu0 0.0
    %2598 = vmatprep.subr.mxu0 0.0
    %2599 = vmatpush1.msra.mxu0 0.0
    %2600 = vmatprep.subr.mxu0 0.0
    %2601 = vmatpush1.msra.mxu0 0.0
    %2602 = vmatprep.subr.mxu0 0.0
    %2603 = vmatpush1.msra.mxu0 0.0
    %2604 = vmatprep.subr.mxu0 0.0
    %2605 = vmatpush1.msra.mxu0 0.0
    %2606 = vmatprep.subr.mxu0 0.0
    %2607 = vmatpush1.msra.mxu0 0.0
    %2608 = vmatprep.subr.mxu0 0.0
    %2609 = vmatpush1.msra.mxu0 0.0
    %2610 = vmatprep.subr.mxu0 0.0
    %2611 = vmatpush1.msra.mxu0 0.0
    %2612 = vmatprep.subr.mxu0 0.0
    %2613 = vmatpush1.msra.mxu0 0.0
    %2614 = vmatprep.subr.mxu0 0.0
    %2615 = vmatpush1.msra.mxu0 0.0
    %2616 = vmatprep.subr.mxu0 0.0
    %2617 = vmatpush1.msra.mxu0 0.0
    %2618 = vmatprep.subr.mxu0 0.0
    %2619 = vmatpush1.msra.mxu0 0.0
    %2620 = vmatprep.subr.mxu0 0.0
    %2621 = vmatpush1.msra.mxu0 0.0
    %2622 = vmatprep.subr.mxu0 0.0
    %2623 = vmatpush1.msra.mxu0 0.0
    %2624 = vmatprep.subr.mxu0 0.0
    %2625 = vmatpush1.msra.mxu0 0.0
    %2626 = vmatprep.subr.mxu0 0.0
    %2627 = vmatpush1.msra.mxu0 0.0
    %2628 = vmatprep.subr.mxu0 0.0
    %2629 = vmatpush1.msra.mxu0 0.0
    %2630 = vmatprep.subr.mxu0 0.0
    %2631 = vmatpush1.msra.mxu0 0.0
    %2632 = vmatprep.subr.mxu0 0.0
    %2633 = vmatpush1.msra.mxu0 0.0
    %2634 = vmatprep.subr.mxu0 0.0
    %2635 = vmatpush1.msra.mxu0 0.0
    %2636 = vmatprep.subr.mxu0 0.0
    %2637 = vmatpush1.msra.mxu0 0.0
    %2638 = vmatprep.subr.mxu0 0.0
    %2639 = vmatpush1.msra.mxu0 0.0
    %2640 = vmatprep.subr.mxu0 0.0
    %2641 = vmatpush1.msra.mxu0 0.0
    %2642 = vmatprep.mubr.f32.mxu0 0.0
    %2643 = vmatmul.mubr.f32.gmra.mrb[0].mxu0 %v2573
    %v2644 = vpop.f32.mrb[0].mxu0
    %v2645 = vadd.f32 %v2571, %v2644
    %v2646 = vpop.f32.mrb[0].mxu0
    %2647 = vmatprep.mubr.f32.mxu0 0.0
    %2648 = vmatmul.mubr.f32.gmra.mrb[0].mxu0 %v2576
    %v2649 = vpop.f32.mrb[0].mxu0
    %v2650 = vadd.f32 %v2571, %v2649
    %v2651 = vpop.f32.mrb[0].mxu0
    %2652 = vdwg.mxu0
    %v2653 = vadd.f32 %v2445, %v2645
    %v2654 = vadd.f32 %v2446, %v2650
    %v2655 = vsel %vm54, %v2653, 0.0
    %2656 = vadd.xlane.f32.xlu0 %v2655
    %v2657 = vpop.xlane.xlu0 %2656
    %v2658 = vsel %vm54, %v2654, 0.0
    %2659 = vadd.xlane.f32.xlu0 %v2658
    %v2660 = vpop.xlane.xlu0 %2659
    %v2661 = vmul.f32 %v2657, %v61
    %v2662 = vmul.f32 %v2660, %v61
    %v2663 = vsub.f32 %v2653, %v2661
    %v2664 = vsub.f32 %v2654, %v2662
    %v2665 = vmul.f32 %v2663, %v2663
    %v2666 = vmul.f32 %v2664, %v2664
    %v2667 = vsel %vm54, %v2665, 0.0
    %2668 = vadd.xlane.f32.xlu0 %v2667
    %v2669 = vpop.xlane.xlu0 %2668
    %v2670 = vsel %vm54, %v2666, 0.0
    %2671 = vadd.xlane.f32.xlu0 %v2670
    %v2672 = vpop.xlane.xlu0 %2671
    %v2673 = vmul.f32 %v2669, %v61
    %v2674 = vmul.f32 %v2672, %v61
    %v2675 = vadd.f32 %v2673, 1e-12
    %v2676 = vadd.f32 %v2674, 1e-12
    %v2677 = vrsqrt.pop %v2675
    %v2678 = vrsqrt.pop %v2676
    %v2679 = vmul.f32 %v2663, %v2677
    %v2680 = vmul.f32 %v2664, %v2678
    %v2681 = vlaneseq
    %v2682 = vshrl.u32 %v2681, 7
    %v2683 = vsub.s32 4, %v2682
    %v2684 = vrot.slane %v2316, %v2683
    %v2685 = vmul.f32 %v2679, %v2684
    %v2686 = vmul.f32 %v2680, %v2684
    %v2687 = vlaneseq
    %v2688 = vshrl.u32 %v2687, 7
    %v2689 = vsub.s32 5, %v2688
    %v2690 = vrot.slane %v2316, %v2689
    %v2691 = vadd.f32 %v2685, %v2690
    %v2692 = vadd.f32 %v2686, %v2690
    %2693 = vst.msk [vmem:[#allocation5] sm:$0xff] %vm54, %v2691
    %2694 = vst.msk [vmem:[#allocation5 + $0x8] sm:$0xff] %vm54, %v2692
    // Predicated region
    $region46: #{tpu_custom_call.1} parent=1 // pred_check
      _
    $region47: #{tpu_custom_call.1} parent=1 // pred_check_branch
      %2696 = sbr.rel (0) target = $region49
    $region48: #{tpu_custom_call.1} parent=1 // pred_region
      %s2698 = ssub.s32 256, 256
      %2699 = vsyncadd [#allocation4], %s2698
      %s2700 = sshll.u32 [#allocation5], 4
      %s2701 = int_to_ptr.vmem [resolvable:$true] %s2700
      %2706 = dma.vmem_to_hbm [thread:$0]  %s2701, 256, %s10, [#allocation4], 128, 128, 8
    $region49: #{tpu_custom_call.1} parent=1 // pred_fallthru
      _
    // Predicated region
    $region50: #{tpu_custom_call.1} parent=1 // pred_check
      _
    $region51: #{tpu_custom_call.1} parent=1 // pred_check_branch
      %2708 = sbr.rel (0) target = $region53
    $region52: #{tpu_custom_call.1} parent=1 // pred_region
      %2709 = dma.done [#allocation4], 256
    $region53: #{tpu_custom_call.1} parent=1 // pred_fallthru
      _
    %2710 = vsyncpa [#allocation3], 1
    %2711 = vsyncpa [#allocation4], 1

</llo_original>
